<compile_context>
chip_gen: v7x
topology: tpu7x:2x2x1
jax: 0.10.0
libtpu: 0.0.40
codegen_flags: <defaults>
</compile_context>

<pallas_src>
import functools

import jax
import jax.numpy as jnp
from jax.experimental import pallas as pl
from jax.experimental.pallas import tpu as pltpu

LANE = 128
SUBLANE = 8


def _round_up(x, m):
    return ((x + m - 1) // m) * m


# ----------------------------- Pallas kernel --------------------------------

def generator_kernel(seq_len, hidden_dim,
                     feed0_ref, y_ref, h0_ref, h1_ref,
                     w1feed_ref, w1y_ref, w1h_ref, b1c_ref,
                     w2i_ref, w2h_ref, b2c_ref,
                     wo_ref, bo_ref,
                     out_ref):
    H = hidden_dim
    B = h0_ref.shape[0]
    GWp = w1h_ref.shape[1]          # padded 4-gate-block width (128 for H = 32)

    feed = feed0_ref[...]           # (B, 1)   step-0 "x", then the fed-back output
    h0 = h0_ref[...]                # (B, H)   layer-1 hidden (unpadded)
    h1 = h1_ref[...]                # (B, H)   layer-2 hidden (unpadded)
    w1h = w1h_ref[...]              # (H, GWp) blocks [U_r | U_z | 0   | U_n]
    w2i = w2i_ref[...]              # (H, GWp) blocks [W_r | W_z | W_n | 0  ]
    w2h = w2h_ref[...]              # (H, GWp) blocks [U_r | U_z | 0   | U_n]
    wo = wo_ref[...]                # (1, H)
    bo = bo_ref[0]                  # scalar (SMEM)

    # Loop-invariant: y-path of layer-1's input gates plus ALL layer-1 biases
    # (r/z biases pre-combined, b_in in block 3, b_hh_n in block 4).  (B, GWp)
    gy = jnp.dot(y_ref[...], w1y_ref[...],
                 preferred_element_type=jnp.float32) + b1c_ref[...]

    # Hoist loop-invariant broadcasts out of the unrolled loop (JAX does not
    # CSE broadcast_in_dim; they would otherwise be re-emitted every step).
    w1feed_b = jnp.broadcast_to(w1feed_ref[...], (B, GWp))   # (B, GWp)
    b2c_b = jnp.broadcast_to(b2c_ref[...], (B, GWp))         # (B, GWp)
    wo_b = jnp.broadcast_to(wo, (B, H))                       # (B, H)
    bo_b = jnp.broadcast_to(bo, (B, 1))                       # (B, 1)

    def gru_update(g, h_prev):
        # Dense 4-block gate layout (each block H lanes wide):
        #   g = [gi_r+gh_r+b_r | gi_z+gh_z+b_z | gi_n+b_in | gh_n+b_hn]
        s = jax.nn.sigmoid(g)                 # one EUP pass; r, z in blocks 0, 1
        r = s[:, 0:H]
        z = s[:, H:2 * H]
        n = jnp.tanh(g[:, 2 * H:3 * H] + r * g[:, 3 * H:4 * H])
        return (1.0 - z) * n + z * h_prev

    # TODO(synk): the recurrent weights could additionally be pinned in the MXU
    # across the unrolled loop via pltpu.matmul_push_rhs/matmul_acc_lhs/
    # matmul_pop; kept on portable jnp.dot here (v5e/v6e/v7x).
    outs = []
    for _ in range(seq_len):
        # layer 1: hidden path = ONE (B,H)x(H,4H) MXU matmul; feedback path
        # (output_dim == 1) is a VPU lane-broadcast multiply (no concat/matmul).
        g1 = (jnp.dot(h0, w1h, preferred_element_type=jnp.float32)
              + feed * w1feed_b + gy)
        h0 = gru_update(g1, h0)
        # layer 2: two small matmuls in the shared 4-block layout.  The h1-path
        # matmul only depends on the previous step, so it stays off the serial
        # h0_new -> gi2 critical path (latency-bound regime at B = 2).
        g2 = (jnp.dot(h0, w2i, preferred_element_type=jnp.float32)
              + jnp.dot(h1, w2h, preferred_element_type=jnp.float32)
              + b2c_b)
        h1 = gru_update(g2, h1)
        # output projection (N = output_dim = 1): VPU multiply + lane reduction
        # + ReLU (cheaper than a 1-column MXU matmul on every generation).
        out = jnp.maximum(jnp.sum(h1 * wo_b, axis=-1, keepdims=True) + bo_b, 0.0)
        outs.append(out)
        feed = out                                            # feedback, no concat

    out_ref[...] = jnp.concatenate(outs, axis=1)              # single store


# ------------------------------- wrapper -------------------------------------

def generator_forward(z1, y, x, hidden_1, seq_len, params, output_dim):
    """Matches Generator.forward(z1, y, x, hidden_1, len)."""
    assert output_dim == 1, "feedback path is specialized for output_dim == 1"
    B = z1.shape[0]
    H = hidden_1.shape[1]
    y_dim = y.shape[1]
    ypad = _round_up(y_dim, SUBLANE)
    assert z1.shape[1] + y_dim == H, "cat(z1, y) must equal hidden_dim"

    h0 = jnp.concatenate([z1, y], axis=1).astype(jnp.float32)        # (B, H)
    h1 = hidden_1.astype(jnp.float32)                                 # (B, H)
    feed0 = x.astype(jnp.float32)                                     # (B, 1)
    y_in = jnp.pad(y.astype(jnp.float32), ((0, 0), (0, ypad - y_dim)))

    args = (feed0, y_in, h0, h1,
            params["w1feed"], params["w1y"], params["w1h"], params["b1c"],
            params["w2i"], params["w2h"], params["b2c"],
            params["wo"], params["bo"])

    vmem = pl.BlockSpec(memory_space=pltpu.MemorySpace.VMEM)
    smem = pl.BlockSpec(memory_space=pltpu.MemorySpace.SMEM)
    in_specs = [vmem] * (len(args) - 1) + [smem]     # final bias is an SMEM scalar

    fn = pl.pallas_call(
        functools.partial(generator_kernel, seq_len, H),
        out_shape=jax.ShapeDtypeStruct((B, seq_len * output_dim), jnp.float32),
        in_specs=in_specs,
        out_specs=vmem,
    )
    return fn(*args)


# --------------------------- parameter setup ---------------------------------

def pack_params(raw, input_dim, hidden_dim, output_dim, y_dim):
    """Pack PyTorch-layout GRU weights into the dense 4-block kernel layout.

    Gate-block layout along the lane axis (each block hidden_dim lanes wide,
    total padded to a multiple of 128 lanes):
        input  weights -> [W_r | W_z | W_n | 0 ]
        hidden weights -> [U_r | U_z | 0   | U_n]
        bias           -> [b_ir+b_hr | b_iz+b_hz | b_in | b_hn]
    so per-gate extraction in the kernel is a plain H-lane slice and b_hh_n
    needs no separate add inside the r*(...) term.
    """
    H = hidden_dim
    GW = 4 * H
    GWp = _round_up(GW, LANE)

    def gate(w, g):                      # (3H, in) -> (in, H) block of gate g
        return w[g * H:(g + 1) * H, :].T.astype(jnp.float32)

    def zeros(rows):
        return jnp.zeros((rows, H), jnp.float32)

    def assemble(blocks):                # 4 x (rows, H) -> (rows, GWp)
        out = jnp.concatenate(blocks, axis=1)
        if GWp > GW:
            out = jnp.pad(out, ((0, 0), (0, GWp - GW)))
        return out

    ypad = _round_up(y_dim, SUBLANE)

    # layer-1 input weights, split into feedback (x / fed-back output) rows and y rows
    w1i = [gate(raw["w1_ih"], g) for g in range(3)]          # each (input_dim, H)
    w1feed = assemble([w1i[0][:output_dim], w1i[1][:output_dim],
                       w1i[2][:output_dim], zeros(output_dim)])
    w1y = assemble([w1i[0][output_dim:], w1i[1][output_dim:],
                    w1i[2][output_dim:], zeros(y_dim)])
    w1y = jnp.pad(w1y, ((0, ypad - y_dim), (0, 0)))          # (ypad, GWp)

    w1h_g = [gate(raw["w1_hh"], g) for g in range(3)]
    w1h = assemble([w1h_g[0], w1h_g[1], zeros(H), w1h_g[2]])  # (H, GWp)

    w2i_g = [gate(raw["w2_ih"], g) for g in range(3)]
    w2i = assemble([w2i_g[0], w2i_g[1], w2i_g[2], zeros(H)])  # (H, GWp)
    w2h_g = [gate(raw["w2_hh"], g) for g in range(3)]
    w2h = assemble([w2h_g[0], w2h_g[1], zeros(H), w2h_g[2]])  # (H, GWp)

    def bias4(b_ih, b_hh):
        blocks = [(b_ih[:H] + b_hh[:H]).reshape(1, H),
                  (b_ih[H:2 * H] + b_hh[H:2 * H]).reshape(1, H),
                  b_ih[2 * H:].reshape(1, H),
                  b_hh[2 * H:].reshape(1, H)]
        return assemble([b.astype(jnp.float32) for b in blocks])   # (1, GWp)

    return dict(
        w1feed=w1feed, w1y=w1y, w1h=w1h, b1c=bias4(raw["b1_ih"], raw["b1_hh"]),
        w2i=w2i, w2h=w2h, b2c=bias4(raw["b2_ih"], raw["b2_hh"]),
        wo=raw["w_out"].astype(jnp.float32),                   # (output_dim, H)
        bo=raw["b_out"].astype(jnp.float32),                   # (output_dim,)
    )


def init_params(key, input_dim, hidden_dim, output_dim, y_dim):
    """Deterministic U(-1/sqrt(H), 1/sqrt(H)) init (PyTorch default shapes)."""
    k = 1.0 / float(hidden_dim) ** 0.5
    keys = jax.random.split(key, 10)

    def u(kk, shape):
        return jax.random.uniform(kk, shape, jnp.float32, -k, k)

    raw = dict(
        w1_ih=u(keys[0], (3 * hidden_dim, input_dim)),
        w1_hh=u(keys[1], (3 * hidden_dim, hidden_dim)),
        b1_ih=u(keys[2], (3 * hidden_dim,)),
        b1_hh=u(keys[3], (3 * hidden_dim,)),
        w2_ih=u(keys[4], (3 * hidden_dim, hidden_dim)),
        w2_hh=u(keys[5], (3 * hidden_dim, hidden_dim)),
        b2_ih=u(keys[6], (3 * hidden_dim,)),
        b2_hh=u(keys[7], (3 * hidden_dim,)),
        w_out=u(keys[8], (output_dim, hidden_dim)),
        b_out=u(keys[9], (output_dim,)),
    )
    kern = pack_params(raw, input_dim, hidden_dim, output_dim, y_dim)
    return raw, kern


# ---------------------------- pure-JAX reference ------------------------------

def _gru_ref(x, h, w_ih, w_hh, b_ih, b_hh, H):
    gi = x @ w_ih.T + b_ih
    gh = h @ w_hh.T + b_hh
    r = jax.nn.sigmoid(gi[:, :H] + gh[:, :H])
    z = jax.nn.sigmoid(gi[:, H:2 * H] + gh[:, H:2 * H])
    n = jnp.tanh(gi[:, 2 * H:] + r * gh[:, 2 * H:])
    return (1.0 - z) * n + z * h


def generator_ref(z1, y, x, hidden_1, seq_len, raw, hidden_dim, output_dim):
    state_0 = jnp.concatenate([z1, y], axis=1).astype(jnp.float32)
    state_1 = hidden_1.astype(jnp.float32)
    inp = jnp.concatenate([x, y], axis=1).astype(jnp.float32)
    outs = []
    for _ in range(seq_len):
        state_0 = _gru_ref(inp, state_0, raw["w1_ih"], raw["w1_hh"],
                           raw["b1_ih"], raw["b1_hh"], hidden_dim)
        state_1 = _gru_ref(state_0, state_1, raw["w2_ih"], raw["w2_hh"],
                           raw["b2_ih"], raw["b2_hh"], hidden_dim)
        out = jnp.maximum(state_1 @ raw["w_out"].T + raw["b_out"], 0.0)
        outs.append(out)
        inp = jnp.concatenate([out, y], axis=1)
    return jnp.concatenate(outs, axis=1)


# --------------------------------- main ---------------------------------------

if __name__ == "__main__":
    B = 2
    OUTPUT_DIM = 1                 # module-level `output_dim = 1`
    Y_DIM = 3
    X_DIM = OUTPUT_DIM             # output feeds back in place of x
    INPUT_DIM = X_DIM + Y_DIM      # GRULayer1 input_dim
    HIDDEN_DIM = 32
    Z1_DIM = HIDDEN_DIM - Y_DIM    # cat(z1, y) must equal hidden_dim
    SEQ_LEN = 8

    key = jax.random.PRNGKey(0)
    kp, kz, ky, kx, kh = jax.random.split(key, 5)

    raw, kern = init_params(kp, INPUT_DIM, HIDDEN_DIM, OUTPUT_DIM, Y_DIM)

    z1 = jax.random.normal(kz, (B, Z1_DIM), jnp.float32)
    y = jax.random.normal(ky, (B, Y_DIM), jnp.float32)
    x = jax.random.normal(kx, (B, X_DIM), jnp.float32)
    hidden_1 = jax.random.normal(kh, (B, HIDDEN_DIM), jnp.float32)

    out = generator_forward(z1, y, x, hidden_1, SEQ_LEN, kern, OUTPUT_DIM)
    out = jax.block_until_ready(out)

    ref = generator_ref(z1, y, x, hidden_1, SEQ_LEN, raw, HIDDEN_DIM, OUTPUT_DIM)
    assert out.shape == (B, SEQ_LEN * OUTPUT_DIM)
    assert jnp.allclose(out, ref, atol=1e-4, rtol=1e-4), "mismatch vs JAX reference"

    print("KERNEL_OK")
</pallas_src>

<mosaic_0001>
module attributes {stable_mosaic.version = 11 : i64} {
  func.func @generator_kernel(%arg0: memref<2x1xf32, #tpu.memory_space<vmem>>, %arg1: memref<2x8xf32, #tpu.memory_space<vmem>>, %arg2: memref<2x32xf32, #tpu.memory_space<vmem>>, %arg3: memref<2x32xf32, #tpu.memory_space<vmem>>, %arg4: memref<1x128xf32, #tpu.memory_space<vmem>>, %arg5: memref<8x128xf32, #tpu.memory_space<vmem>>, %arg6: memref<32x128xf32, #tpu.memory_space<vmem>>, %arg7: memref<1x128xf32, #tpu.memory_space<vmem>>, %arg8: memref<32x128xf32, #tpu.memory_space<vmem>>, %arg9: memref<32x128xf32, #tpu.memory_space<vmem>>, %arg10: memref<1x128xf32, #tpu.memory_space<vmem>>, %arg11: memref<1x32xf32, #tpu.memory_space<vmem>>, %arg12: memref<1xf32, #tpu.memory_space<smem>>, %arg13: memref<2x8xf32, #tpu.memory_space<vmem>>) attributes {dimension_semantics = [], scalar_prefetch = 0 : i64, scratch_operands = 0 : i64, tpu.core_type = #tpu.core_type<tc>} {
    %c0 = arith.constant 0 : index
    %c0_0 = arith.constant 0 : index
    %0 = vector.load %arg0[%c0, %c0_0] : memref<2x1xf32, #tpu.memory_space<vmem>>, vector<2x1xf32>
    %c0_1 = arith.constant 0 : index
    %c0_2 = arith.constant 0 : index
    %1 = vector.load %arg2[%c0_1, %c0_2] : memref<2x32xf32, #tpu.memory_space<vmem>>, vector<2x32xf32>
    %c0_3 = arith.constant 0 : index
    %c0_4 = arith.constant 0 : index
    %2 = vector.load %arg3[%c0_3, %c0_4] : memref<2x32xf32, #tpu.memory_space<vmem>>, vector<2x32xf32>
    %c0_5 = arith.constant 0 : index
    %c0_6 = arith.constant 0 : index
    %3 = vector.load %arg6[%c0_5, %c0_6] : memref<32x128xf32, #tpu.memory_space<vmem>>, vector<32x128xf32>
    %c0_7 = arith.constant 0 : index
    %c0_8 = arith.constant 0 : index
    %4 = vector.load %arg8[%c0_7, %c0_8] : memref<32x128xf32, #tpu.memory_space<vmem>>, vector<32x128xf32>
    %c0_9 = arith.constant 0 : index
    %c0_10 = arith.constant 0 : index
    %5 = vector.load %arg9[%c0_9, %c0_10] : memref<32x128xf32, #tpu.memory_space<vmem>>, vector<32x128xf32>
    %c0_11 = arith.constant 0 : index
    %c0_12 = arith.constant 0 : index
    %6 = vector.load %arg11[%c0_11, %c0_12] : memref<1x32xf32, #tpu.memory_space<vmem>>, vector<1x32xf32>
    %c0_13 = arith.constant 0 : index
    %7 = memref.load %arg12[%c0_13] : memref<1xf32, #tpu.memory_space<smem>>
    %c0_14 = arith.constant 0 : index
    %c0_15 = arith.constant 0 : index
    %8 = vector.load %arg1[%c0_14, %c0_15] : memref<2x8xf32, #tpu.memory_space<vmem>>, vector<2x8xf32>
    %c0_16 = arith.constant 0 : index
    %c0_17 = arith.constant 0 : index
    %9 = vector.load %arg5[%c0_16, %c0_17] : memref<8x128xf32, #tpu.memory_space<vmem>>, vector<8x128xf32>
    %cst = arith.constant dense<0.000000e+00> : vector<2x128xf32>
    %10 = tpu.matmul %8, %9, %cst {dimension_numbers = #tpu.dot_dimension_numbers<[1], [0], [0], [1], [0, 0, 1, 1], [], []>} : vector<2x8xf32>, vector<8x128xf32>, vector<2x128xf32> -> vector<2x128xf32>
    %c0_18 = arith.constant 0 : index
    %c0_19 = arith.constant 0 : index
    %11 = vector.load %arg7[%c0_18, %c0_19] : memref<1x128xf32, #tpu.memory_space<vmem>>, vector<1x128xf32>
    %12 = vector.broadcast %11 : vector<1x128xf32> to vector<2x128xf32>
    %13 = arith.addf %10, %12 : vector<2x128xf32>
    %c0_20 = arith.constant 0 : index
    %c0_21 = arith.constant 0 : index
    %14 = vector.load %arg4[%c0_20, %c0_21] : memref<1x128xf32, #tpu.memory_space<vmem>>, vector<1x128xf32>
    %15 = vector.shape_cast %14 : vector<1x128xf32> to vector<1x128xf32>
    %16 = vector.broadcast %15 : vector<1x128xf32> to vector<2x128xf32>
    %c0_22 = arith.constant 0 : index
    %c0_23 = arith.constant 0 : index
    %17 = vector.load %arg10[%c0_22, %c0_23] : memref<1x128xf32, #tpu.memory_space<vmem>>, vector<1x128xf32>
    %18 = vector.shape_cast %17 : vector<1x128xf32> to vector<1x128xf32>
    %19 = vector.broadcast %18 : vector<1x128xf32> to vector<2x128xf32>
    %20 = vector.shape_cast %6 : vector<1x32xf32> to vector<1x32xf32>
    %21 = vector.broadcast %20 : vector<1x32xf32> to vector<2x32xf32>
    %22 = vector.broadcast %7 : f32 to vector<2x1xf32>
    %cst_24 = arith.constant dense<0.000000e+00> : vector<2x128xf32>
    %23 = tpu.matmul %1, %3, %cst_24 {dimension_numbers = #tpu.dot_dimension_numbers<[1], [0], [0], [1], [0, 0, 1, 1], [], []>} : vector<2x32xf32>, vector<32x128xf32>, vector<2x128xf32> -> vector<2x128xf32>
    %24 = vector.broadcast %0 : vector<2x1xf32> to vector<2x128xf32>
    %25 = arith.mulf %24, %16 : vector<2x128xf32>
    %26 = arith.addf %23, %25 : vector<2x128xf32>
    %27 = arith.addf %26, %13 : vector<2x128xf32>
    %28 = arith.negf %27 : vector<2x128xf32>
    %29 = math.exp %28 : vector<2x128xf32>
    %cst_25 = arith.constant 1.000000e+00 : f32
    %30 = vector.broadcast %cst_25 : f32 to vector<2x128xf32>
    %31 = arith.addf %30, %29 : vector<2x128xf32>
    %32 = arith.divf %30, %31 : vector<2x128xf32>
    %33 = vector.extract_strided_slice %32 {offsets = [0, 0], sizes = [2, 32], strides = [1, 1]} : vector<2x128xf32> to vector<2x32xf32>
    %34 = vector.extract_strided_slice %32 {offsets = [0, 32], sizes = [2, 32], strides = [1, 1]} : vector<2x128xf32> to vector<2x32xf32>
    %35 = vector.extract_strided_slice %27 {offsets = [0, 64], sizes = [2, 32], strides = [1, 1]} : vector<2x128xf32> to vector<2x32xf32>
    %36 = vector.extract_strided_slice %27 {offsets = [0, 96], sizes = [2, 32], strides = [1, 1]} : vector<2x128xf32> to vector<2x32xf32>
    %37 = arith.mulf %33, %36 : vector<2x32xf32>
    %38 = arith.addf %35, %37 : vector<2x32xf32>
    %39 = math.tanh %38 : vector<2x32xf32>
    %cst_26 = arith.constant 1.000000e+00 : f32
    %40 = vector.broadcast %cst_26 : f32 to vector<2x32xf32>
    %41 = arith.subf %40, %34 : vector<2x32xf32>
    %42 = arith.mulf %41, %39 : vector<2x32xf32>
    %43 = arith.mulf %34, %1 : vector<2x32xf32>
    %44 = arith.addf %42, %43 : vector<2x32xf32>
    %cst_27 = arith.constant dense<0.000000e+00> : vector<2x128xf32>
    %45 = tpu.matmul %44, %4, %cst_27 {dimension_numbers = #tpu.dot_dimension_numbers<[1], [0], [0], [1], [0, 0, 1, 1], [], []>} : vector<2x32xf32>, vector<32x128xf32>, vector<2x128xf32> -> vector<2x128xf32>
    %cst_28 = arith.constant dense<0.000000e+00> : vector<2x128xf32>
    %46 = tpu.matmul %2, %5, %cst_28 {dimension_numbers = #tpu.dot_dimension_numbers<[1], [0], [0], [1], [0, 0, 1, 1], [], []>} : vector<2x32xf32>, vector<32x128xf32>, vector<2x128xf32> -> vector<2x128xf32>
    %47 = arith.addf %45, %46 : vector<2x128xf32>
    %48 = arith.addf %47, %19 : vector<2x128xf32>
    %49 = arith.negf %48 : vector<2x128xf32>
    %50 = math.exp %49 : vector<2x128xf32>
    %cst_29 = arith.constant 1.000000e+00 : f32
    %51 = vector.broadcast %cst_29 : f32 to vector<2x128xf32>
    %52 = arith.addf %51, %50 : vector<2x128xf32>
    %53 = arith.divf %51, %52 : vector<2x128xf32>
    %54 = vector.extract_strided_slice %53 {offsets = [0, 0], sizes = [2, 32], strides = [1, 1]} : vector<2x128xf32> to vector<2x32xf32>
    %55 = vector.extract_strided_slice %53 {offsets = [0, 32], sizes = [2, 32], strides = [1, 1]} : vector<2x128xf32> to vector<2x32xf32>
    %56 = vector.extract_strided_slice %48 {offsets = [0, 64], sizes = [2, 32], strides = [1, 1]} : vector<2x128xf32> to vector<2x32xf32>
    %57 = vector.extract_strided_slice %48 {offsets = [0, 96], sizes = [2, 32], strides = [1, 1]} : vector<2x128xf32> to vector<2x32xf32>
    %58 = arith.mulf %54, %57 : vector<2x32xf32>
    %59 = arith.addf %56, %58 : vector<2x32xf32>
    %60 = math.tanh %59 : vector<2x32xf32>
    %cst_30 = arith.constant 1.000000e+00 : f32
    %61 = vector.broadcast %cst_30 : f32 to vector<2x32xf32>
    %62 = arith.subf %61, %55 : vector<2x32xf32>
    %63 = arith.mulf %62, %60 : vector<2x32xf32>
    %64 = arith.mulf %55, %2 : vector<2x32xf32>
    %65 = arith.addf %63, %64 : vector<2x32xf32>
    %66 = arith.mulf %65, %21 : vector<2x32xf32>
    %cst_31 = arith.constant dense<0.000000e+00> : vector<2xf32>
    %67 = vector.multi_reduction <add>, %66, %cst_31 [1] : vector<2x32xf32> to vector<2xf32>
    %68 = vector.shape_cast %67 : vector<2xf32> to vector<2x1xf32>
    %69 = arith.addf %68, %22 : vector<2x1xf32>
    %cst_32 = arith.constant 0.000000e+00 : f32
    %70 = vector.broadcast %cst_32 : f32 to vector<2x1xf32>
    %71 = arith.maximumf %69, %70 : vector<2x1xf32>
    %cst_33 = arith.constant dense<0.000000e+00> : vector<2x128xf32>
    %72 = tpu.matmul %44, %3, %cst_33 {dimension_numbers = #tpu.dot_dimension_numbers<[1], [0], [0], [1], [0, 0, 1, 1], [], []>} : vector<2x32xf32>, vector<32x128xf32>, vector<2x128xf32> -> vector<2x128xf32>
    %73 = vector.broadcast %71 : vector<2x1xf32> to vector<2x128xf32>
    %74 = arith.mulf %73, %16 : vector<2x128xf32>
    %75 = arith.addf %72, %74 : vector<2x128xf32>
    %76 = arith.addf %75, %13 : vector<2x128xf32>
    %77 = arith.negf %76 : vector<2x128xf32>
    %78 = math.exp %77 : vector<2x128xf32>
    %cst_34 = arith.constant 1.000000e+00 : f32
    %79 = vector.broadcast %cst_34 : f32 to vector<2x128xf32>
    %80 = arith.addf %79, %78 : vector<2x128xf32>
    %81 = arith.divf %79, %80 : vector<2x128xf32>
    %82 = vector.extract_strided_slice %81 {offsets = [0, 0], sizes = [2, 32], strides = [1, 1]} : vector<2x128xf32> to vector<2x32xf32>
    %83 = vector.extract_strided_slice %81 {offsets = [0, 32], sizes = [2, 32], strides = [1, 1]} : vector<2x128xf32> to vector<2x32xf32>
    %84 = vector.extract_strided_slice %76 {offsets = [0, 64], sizes = [2, 32], strides = [1, 1]} : vector<2x128xf32> to vector<2x32xf32>
    %85 = vector.extract_strided_slice %76 {offsets = [0, 96], sizes = [2, 32], strides = [1, 1]} : vector<2x128xf32> to vector<2x32xf32>
    %86 = arith.mulf %82, %85 : vector<2x32xf32>
    %87 = arith.addf %84, %86 : vector<2x32xf32>
    %88 = math.tanh %87 : vector<2x32xf32>
    %cst_35 = arith.constant 1.000000e+00 : f32
    %89 = vector.broadcast %cst_35 : f32 to vector<2x32xf32>
    %90 = arith.subf %89, %83 : vector<2x32xf32>
    %91 = arith.mulf %90, %88 : vector<2x32xf32>
    %92 = arith.mulf %83, %44 : vector<2x32xf32>
    %93 = arith.addf %91, %92 : vector<2x32xf32>
    %cst_36 = arith.constant dense<0.000000e+00> : vector<2x128xf32>
    %94 = tpu.matmul %93, %4, %cst_36 {dimension_numbers = #tpu.dot_dimension_numbers<[1], [0], [0], [1], [0, 0, 1, 1], [], []>} : vector<2x32xf32>, vector<32x128xf32>, vector<2x128xf32> -> vector<2x128xf32>
    %cst_37 = arith.constant dense<0.000000e+00> : vector<2x128xf32>
    %95 = tpu.matmul %65, %5, %cst_37 {dimension_numbers = #tpu.dot_dimension_numbers<[1], [0], [0], [1], [0, 0, 1, 1], [], []>} : vector<2x32xf32>, vector<32x128xf32>, vector<2x128xf32> -> vector<2x128xf32>
    %96 = arith.addf %94, %95 : vector<2x128xf32>
    %97 = arith.addf %96, %19 : vector<2x128xf32>
    %98 = arith.negf %97 : vector<2x128xf32>
    %99 = math.exp %98 : vector<2x128xf32>
    %cst_38 = arith.constant 1.000000e+00 : f32
    %100 = vector.broadcast %cst_38 : f32 to vector<2x128xf32>
    %101 = arith.addf %100, %99 : vector<2x128xf32>
    %102 = arith.divf %100, %101 : vector<2x128xf32>
    %103 = vector.extract_strided_slice %102 {offsets = [0, 0], sizes = [2, 32], strides = [1, 1]} : vector<2x128xf32> to vector<2x32xf32>
    %104 = vector.extract_strided_slice %102 {offsets = [0, 32], sizes = [2, 32], strides = [1, 1]} : vector<2x128xf32> to vector<2x32xf32>
    %105 = vector.extract_strided_slice %97 {offsets = [0, 64], sizes = [2, 32], strides = [1, 1]} : vector<2x128xf32> to vector<2x32xf32>
    %106 = vector.extract_strided_slice %97 {offsets = [0, 96], sizes = [2, 32], strides = [1, 1]} : vector<2x128xf32> to vector<2x32xf32>
    %107 = arith.mulf %103, %106 : vector<2x32xf32>
    %108 = arith.addf %105, %107 : vector<2x32xf32>
    %109 = math.tanh %108 : vector<2x32xf32>
    %cst_39 = arith.constant 1.000000e+00 : f32
    %110 = vector.broadcast %cst_39 : f32 to vector<2x32xf32>
    %111 = arith.subf %110, %104 : vector<2x32xf32>
    %112 = arith.mulf %111, %109 : vector<2x32xf32>
    %113 = arith.mulf %104, %65 : vector<2x32xf32>
    %114 = arith.addf %112, %113 : vector<2x32xf32>
    %115 = arith.mulf %114, %21 : vector<2x32xf32>
    %cst_40 = arith.constant dense<0.000000e+00> : vector<2xf32>
    %116 = vector.multi_reduction <add>, %115, %cst_40 [1] : vector<2x32xf32> to vector<2xf32>
    %117 = vector.shape_cast %116 : vector<2xf32> to vector<2x1xf32>
    %118 = arith.addf %117, %22 : vector<2x1xf32>
    %cst_41 = arith.constant 0.000000e+00 : f32
    %119 = vector.broadcast %cst_41 : f32 to vector<2x1xf32>
    %120 = arith.maximumf %118, %119 : vector<2x1xf32>
    %cst_42 = arith.constant dense<0.000000e+00> : vector<2x128xf32>
    %121 = tpu.matmul %93, %3, %cst_42 {dimension_numbers = #tpu.dot_dimension_numbers<[1], [0], [0], [1], [0, 0, 1, 1], [], []>} : vector<2x32xf32>, vector<32x128xf32>, vector<2x128xf32> -> vector<2x128xf32>
    %122 = vector.broadcast %120 : vector<2x1xf32> to vector<2x128xf32>
    %123 = arith.mulf %122, %16 : vector<2x128xf32>
    %124 = arith.addf %121, %123 : vector<2x128xf32>
    %125 = arith.addf %124, %13 : vector<2x128xf32>
    %126 = arith.negf %125 : vector<2x128xf32>
    %127 = math.exp %126 : vector<2x128xf32>
    %cst_43 = arith.constant 1.000000e+00 : f32
    %128 = vector.broadcast %cst_43 : f32 to vector<2x128xf32>
    %129 = arith.addf %128, %127 : vector<2x128xf32>
    %130 = arith.divf %128, %129 : vector<2x128xf32>
    %131 = vector.extract_strided_slice %130 {offsets = [0, 0], sizes = [2, 32], strides = [1, 1]} : vector<2x128xf32> to vector<2x32xf32>
    %132 = vector.extract_strided_slice %130 {offsets = [0, 32], sizes = [2, 32], strides = [1, 1]} : vector<2x128xf32> to vector<2x32xf32>
    %133 = vector.extract_strided_slice %125 {offsets = [0, 64], sizes = [2, 32], strides = [1, 1]} : vector<2x128xf32> to vector<2x32xf32>
    %134 = vector.extract_strided_slice %125 {offsets = [0, 96], sizes = [2, 32], strides = [1, 1]} : vector<2x128xf32> to vector<2x32xf32>
    %135 = arith.mulf %131, %134 : vector<2x32xf32>
    %136 = arith.addf %133, %135 : vector<2x32xf32>
    %137 = math.tanh %136 : vector<2x32xf32>
    %cst_44 = arith.constant 1.000000e+00 : f32
    %138 = vector.broadcast %cst_44 : f32 to vector<2x32xf32>
    %139 = arith.subf %138, %132 : vector<2x32xf32>
    %140 = arith.mulf %139, %137 : vector<2x32xf32>
    %141 = arith.mulf %132, %93 : vector<2x32xf32>
    %142 = arith.addf %140, %141 : vector<2x32xf32>
    %cst_45 = arith.constant dense<0.000000e+00> : vector<2x128xf32>
    %143 = tpu.matmul %142, %4, %cst_45 {dimension_numbers = #tpu.dot_dimension_numbers<[1], [0], [0], [1], [0, 0, 1, 1], [], []>} : vector<2x32xf32>, vector<32x128xf32>, vector<2x128xf32> -> vector<2x128xf32>
    %cst_46 = arith.constant dense<0.000000e+00> : vector<2x128xf32>
    %144 = tpu.matmul %114, %5, %cst_46 {dimension_numbers = #tpu.dot_dimension_numbers<[1], [0], [0], [1], [0, 0, 1, 1], [], []>} : vector<2x32xf32>, vector<32x128xf32>, vector<2x128xf32> -> vector<2x128xf32>
    %145 = arith.addf %143, %144 : vector<2x128xf32>
    %146 = arith.addf %145, %19 : vector<2x128xf32>
    %147 = arith.negf %146 : vector<2x128xf32>
    %148 = math.exp %147 : vector<2x128xf32>
    %cst_47 = arith.constant 1.000000e+00 : f32
    %149 = vector.broadcast %cst_47 : f32 to vector<2x128xf32>
    %150 = arith.addf %149, %148 : vector<2x128xf32>
    %151 = arith.divf %149, %150 : vector<2x128xf32>
    %152 = vector.extract_strided_slice %151 {offsets = [0, 0], sizes = [2, 32], strides = [1, 1]} : vector<2x128xf32> to vector<2x32xf32>
    %153 = vector.extract_strided_slice %151 {offsets = [0, 32], sizes = [2, 32], strides = [1, 1]} : vector<2x128xf32> to vector<2x32xf32>
    %154 = vector.extract_strided_slice %146 {offsets = [0, 64], sizes = [2, 32], strides = [1, 1]} : vector<2x128xf32> to vector<2x32xf32>
    %155 = vector.extract_strided_slice %146 {offsets = [0, 96], sizes = [2, 32], strides = [1, 1]} : vector<2x128xf32> to vector<2x32xf32>
    %156 = arith.mulf %152, %155 : vector<2x32xf32>
    %157 = arith.addf %154, %156 : vector<2x32xf32>
    %158 = math.tanh %157 : vector<2x32xf32>
    %cst_48 = arith.constant 1.000000e+00 : f32
    %159 = vector.broadcast %cst_48 : f32 to vector<2x32xf32>
    %160 = arith.subf %159, %153 : vector<2x32xf32>
    %161 = arith.mulf %160, %158 : vector<2x32xf32>
    %162 = arith.mulf %153, %114 : vector<2x32xf32>
    %163 = arith.addf %161, %162 : vector<2x32xf32>
    %164 = arith.mulf %163, %21 : vector<2x32xf32>
    %cst_49 = arith.constant dense<0.000000e+00> : vector<2xf32>
    %165 = vector.multi_reduction <add>, %164, %cst_49 [1] : vector<2x32xf32> to vector<2xf32>
    %166 = vector.shape_cast %165 : vector<2xf32> to vector<2x1xf32>
    %167 = arith.addf %166, %22 : vector<2x1xf32>
    %cst_50 = arith.constant 0.000000e+00 : f32
    %168 = vector.broadcast %cst_50 : f32 to vector<2x1xf32>
    %169 = arith.maximumf %167, %168 : vector<2x1xf32>
    %cst_51 = arith.constant dense<0.000000e+00> : vector<2x128xf32>
    %170 = tpu.matmul %142, %3, %cst_51 {dimension_numbers = #tpu.dot_dimension_numbers<[1], [0], [0], [1], [0, 0, 1, 1], [], []>} : vector<2x32xf32>, vector<32x128xf32>, vector<2x128xf32> -> vector<2x128xf32>
    %171 = vector.broadcast %169 : vector<2x1xf32> to vector<2x128xf32>
    %172 = arith.mulf %171, %16 : vector<2x128xf32>
    %173 = arith.addf %170, %172 : vector<2x128xf32>
    %174 = arith.addf %173, %13 : vector<2x128xf32>
    %175 = arith.negf %174 : vector<2x128xf32>
    %176 = math.exp %175 : vector<2x128xf32>
    %cst_52 = arith.constant 1.000000e+00 : f32
    %177 = vector.broadcast %cst_52 : f32 to vector<2x128xf32>
    %178 = arith.addf %177, %176 : vector<2x128xf32>
    %179 = arith.divf %177, %178 : vector<2x128xf32>
    %180 = vector.extract_strided_slice %179 {offsets = [0, 0], sizes = [2, 32], strides = [1, 1]} : vector<2x128xf32> to vector<2x32xf32>
    %181 = vector.extract_strided_slice %179 {offsets = [0, 32], sizes = [2, 32], strides = [1, 1]} : vector<2x128xf32> to vector<2x32xf32>
    %182 = vector.extract_strided_slice %174 {offsets = [0, 64], sizes = [2, 32], strides = [1, 1]} : vector<2x128xf32> to vector<2x32xf32>
    %183 = vector.extract_strided_slice %174 {offsets = [0, 96], sizes = [2, 32], strides = [1, 1]} : vector<2x128xf32> to vector<2x32xf32>
    %184 = arith.mulf %180, %183 : vector<2x32xf32>
    %185 = arith.addf %182, %184 : vector<2x32xf32>
    %186 = math.tanh %185 : vector<2x32xf32>
    %cst_53 = arith.constant 1.000000e+00 : f32
    %187 = vector.broadcast %cst_53 : f32 to vector<2x32xf32>
    %188 = arith.subf %187, %181 : vector<2x32xf32>
    %189 = arith.mulf %188, %186 : vector<2x32xf32>
    %190 = arith.mulf %181, %142 : vector<2x32xf32>
    %191 = arith.addf %189, %190 : vector<2x32xf32>
    %cst_54 = arith.constant dense<0.000000e+00> : vector<2x128xf32>
    %192 = tpu.matmul %191, %4, %cst_54 {dimension_numbers = #tpu.dot_dimension_numbers<[1], [0], [0], [1], [0, 0, 1, 1], [], []>} : vector<2x32xf32>, vector<32x128xf32>, vector<2x128xf32> -> vector<2x128xf32>
    %cst_55 = arith.constant dense<0.000000e+00> : vector<2x128xf32>
    %193 = tpu.matmul %163, %5, %cst_55 {dimension_numbers = #tpu.dot_dimension_numbers<[1], [0], [0], [1], [0, 0, 1, 1], [], []>} : vector<2x32xf32>, vector<32x128xf32>, vector<2x128xf32> -> vector<2x128xf32>
    %194 = arith.addf %192, %193 : vector<2x128xf32>
    %195 = arith.addf %194, %19 : vector<2x128xf32>
    %196 = arith.negf %195 : vector<2x128xf32>
    %197 = math.exp %196 : vector<2x128xf32>
    %cst_56 = arith.constant 1.000000e+00 : f32
    %198 = vector.broadcast %cst_56 : f32 to vector<2x128xf32>
    %199 = arith.addf %198, %197 : vector<2x128xf32>
    %200 = arith.divf %198, %199 : vector<2x128xf32>
    %201 = vector.extract_strided_slice %200 {offsets = [0, 0], sizes = [2, 32], strides = [1, 1]} : vector<2x128xf32> to vector<2x32xf32>
    %202 = vector.extract_strided_slice %200 {offsets = [0, 32], sizes = [2, 32], strides = [1, 1]} : vector<2x128xf32> to vector<2x32xf32>
    %203 = vector.extract_strided_slice %195 {offsets = [0, 64], sizes = [2, 32], strides = [1, 1]} : vector<2x128xf32> to vector<2x32xf32>
    %204 = vector.extract_strided_slice %195 {offsets = [0, 96], sizes = [2, 32], strides = [1, 1]} : vector<2x128xf32> to vector<2x32xf32>
    %205 = arith.mulf %201, %204 : vector<2x32xf32>
    %206 = arith.addf %203, %205 : vector<2x32xf32>
    %207 = math.tanh %206 : vector<2x32xf32>
    %cst_57 = arith.constant 1.000000e+00 : f32
    %208 = vector.broadcast %cst_57 : f32 to vector<2x32xf32>
    %209 = arith.subf %208, %202 : vector<2x32xf32>
    %210 = arith.mulf %209, %207 : vector<2x32xf32>
    %211 = arith.mulf %202, %163 : vector<2x32xf32>
    %212 = arith.addf %210, %211 : vector<2x32xf32>
    %213 = arith.mulf %212, %21 : vector<2x32xf32>
    %cst_58 = arith.constant dense<0.000000e+00> : vector<2xf32>
    %214 = vector.multi_reduction <add>, %213, %cst_58 [1] : vector<2x32xf32> to vector<2xf32>
    %215 = vector.shape_cast %214 : vector<2xf32> to vector<2x1xf32>
    %216 = arith.addf %215, %22 : vector<2x1xf32>
    %cst_59 = arith.constant 0.000000e+00 : f32
    %217 = vector.broadcast %cst_59 : f32 to vector<2x1xf32>
    %218 = arith.maximumf %216, %217 : vector<2x1xf32>
    %cst_60 = arith.constant dense<0.000000e+00> : vector<2x128xf32>
    %219 = tpu.matmul %191, %3, %cst_60 {dimension_numbers = #tpu.dot_dimension_numbers<[1], [0], [0], [1], [0, 0, 1, 1], [], []>} : vector<2x32xf32>, vector<32x128xf32>, vector<2x128xf32> -> vector<2x128xf32>
    %220 = vector.broadcast %218 : vector<2x1xf32> to vector<2x128xf32>
    %221 = arith.mulf %220, %16 : vector<2x128xf32>
    %222 = arith.addf %219, %221 : vector<2x128xf32>
    %223 = arith.addf %222, %13 : vector<2x128xf32>
    %224 = arith.negf %223 : vector<2x128xf32>
    %225 = math.exp %224 : vector<2x128xf32>
    %cst_61 = arith.constant 1.000000e+00 : f32
    %226 = vector.broadcast %cst_61 : f32 to vector<2x128xf32>
    %227 = arith.addf %226, %225 : vector<2x128xf32>
    %228 = arith.divf %226, %227 : vector<2x128xf32>
    %229 = vector.extract_strided_slice %228 {offsets = [0, 0], sizes = [2, 32], strides = [1, 1]} : vector<2x128xf32> to vector<2x32xf32>
    %230 = vector.extract_strided_slice %228 {offsets = [0, 32], sizes = [2, 32], strides = [1, 1]} : vector<2x128xf32> to vector<2x32xf32>
    %231 = vector.extract_strided_slice %223 {offsets = [0, 64], sizes = [2, 32], strides = [1, 1]} : vector<2x128xf32> to vector<2x32xf32>
    %232 = vector.extract_strided_slice %223 {offsets = [0, 96], sizes = [2, 32], strides = [1, 1]} : vector<2x128xf32> to vector<2x32xf32>
    %233 = arith.mulf %229, %232 : vector<2x32xf32>
    %234 = arith.addf %231, %233 : vector<2x32xf32>
    %235 = math.tanh %234 : vector<2x32xf32>
    %cst_62 = arith.constant 1.000000e+00 : f32
    %236 = vector.broadcast %cst_62 : f32 to vector<2x32xf32>
    %237 = arith.subf %236, %230 : vector<2x32xf32>
    %238 = arith.mulf %237, %235 : vector<2x32xf32>
    %239 = arith.mulf %230, %191 : vector<2x32xf32>
    %240 = arith.addf %238, %239 : vector<2x32xf32>
    %cst_63 = arith.constant dense<0.000000e+00> : vector<2x128xf32>
    %241 = tpu.matmul %240, %4, %cst_63 {dimension_numbers = #tpu.dot_dimension_numbers<[1], [0], [0], [1], [0, 0, 1, 1], [], []>} : vector<2x32xf32>, vector<32x128xf32>, vector<2x128xf32> -> vector<2x128xf32>
    %cst_64 = arith.constant dense<0.000000e+00> : vector<2x128xf32>
    %242 = tpu.matmul %212, %5, %cst_64 {dimension_numbers = #tpu.dot_dimension_numbers<[1], [0], [0], [1], [0, 0, 1, 1], [], []>} : vector<2x32xf32>, vector<32x128xf32>, vector<2x128xf32> -> vector<2x128xf32>
    %243 = arith.addf %241, %242 : vector<2x128xf32>
    %244 = arith.addf %243, %19 : vector<2x128xf32>
    %245 = arith.negf %244 : vector<2x128xf32>
    %246 = math.exp %245 : vector<2x128xf32>
    %cst_65 = arith.constant 1.000000e+00 : f32
    %247 = vector.broadcast %cst_65 : f32 to vector<2x128xf32>
    %248 = arith.addf %247, %246 : vector<2x128xf32>
    %249 = arith.divf %247, %248 : vector<2x128xf32>
    %250 = vector.extract_strided_slice %249 {offsets = [0, 0], sizes = [2, 32], strides = [1, 1]} : vector<2x128xf32> to vector<2x32xf32>
    %251 = vector.extract_strided_slice %249 {offsets = [0, 32], sizes = [2, 32], strides = [1, 1]} : vector<2x128xf32> to vector<2x32xf32>
    %252 = vector.extract_strided_slice %244 {offsets = [0, 64], sizes = [2, 32], strides = [1, 1]} : vector<2x128xf32> to vector<2x32xf32>
    %253 = vector.extract_strided_slice %244 {offsets = [0, 96], sizes = [2, 32], strides = [1, 1]} : vector<2x128xf32> to vector<2x32xf32>
    %254 = arith.mulf %250, %253 : vector<2x32xf32>
    %255 = arith.addf %252, %254 : vector<2x32xf32>
    %256 = math.tanh %255 : vector<2x32xf32>
    %cst_66 = arith.constant 1.000000e+00 : f32
    %257 = vector.broadcast %cst_66 : f32 to vector<2x32xf32>
    %258 = arith.subf %257, %251 : vector<2x32xf32>
    %259 = arith.mulf %258, %256 : vector<2x32xf32>
    %260 = arith.mulf %251, %212 : vector<2x32xf32>
    %261 = arith.addf %259, %260 : vector<2x32xf32>
    %262 = arith.mulf %261, %21 : vector<2x32xf32>
    %cst_67 = arith.constant dense<0.000000e+00> : vector<2xf32>
    %263 = vector.multi_reduction <add>, %262, %cst_67 [1] : vector<2x32xf32> to vector<2xf32>
    %264 = vector.shape_cast %263 : vector<2xf32> to vector<2x1xf32>
    %265 = arith.addf %264, %22 : vector<2x1xf32>
    %cst_68 = arith.constant 0.000000e+00 : f32
    %266 = vector.broadcast %cst_68 : f32 to vector<2x1xf32>
    %267 = arith.maximumf %265, %266 : vector<2x1xf32>
    %cst_69 = arith.constant dense<0.000000e+00> : vector<2x128xf32>
    %268 = tpu.matmul %240, %3, %cst_69 {dimension_numbers = #tpu.dot_dimension_numbers<[1], [0], [0], [1], [0, 0, 1, 1], [], []>} : vector<2x32xf32>, vector<32x128xf32>, vector<2x128xf32> -> vector<2x128xf32>
    %269 = vector.broadcast %267 : vector<2x1xf32> to vector<2x128xf32>
    %270 = arith.mulf %269, %16 : vector<2x128xf32>
    %271 = arith.addf %268, %270 : vector<2x128xf32>
    %272 = arith.addf %271, %13 : vector<2x128xf32>
    %273 = arith.negf %272 : vector<2x128xf32>
    %274 = math.exp %273 : vector<2x128xf32>
    %cst_70 = arith.constant 1.000000e+00 : f32
    %275 = vector.broadcast %cst_70 : f32 to vector<2x128xf32>
    %276 = arith.addf %275, %274 : vector<2x128xf32>
    %277 = arith.divf %275, %276 : vector<2x128xf32>
    %278 = vector.extract_strided_slice %277 {offsets = [0, 0], sizes = [2, 32], strides = [1, 1]} : vector<2x128xf32> to vector<2x32xf32>
    %279 = vector.extract_strided_slice %277 {offsets = [0, 32], sizes = [2, 32], strides = [1, 1]} : vector<2x128xf32> to vector<2x32xf32>
    %280 = vector.extract_strided_slice %272 {offsets = [0, 64], sizes = [2, 32], strides = [1, 1]} : vector<2x128xf32> to vector<2x32xf32>
    %281 = vector.extract_strided_slice %272 {offsets = [0, 96], sizes = [2, 32], strides = [1, 1]} : vector<2x128xf32> to vector<2x32xf32>
    %282 = arith.mulf %278, %281 : vector<2x32xf32>
    %283 = arith.addf %280, %282 : vector<2x32xf32>
    %284 = math.tanh %283 : vector<2x32xf32>
    %cst_71 = arith.constant 1.000000e+00 : f32
    %285 = vector.broadcast %cst_71 : f32 to vector<2x32xf32>
    %286 = arith.subf %285, %279 : vector<2x32xf32>
    %287 = arith.mulf %286, %284 : vector<2x32xf32>
    %288 = arith.mulf %279, %240 : vector<2x32xf32>
    %289 = arith.addf %287, %288 : vector<2x32xf32>
    %cst_72 = arith.constant dense<0.000000e+00> : vector<2x128xf32>
    %290 = tpu.matmul %289, %4, %cst_72 {dimension_numbers = #tpu.dot_dimension_numbers<[1], [0], [0], [1], [0, 0, 1, 1], [], []>} : vector<2x32xf32>, vector<32x128xf32>, vector<2x128xf32> -> vector<2x128xf32>
    %cst_73 = arith.constant dense<0.000000e+00> : vector<2x128xf32>
    %291 = tpu.matmul %261, %5, %cst_73 {dimension_numbers = #tpu.dot_dimension_numbers<[1], [0], [0], [1], [0, 0, 1, 1], [], []>} : vector<2x32xf32>, vector<32x128xf32>, vector<2x128xf32> -> vector<2x128xf32>
    %292 = arith.addf %290, %291 : vector<2x128xf32>
    %293 = arith.addf %292, %19 : vector<2x128xf32>
    %294 = arith.negf %293 : vector<2x128xf32>
    %295 = math.exp %294 : vector<2x128xf32>
    %cst_74 = arith.constant 1.000000e+00 : f32
    %296 = vector.broadcast %cst_74 : f32 to vector<2x128xf32>
    %297 = arith.addf %296, %295 : vector<2x128xf32>
    %298 = arith.divf %296, %297 : vector<2x128xf32>
    %299 = vector.extract_strided_slice %298 {offsets = [0, 0], sizes = [2, 32], strides = [1, 1]} : vector<2x128xf32> to vector<2x32xf32>
    %300 = vector.extract_strided_slice %298 {offsets = [0, 32], sizes = [2, 32], strides = [1, 1]} : vector<2x128xf32> to vector<2x32xf32>
    %301 = vector.extract_strided_slice %293 {offsets = [0, 64], sizes = [2, 32], strides = [1, 1]} : vector<2x128xf32> to vector<2x32xf32>
    %302 = vector.extract_strided_slice %293 {offsets = [0, 96], sizes = [2, 32], strides = [1, 1]} : vector<2x128xf32> to vector<2x32xf32>
    %303 = arith.mulf %299, %302 : vector<2x32xf32>
    %304 = arith.addf %301, %303 : vector<2x32xf32>
    %305 = math.tanh %304 : vector<2x32xf32>
    %cst_75 = arith.constant 1.000000e+00 : f32
    %306 = vector.broadcast %cst_75 : f32 to vector<2x32xf32>
    %307 = arith.subf %306, %300 : vector<2x32xf32>
    %308 = arith.mulf %307, %305 : vector<2x32xf32>
    %309 = arith.mulf %300, %261 : vector<2x32xf32>
    %310 = arith.addf %308, %309 : vector<2x32xf32>
    %311 = arith.mulf %310, %21 : vector<2x32xf32>
    %cst_76 = arith.constant dense<0.000000e+00> : vector<2xf32>
    %312 = vector.multi_reduction <add>, %311, %cst_76 [1] : vector<2x32xf32> to vector<2xf32>
    %313 = vector.shape_cast %312 : vector<2xf32> to vector<2x1xf32>
    %314 = arith.addf %313, %22 : vector<2x1xf32>
    %cst_77 = arith.constant 0.000000e+00 : f32
    %315 = vector.broadcast %cst_77 : f32 to vector<2x1xf32>
    %316 = arith.maximumf %314, %315 : vector<2x1xf32>
    %cst_78 = arith.constant dense<0.000000e+00> : vector<2x128xf32>
    %317 = tpu.matmul %289, %3, %cst_78 {dimension_numbers = #tpu.dot_dimension_numbers<[1], [0], [0], [1], [0, 0, 1, 1], [], []>} : vector<2x32xf32>, vector<32x128xf32>, vector<2x128xf32> -> vector<2x128xf32>
    %318 = vector.broadcast %316 : vector<2x1xf32> to vector<2x128xf32>
    %319 = arith.mulf %318, %16 : vector<2x128xf32>
    %320 = arith.addf %317, %319 : vector<2x128xf32>
    %321 = arith.addf %320, %13 : vector<2x128xf32>
    %322 = arith.negf %321 : vector<2x128xf32>
    %323 = math.exp %322 : vector<2x128xf32>
    %cst_79 = arith.constant 1.000000e+00 : f32
    %324 = vector.broadcast %cst_79 : f32 to vector<2x128xf32>
    %325 = arith.addf %324, %323 : vector<2x128xf32>
    %326 = arith.divf %324, %325 : vector<2x128xf32>
    %327 = vector.extract_strided_slice %326 {offsets = [0, 0], sizes = [2, 32], strides = [1, 1]} : vector<2x128xf32> to vector<2x32xf32>
    %328 = vector.extract_strided_slice %326 {offsets = [0, 32], sizes = [2, 32], strides = [1, 1]} : vector<2x128xf32> to vector<2x32xf32>
    %329 = vector.extract_strided_slice %321 {offsets = [0, 64], sizes = [2, 32], strides = [1, 1]} : vector<2x128xf32> to vector<2x32xf32>
    %330 = vector.extract_strided_slice %321 {offsets = [0, 96], sizes = [2, 32], strides = [1, 1]} : vector<2x128xf32> to vector<2x32xf32>
    %331 = arith.mulf %327, %330 : vector<2x32xf32>
    %332 = arith.addf %329, %331 : vector<2x32xf32>
    %333 = math.tanh %332 : vector<2x32xf32>
    %cst_80 = arith.constant 1.000000e+00 : f32
    %334 = vector.broadcast %cst_80 : f32 to vector<2x32xf32>
    %335 = arith.subf %334, %328 : vector<2x32xf32>
    %336 = arith.mulf %335, %333 : vector<2x32xf32>
    %337 = arith.mulf %328, %289 : vector<2x32xf32>
    %338 = arith.addf %336, %337 : vector<2x32xf32>
    %cst_81 = arith.constant dense<0.000000e+00> : vector<2x128xf32>
    %339 = tpu.matmul %338, %4, %cst_81 {dimension_numbers = #tpu.dot_dimension_numbers<[1], [0], [0], [1], [0, 0, 1, 1], [], []>} : vector<2x32xf32>, vector<32x128xf32>, vector<2x128xf32> -> vector<2x128xf32>
    %cst_82 = arith.constant dense<0.000000e+00> : vector<2x128xf32>
    %340 = tpu.matmul %310, %5, %cst_82 {dimension_numbers = #tpu.dot_dimension_numbers<[1], [0], [0], [1], [0, 0, 1, 1], [], []>} : vector<2x32xf32>, vector<32x128xf32>, vector<2x128xf32> -> vector<2x128xf32>
    %341 = arith.addf %339, %340 : vector<2x128xf32>
    %342 = arith.addf %341, %19 : vector<2x128xf32>
    %343 = arith.negf %342 : vector<2x128xf32>
    %344 = math.exp %343 : vector<2x128xf32>
    %cst_83 = arith.constant 1.000000e+00 : f32
    %345 = vector.broadcast %cst_83 : f32 to vector<2x128xf32>
    %346 = arith.addf %345, %344 : vector<2x128xf32>
    %347 = arith.divf %345, %346 : vector<2x128xf32>
    %348 = vector.extract_strided_slice %347 {offsets = [0, 0], sizes = [2, 32], strides = [1, 1]} : vector<2x128xf32> to vector<2x32xf32>
    %349 = vector.extract_strided_slice %347 {offsets = [0, 32], sizes = [2, 32], strides = [1, 1]} : vector<2x128xf32> to vector<2x32xf32>
    %350 = vector.extract_strided_slice %342 {offsets = [0, 64], sizes = [2, 32], strides = [1, 1]} : vector<2x128xf32> to vector<2x32xf32>
    %351 = vector.extract_strided_slice %342 {offsets = [0, 96], sizes = [2, 32], strides = [1, 1]} : vector<2x128xf32> to vector<2x32xf32>
    %352 = arith.mulf %348, %351 : vector<2x32xf32>
    %353 = arith.addf %350, %352 : vector<2x32xf32>
    %354 = math.tanh %353 : vector<2x32xf32>
    %cst_84 = arith.constant 1.000000e+00 : f32
    %355 = vector.broadcast %cst_84 : f32 to vector<2x32xf32>
    %356 = arith.subf %355, %349 : vector<2x32xf32>
    %357 = arith.mulf %356, %354 : vector<2x32xf32>
    %358 = arith.mulf %349, %310 : vector<2x32xf32>
    %359 = arith.addf %357, %358 : vector<2x32xf32>
    %360 = arith.mulf %359, %21 : vector<2x32xf32>
    %cst_85 = arith.constant dense<0.000000e+00> : vector<2xf32>
    %361 = vector.multi_reduction <add>, %360, %cst_85 [1] : vector<2x32xf32> to vector<2xf32>
    %362 = vector.shape_cast %361 : vector<2xf32> to vector<2x1xf32>
    %363 = arith.addf %362, %22 : vector<2x1xf32>
    %cst_86 = arith.constant 0.000000e+00 : f32
    %364 = vector.broadcast %cst_86 : f32 to vector<2x1xf32>
    %365 = arith.maximumf %363, %364 : vector<2x1xf32>
    %cst_87 = arith.constant dense<0.000000e+00> : vector<2x128xf32>
    %366 = tpu.matmul %338, %3, %cst_87 {dimension_numbers = #tpu.dot_dimension_numbers<[1], [0], [0], [1], [0, 0, 1, 1], [], []>} : vector<2x32xf32>, vector<32x128xf32>, vector<2x128xf32> -> vector<2x128xf32>
    %367 = vector.broadcast %365 : vector<2x1xf32> to vector<2x128xf32>
    %368 = arith.mulf %367, %16 : vector<2x128xf32>
    %369 = arith.addf %366, %368 : vector<2x128xf32>
    %370 = arith.addf %369, %13 : vector<2x128xf32>
    %371 = arith.negf %370 : vector<2x128xf32>
    %372 = math.exp %371 : vector<2x128xf32>
    %cst_88 = arith.constant 1.000000e+00 : f32
    %373 = vector.broadcast %cst_88 : f32 to vector<2x128xf32>
    %374 = arith.addf %373, %372 : vector<2x128xf32>
    %375 = arith.divf %373, %374 : vector<2x128xf32>
    %376 = vector.extract_strided_slice %375 {offsets = [0, 0], sizes = [2, 32], strides = [1, 1]} : vector<2x128xf32> to vector<2x32xf32>
    %377 = vector.extract_strided_slice %375 {offsets = [0, 32], sizes = [2, 32], strides = [1, 1]} : vector<2x128xf32> to vector<2x32xf32>
    %378 = vector.extract_strided_slice %370 {offsets = [0, 64], sizes = [2, 32], strides = [1, 1]} : vector<2x128xf32> to vector<2x32xf32>
    %379 = vector.extract_strided_slice %370 {offsets = [0, 96], sizes = [2, 32], strides = [1, 1]} : vector<2x128xf32> to vector<2x32xf32>
    %380 = arith.mulf %376, %379 : vector<2x32xf32>
    %381 = arith.addf %378, %380 : vector<2x32xf32>
    %382 = math.tanh %381 : vector<2x32xf32>
    %cst_89 = arith.constant 1.000000e+00 : f32
    %383 = vector.broadcast %cst_89 : f32 to vector<2x32xf32>
    %384 = arith.subf %383, %377 : vector<2x32xf32>
    %385 = arith.mulf %384, %382 : vector<2x32xf32>
    %386 = arith.mulf %377, %338 : vector<2x32xf32>
    %387 = arith.addf %385, %386 : vector<2x32xf32>
    %cst_90 = arith.constant dense<0.000000e+00> : vector<2x128xf32>
    %388 = tpu.matmul %387, %4, %cst_90 {dimension_numbers = #tpu.dot_dimension_numbers<[1], [0], [0], [1], [0, 0, 1, 1], [], []>} : vector<2x32xf32>, vector<32x128xf32>, vector<2x128xf32> -> vector<2x128xf32>
    %cst_91 = arith.constant dense<0.000000e+00> : vector<2x128xf32>
    %389 = tpu.matmul %359, %5, %cst_91 {dimension_numbers = #tpu.dot_dimension_numbers<[1], [0], [0], [1], [0, 0, 1, 1], [], []>} : vector<2x32xf32>, vector<32x128xf32>, vector<2x128xf32> -> vector<2x128xf32>
    %390 = arith.addf %388, %389 : vector<2x128xf32>
    %391 = arith.addf %390, %19 : vector<2x128xf32>
    %392 = arith.negf %391 : vector<2x128xf32>
    %393 = math.exp %392 : vector<2x128xf32>
    %cst_92 = arith.constant 1.000000e+00 : f32
    %394 = vector.broadcast %cst_92 : f32 to vector<2x128xf32>
    %395 = arith.addf %394, %393 : vector<2x128xf32>
    %396 = arith.divf %394, %395 : vector<2x128xf32>
    %397 = vector.extract_strided_slice %396 {offsets = [0, 0], sizes = [2, 32], strides = [1, 1]} : vector<2x128xf32> to vector<2x32xf32>
    %398 = vector.extract_strided_slice %396 {offsets = [0, 32], sizes = [2, 32], strides = [1, 1]} : vector<2x128xf32> to vector<2x32xf32>
    %399 = vector.extract_strided_slice %391 {offsets = [0, 64], sizes = [2, 32], strides = [1, 1]} : vector<2x128xf32> to vector<2x32xf32>
    %400 = vector.extract_strided_slice %391 {offsets = [0, 96], sizes = [2, 32], strides = [1, 1]} : vector<2x128xf32> to vector<2x32xf32>
    %401 = arith.mulf %397, %400 : vector<2x32xf32>
    %402 = arith.addf %399, %401 : vector<2x32xf32>
    %403 = math.tanh %402 : vector<2x32xf32>
    %cst_93 = arith.constant 1.000000e+00 : f32
    %404 = vector.broadcast %cst_93 : f32 to vector<2x32xf32>
    %405 = arith.subf %404, %398 : vector<2x32xf32>
    %406 = arith.mulf %405, %403 : vector<2x32xf32>
    %407 = arith.mulf %398, %359 : vector<2x32xf32>
    %408 = arith.addf %406, %407 : vector<2x32xf32>
    %409 = arith.mulf %408, %21 : vector<2x32xf32>
    %cst_94 = arith.constant dense<0.000000e+00> : vector<2xf32>
    %410 = vector.multi_reduction <add>, %409, %cst_94 [1] : vector<2x32xf32> to vector<2xf32>
    %411 = vector.shape_cast %410 : vector<2xf32> to vector<2x1xf32>
    %412 = arith.addf %411, %22 : vector<2x1xf32>
    %cst_95 = arith.constant 0.000000e+00 : f32
    %413 = vector.broadcast %cst_95 : f32 to vector<2x1xf32>
    %414 = arith.maximumf %412, %413 : vector<2x1xf32>
    %415 = tpu.concatenate %71, %120, %169, %218, %267, %316, %365, %414 in 1 : vector<2x1xf32>, vector<2x1xf32>, vector<2x1xf32>, vector<2x1xf32>, vector<2x1xf32>, vector<2x1xf32>, vector<2x1xf32>, vector<2x1xf32> -> vector<2x8xf32>
    %c0_96 = arith.constant 0 : index
    %c0_97 = arith.constant 0 : index
    %416 = vector.load %arg13[%c0_96, %c0_97] : memref<2x8xf32, #tpu.memory_space<vmem>>, vector<2x8xf32>
    tpu.vector_store %arg13[%c0_96, %c0_97], %415 {strides = array<i32>} : memref<2x8xf32, #tpu.memory_space<vmem>>, vector<2x8xf32>,
    return
  }
}

</mosaic_0001>

<llo_original>
// kernel: tpu_custom_call.1
$region0: #{tpu_custom_call.1}
  #allocation0 [shape = 'u32[]', space=smem, size = 0x4, offset = 0x4, fixed_abs, tag = 'smem constant byte address 0x4 - core index']
  #allocation1 [shape = 'u32[144,128]{1,0:T(1,128)}', space=vmem, size = 0x12000, scoped, tag = 'internal scratch']
  #allocation2 [shape = 'f32[1]{0:T(128)S(6)}', space=smem, size = 0x200, scoped, tag = 'scoped memory for tpu_custom_call.1']
  %s0 = inlined_call_operand.vmem [shape: f32[2,1], index: 0, kind: input, shape index: {}]
  %s1 = inlined_call_operand.vmem [shape: f32[2,8], index: 1, kind: input, shape index: {}]
  %s2 = inlined_call_operand.vmem [shape: f32[2,32], index: 2, kind: input, shape index: {}]
  %s3 = inlined_call_operand.hbm [shape: f32[2,32], index: 3, kind: input, shape index: {}]
  %s4 = inlined_call_operand.vmem [shape: f32[1,128], index: 4, kind: input, shape index: {}]
  %s5 = inlined_call_operand.hbm [shape: f32[8,128], index: 5, kind: input, shape index: {}]
  %s6 = inlined_call_operand.hbm [shape: f32[32,128], index: 6, kind: input, shape index: {}]
  %s7 = inlined_call_operand.hbm [shape: f32[1,128], index: 7, kind: input, shape index: {}]
  %s8 = inlined_call_operand.vmem [shape: f32[32,128], index: 8, kind: input, shape index: {}]
  %s9 = inlined_call_operand.hbm [shape: f32[32,128], index: 9, kind: input, shape index: {}]
  %s10 = inlined_call_operand.vmem [shape: f32[1,128], index: 10, kind: input, shape index: {}]
  %s11 = inlined_call_operand.vmem [shape: f32[1,32], index: 11, kind: input, shape index: {}]
  %s12 = inlined_call_operand.<no memory space> [shape: f32[1], index: 12, kind: input, shape index: {}]
  %s13 = inlined_call_operand.hbm [shape: f32[2,8], index: 13, kind: output, shape index: {}]
  %s14 = sld [smem:[#allocation0]]
  $region82: #{tpu_custom_call.1} parent=0
    _
  %s16 = ssub.s32 1, %s14
  %s17 = scalar_select 0, %s16, %s14
  %18 = sst [smem:[#allocation2]] %s12
  $region1: #{tpu_custom_call.1} parent=0
    #allocation3 [shape = 'u8[1024]{0}', space=vmem, size = 0x400, scoped, tag = 'input window, operand 3, single buffered']
    #allocation4 [shape = 's32[1]{0}', space=sflag, size = 0x4, scoped, tag = 'scoped memory for tpu_custom_call.1']
    #allocation5 [shape = 's32[1]{0}', space=sflag, size = 0x4, scoped, tag = 'scoped memory for tpu_custom_call.1']
    #allocation6 [shape = 'u8[4096]{0}', space=vmem, size = 0x1000, scoped, tag = 'input window, operand 5, single buffered']
    #allocation7 [shape = 's32[1]{0}', space=sflag, size = 0x4, scoped, tag = 'scoped memory for tpu_custom_call.1']
    #allocation8 [shape = 'u8[16384]{0}', space=vmem, size = 0x4000, scoped, tag = 'input window, operand 6, single buffered']
    #allocation9 [shape = 'u8[512]{0}', space=vmem, size = 0x400, scoped, tag = 'input window, operand 7, single buffered']
    #allocation10 [shape = 's32[1]{0}', space=sflag, size = 0x4, scoped, tag = 'scoped memory for tpu_custom_call.1']
    #allocation11 [shape = 'u8[16384]{0}', space=vmem, size = 0x4000, scoped, tag = 'input window, operand 9, single buffered']
    #allocation12 [shape = 'u8[1024]{0}', space=vmem, size = 0x400, scoped, tag = 'output window, operand 0, single buffered']
    %19 = vsyncpa [#allocation4], 0
    %20 = vsyncpa [#allocation7], 0
    %21 = vsyncpa [#allocation10], 0
    %22 = vsyncpa [#allocation5], 0
    // Predicated region
    $region2: #{tpu_custom_call.1} parent=1 // pred_check
      _
    $region3: #{tpu_custom_call.1} parent=1 // pred_check_branch
      %24 = sbr.rel (0) target = $region5
    $region4: #{tpu_custom_call.1} parent=1 // pred_region
      _
    $region5: #{tpu_custom_call.1} parent=1 // pred_fallthru
      _
    // Predicated region
    $region6: #{tpu_custom_call.1} parent=1 // pred_check
      _
    $region7: #{tpu_custom_call.1} parent=1 // pred_check_branch
      %26 = sbr.rel (0) target = $region9
    $region8: #{tpu_custom_call.1} parent=1 // pred_region
      _
    $region9: #{tpu_custom_call.1} parent=1 // pred_fallthru
      _
    // Predicated region
    $region10: #{tpu_custom_call.1} parent=1 // pred_check
      _
    $region11: #{tpu_custom_call.1} parent=1 // pred_check_branch
      %28 = sbr.rel (0) target = $region13
    $region12: #{tpu_custom_call.1} parent=1 // pred_region
      _
    $region13: #{tpu_custom_call.1} parent=1 // pred_fallthru
      _
    // Predicated region
    $region14: #{tpu_custom_call.1} parent=1 // pred_check
      _
    $region15: #{tpu_custom_call.1} parent=1 // pred_check_branch
      %30 = sbr.rel (0) target = $region17
    $region16: #{tpu_custom_call.1} parent=1 // pred_region
      %s32 = ssub.s32 32, 32
      %33 = vsyncadd [#allocation4], %s32
      %s35 = sshll.u32 [#allocation3], 4
      %s36 = int_to_ptr.vmem [resolvable:$true] %s35
      %38 = dma.hbm_to_vmem [thread:$0]  %s3, 32, %s36, [#allocation4]
    $region17: #{tpu_custom_call.1} parent=1 // pred_fallthru
      _
    // Predicated region
    $region18: #{tpu_custom_call.1} parent=1 // pred_check
      _
    $region19: #{tpu_custom_call.1} parent=1 // pred_check_branch
      %40 = sbr.rel (0) target = $region21
    $region20: #{tpu_custom_call.1} parent=1 // pred_region
      _
    $region21: #{tpu_custom_call.1} parent=1 // pred_fallthru
      _
    // Predicated region
    $region22: #{tpu_custom_call.1} parent=1 // pred_check
      _
    $region23: #{tpu_custom_call.1} parent=1 // pred_check_branch
      %42 = sbr.rel (0) target = $region25
    $region24: #{tpu_custom_call.1} parent=1 // pred_region
      %s44 = ssub.s32 128, 128
      %45 = vsyncadd [#allocation7], %s44
      %s47 = sshll.u32 [#allocation6], 4
      %s48 = int_to_ptr.vmem [resolvable:$true] %s47
      %50 = dma.hbm_to_vmem [thread:$0]  %s5, 128, %s48, [#allocation7]
    $region25: #{tpu_custom_call.1} parent=1 // pred_fallthru
      _
    // Predicated region
    $region26: #{tpu_custom_call.1} parent=1 // pred_check
      _
    $region27: #{tpu_custom_call.1} parent=1 // pred_check_branch
      %52 = sbr.rel (0) target = $region29
    $region28: #{tpu_custom_call.1} parent=1 // pred_region
      %s54 = ssub.s32 512, 512
      %55 = vsyncadd [#allocation7], %s54
      %s56 = sshll.u32 [#allocation8], 4
      %s57 = int_to_ptr.vmem [resolvable:$true] %s56
      %62 = dma.hbm_to_vmem [thread:$0]  %s6, 512, %s57, [#allocation7], 128, 128, 8
    $region29: #{tpu_custom_call.1} parent=1 // pred_fallthru
      _
    // Predicated region
    $region30: #{tpu_custom_call.1} parent=1 // pred_check
      _
    $region31: #{tpu_custom_call.1} parent=1 // pred_check_branch
      %64 = sbr.rel (0) target = $region33
    $region32: #{tpu_custom_call.1} parent=1 // pred_region
      %s66 = ssub.s32 16, 16
      %67 = vsyncadd [#allocation10], %s66
      %s69 = sshll.u32 [#allocation9], 4
      %s70 = int_to_ptr.vmem [resolvable:$true] %s69
      %72 = dma.hbm_to_vmem [thread:$0]  %s7, 16, %s70, [#allocation10]
    $region33: #{tpu_custom_call.1} parent=1 // pred_fallthru
      _
    // Predicated region
    $region34: #{tpu_custom_call.1} parent=1 // pred_check
      _
    $region35: #{tpu_custom_call.1} parent=1 // pred_check_branch
      %74 = sbr.rel (0) target = $region37
    $region36: #{tpu_custom_call.1} parent=1 // pred_region
      _
    $region37: #{tpu_custom_call.1} parent=1 // pred_fallthru
      _
    // Predicated region
    $region38: #{tpu_custom_call.1} parent=1 // pred_check
      _
    $region39: #{tpu_custom_call.1} parent=1 // pred_check_branch
      %76 = sbr.rel (0) target = $region41
    $region40: #{tpu_custom_call.1} parent=1 // pred_region
      %s78 = ssub.s32 512, 512
      %79 = vsyncadd [#allocation10], %s78
      %s80 = sshll.u32 [#allocation11], 4
      %s81 = int_to_ptr.vmem [resolvable:$true] %s80
      %86 = dma.hbm_to_vmem [thread:$0]  %s9, 512, %s81, [#allocation10], 128, 128, 8
    $region41: #{tpu_custom_call.1} parent=1 // pred_fallthru
      _
    // Predicated region
    $region42: #{tpu_custom_call.1} parent=1 // pred_check
      _
    $region43: #{tpu_custom_call.1} parent=1 // pred_check_branch
      %88 = sbr.rel (0) target = $region45
    $region44: #{tpu_custom_call.1} parent=1 // pred_region
      _
    $region45: #{tpu_custom_call.1} parent=1 // pred_fallthru
      _
    // Predicated region
    $region46: #{tpu_custom_call.1} parent=1 // pred_check
      _
    $region47: #{tpu_custom_call.1} parent=1 // pred_check_branch
      %90 = sbr.rel (0) target = $region49
    $region48: #{tpu_custom_call.1} parent=1 // pred_region
      _
    $region49: #{tpu_custom_call.1} parent=1 // pred_fallthru
      _
    // Predicated region
    $region50: #{tpu_custom_call.1} parent=1 // pred_check
      _
    $region51: #{tpu_custom_call.1} parent=1 // pred_check_branch
      %92 = sbr.rel (0) target = $region53
    $region52: #{tpu_custom_call.1} parent=1 // pred_region
      _
    $region53: #{tpu_custom_call.1} parent=1 // pred_fallthru
      _
    // Predicated region
    $region54: #{tpu_custom_call.1} parent=1 // pred_check
      _
    $region55: #{tpu_custom_call.1} parent=1 // pred_check_branch
      %94 = sbr.rel (0) target = $region57
    $region56: #{tpu_custom_call.1} parent=1 // pred_region
      %95 = dma.done [#allocation4], 32
    $region57: #{tpu_custom_call.1} parent=1 // pred_fallthru
      _
    // Predicated region
    $region58: #{tpu_custom_call.1} parent=1 // pred_check
      _
    $region59: #{tpu_custom_call.1} parent=1 // pred_check_branch
      %97 = sbr.rel (0) target = $region61
    $region60: #{tpu_custom_call.1} parent=1 // pred_region
      %98 = dma.done [#allocation7], 128
    $region61: #{tpu_custom_call.1} parent=1 // pred_fallthru
      _
    // Predicated region
    $region62: #{tpu_custom_call.1} parent=1 // pred_check
      _
    $region63: #{tpu_custom_call.1} parent=1 // pred_check_branch
      %100 = sbr.rel (0) target = $region65
    $region64: #{tpu_custom_call.1} parent=1 // pred_region
      %101 = dma.done [#allocation7], 512
    $region65: #{tpu_custom_call.1} parent=1 // pred_fallthru
      _
    // Predicated region
    $region66: #{tpu_custom_call.1} parent=1 // pred_check
      _
    $region67: #{tpu_custom_call.1} parent=1 // pred_check_branch
      %103 = sbr.rel (0) target = $region69
    $region68: #{tpu_custom_call.1} parent=1 // pred_region
      %104 = dma.done [#allocation10], 16
    $region69: #{tpu_custom_call.1} parent=1 // pred_fallthru
      _
    // Predicated region
    $region70: #{tpu_custom_call.1} parent=1 // pred_check
      _
    $region71: #{tpu_custom_call.1} parent=1 // pred_check_branch
      %106 = sbr.rel (0) target = $region73
    $region72: #{tpu_custom_call.1} parent=1 // pred_region
      %107 = dma.done [#allocation10], 512
    $region73: #{tpu_custom_call.1} parent=1 // pred_fallthru
      _
    %v108 = vld [vmem:[%s0] sm:$0x3]
    %v109 = vld [vmem:[%s2] sm:$0x3]
    %v110 = vld [vmem:[#allocation3] sm:$0x3]
    %v111 = vld [vmem:[#allocation8] sm:$0xff]
    %v112 = vld [vmem:[#allocation8 + $0x8] sm:$0xff]
    %v113 = vld [vmem:[#allocation8 + $0x10] sm:$0xff]
    %v114 = vld [vmem:[#allocation8 + $0x18] sm:$0xff]
    %v115 = vld [vmem:[%s8] sm:$0xff]
    %v116 = vld [vmem:[%s8 + $0x8] sm:$0xff]
    %v117 = vld [vmem:[%s8 + $0x10] sm:$0xff]
    %v118 = vld [vmem:[%s8 + $0x18] sm:$0xff]
    %v119 = vld [vmem:[#allocation11] sm:$0xff]
    %v120 = vld [vmem:[#allocation11 + $0x8] sm:$0xff]
    %v121 = vld [vmem:[#allocation11 + $0x10] sm:$0xff]
    %v122 = vld [vmem:[#allocation11 + $0x18] sm:$0xff]
    %v123 = vld [vmem:[%s11] sm:$0x1]
    %s124 = sld [smem:[#allocation2]]
    %v125 = vld [vmem:[%s1] sm:$0x3]
    %v126 = vld [vmem:[#allocation6] sm:$0xff]
    %v127 = vld [vmem:[#allocation9] sm:$0x1]
    %v129 = vlaneseq
    %v130 = vshrl.u32 %v129, 7
    %v131 = vsub.s32 0, %v130
    %v132 = vrot.slane %v127, %v131
    %vm134 = vcmask 64512
    %v136 = vsel %vm134, %v125, 0
    %138 = vmatprep.subr.mxu0 0.0
    %139 = vmatpush1.msra.mxu0 %v126
    %140 = vmatprep.subr.mxu0 0.0
    %141 = vmatpush1.msra.mxu0 0.0
    %142 = vmatprep.subr.mxu0 0.0
    %143 = vmatpush1.msra.mxu0 0.0
    %144 = vmatprep.subr.mxu0 0.0
    %145 = vmatpush1.msra.mxu0 0.0
    %146 = vmatprep.subr.mxu0 0.0
    %147 = vmatpush1.msra.mxu0 0.0
    %148 = vmatprep.subr.mxu0 0.0
    %149 = vmatpush1.msra.mxu0 0.0
    %150 = vmatprep.subr.mxu0 0.0
    %151 = vmatpush1.msra.mxu0 0.0
    %152 = vmatprep.subr.mxu0 0.0
    %153 = vmatpush1.msra.mxu0 0.0
    %154 = vmatprep.subr.mxu0 0.0
    %155 = vmatpush1.msra.mxu0 0.0
    %156 = vmatprep.subr.mxu0 0.0
    %157 = vmatpush1.msra.mxu0 0.0
    %158 = vmatprep.subr.mxu0 0.0
    %159 = vmatpush1.msra.mxu0 0.0
    %160 = vmatprep.subr.mxu0 0.0
    %161 = vmatpush1.msra.mxu0 0.0
    %162 = vmatprep.subr.mxu0 0.0
    %163 = vmatpush1.msra.mxu0 0.0
    %164 = vmatprep.subr.mxu0 0.0
    %165 = vmatpush1.msra.mxu0 0.0
    %166 = vmatprep.subr.mxu0 0.0
    %167 = vmatpush1.msra.mxu0 0.0
    %168 = vmatprep.subr.mxu0 0.0
    %169 = vmatpush1.msra.mxu0 0.0
    %170 = vmatprep.subr.mxu0 0.0
    %171 = vmatpush1.msra.mxu0 0.0
    %172 = vmatprep.subr.mxu0 0.0
    %173 = vmatpush1.msra.mxu0 0.0
    %174 = vmatprep.subr.mxu0 0.0
    %175 = vmatpush1.msra.mxu0 0.0
    %176 = vmatprep.subr.mxu0 0.0
    %177 = vmatpush1.msra.mxu0 0.0
    %178 = vmatprep.subr.mxu0 0.0
    %179 = vmatpush1.msra.mxu0 0.0
    %180 = vmatprep.subr.mxu0 0.0
    %181 = vmatpush1.msra.mxu0 0.0
    %182 = vmatprep.subr.mxu0 0.0
    %183 = vmatpush1.msra.mxu0 0.0
    %184 = vmatprep.subr.mxu0 0.0
    %185 = vmatpush1.msra.mxu0 0.0
    %186 = vmatprep.subr.mxu0 0.0
    %187 = vmatpush1.msra.mxu0 0.0
    %188 = vmatprep.subr.mxu0 0.0
    %189 = vmatpush1.msra.mxu0 0.0
    %190 = vmatprep.subr.mxu0 0.0
    %191 = vmatpush1.msra.mxu0 0.0
    %192 = vmatprep.subr.mxu0 0.0
    %193 = vmatpush1.msra.mxu0 0.0
    %194 = vmatprep.subr.mxu0 0.0
    %195 = vmatpush1.msra.mxu0 0.0
    %196 = vmatprep.subr.mxu0 0.0
    %197 = vmatpush1.msra.mxu0 0.0
    %198 = vmatprep.subr.mxu0 0.0
    %199 = vmatpush1.msra.mxu0 0.0
    %200 = vmatprep.subr.mxu0 0.0
    %201 = vmatpush1.msra.mxu0 0.0
    %202 = vmatprep.mubr.f32.mxu0 0.0
    %203 = vmatmul.mubr.f32.gmra.mrb[0].mxu0 %v136
    %v204 = vpop.f32.mrb[0].mxu0
    %v205 = vadd.f32 %v132, %v204
    %v206 = vpop.f32.mrb[0].mxu0
    %207 = vdwg.mxu0
    %v208 = vld [vmem:[%s4] sm:$0x1]
    %v210 = vlaneseq
    %v211 = vshrl.u32 %v210, 7
    %v212 = vsub.s32 0, %v211
    %v213 = vrot.slane %v208, %v212
    %v215 = vld [vmem:[%s10] sm:$0x1]
    %v217 = vlaneseq
    %v218 = vshrl.u32 %v217, 7
    %v219 = vsub.s32 0, %v218
    %v220 = vrot.slane %v215, %v219
    %v223 = vlaneseq
    %v224 = vshrl.u32 %v223, 7
    %v225 = vsub.s32 0, %v224
    %v226 = vrot.slane %v123, %v225
    %v227 = vstv %s124
    %229 = vset.pattern.permute.xlu0 0
    %230 = vperm.xlu0 %229, %v108
    %v231 = vpop.permute.xlu0 %230
    %v233 = vmul.f32 %v231, %v213
    %vm234 = vcmask 261120
    %v236 = vsel %vm234, %v109, 0
    %238 = vmatprep.subr.mxu0 0.0
    %239 = vmatpush1.msra.mxu0 %v111
    %240 = vmatprep.subr.mxu0 0.0
    %241 = vmatpush1.msra.mxu0 %v112
    %242 = vmatprep.subr.mxu0 0.0
    %243 = vmatpush1.msra.mxu0 %v113
    %244 = vmatprep.subr.mxu0 0.0
    %245 = vmatpush1.msra.mxu0 %v114
    %246 = vmatprep.subr.mxu0 0.0
    %247 = vmatpush1.msra.mxu0 0.0
    %248 = vmatprep.subr.mxu0 0.0
    %249 = vmatpush1.msra.mxu0 0.0
    %250 = vmatprep.subr.mxu0 0.0
    %251 = vmatpush1.msra.mxu0 0.0
    %252 = vmatprep.subr.mxu0 0.0
    %253 = vmatpush1.msra.mxu0 0.0
    %254 = vmatprep.subr.mxu0 0.0
    %255 = vmatpush1.msra.mxu0 0.0
    %256 = vmatprep.subr.mxu0 0.0
    %257 = vmatpush1.msra.mxu0 0.0
    %258 = vmatprep.subr.mxu0 0.0
    %259 = vmatpush1.msra.mxu0 0.0
    %260 = vmatprep.subr.mxu0 0.0
    %261 = vmatpush1.msra.mxu0 0.0
    %262 = vmatprep.subr.mxu0 0.0
    %263 = vmatpush1.msra.mxu0 0.0
    %264 = vmatprep.subr.mxu0 0.0
    %265 = vmatpush1.msra.mxu0 0.0
    %266 = vmatprep.subr.mxu0 0.0
    %267 = vmatpush1.msra.mxu0 0.0
    %268 = vmatprep.subr.mxu0 0.0
    %269 = vmatpush1.msra.mxu0 0.0
    %270 = vmatprep.subr.mxu0 0.0
    %271 = vmatpush1.msra.mxu0 0.0
    %272 = vmatprep.subr.mxu0 0.0
    %273 = vmatpush1.msra.mxu0 0.0
    %274 = vmatprep.subr.mxu0 0.0
    %275 = vmatpush1.msra.mxu0 0.0
    %276 = vmatprep.subr.mxu0 0.0
    %277 = vmatpush1.msra.mxu0 0.0
    %278 = vmatprep.subr.mxu0 0.0
    %279 = vmatpush1.msra.mxu0 0.0
    %280 = vmatprep.subr.mxu0 0.0
    %281 = vmatpush1.msra.mxu0 0.0
    %282 = vmatprep.subr.mxu0 0.0
    %283 = vmatpush1.msra.mxu0 0.0
    %284 = vmatprep.subr.mxu0 0.0
    %285 = vmatpush1.msra.mxu0 0.0
    %286 = vmatprep.subr.mxu0 0.0
    %287 = vmatpush1.msra.mxu0 0.0
    %288 = vmatprep.subr.mxu0 0.0
    %289 = vmatpush1.msra.mxu0 0.0
    %290 = vmatprep.subr.mxu0 0.0
    %291 = vmatpush1.msra.mxu0 0.0
    %292 = vmatprep.subr.mxu0 0.0
    %293 = vmatpush1.msra.mxu0 0.0
    %294 = vmatprep.subr.mxu0 0.0
    %295 = vmatpush1.msra.mxu0 0.0
    %296 = vmatprep.subr.mxu0 0.0
    %297 = vmatpush1.msra.mxu0 0.0
    %298 = vmatprep.subr.mxu0 0.0
    %299 = vmatpush1.msra.mxu0 0.0
    %300 = vmatprep.subr.mxu0 0.0
    %301 = vmatpush1.msra.mxu0 0.0
    %302 = vmatprep.mubr.f32.mxu0 0.0
    %303 = vmatmul.mubr.f32.gmra.mrb[0].mxu0 %v236
    %v304 = vpop.f32.mrb[0].mxu0
    %v305 = vadd.f32 %v233, %v304
    %v306 = vpop.f32.mrb[0].mxu0
    %307 = vdwg.mxu0
    %v308 = vadd.f32 %v305, %v205
    %v309 = vxor.u32 %v308, 2147483648
    %v310 = vmul.f32 %v309, 1.442695
    %v311 = vpow.pop %v310
    %v312 = vadd.f32 %v311, 1.0
    %v313 = vrcp.pop %v312
    %v314 = vmul.f32 1.0, %v313
    %316 = vrot.lane.b32.xlu0 %v308, 32
    %v317 = vpop.permute.xlu0 %316
    %v319 = vmul.f32 %v314, %v317
    %321 = vrot.lane.b32.xlu0 %v319, 64
    %v322 = vpop.permute.xlu0 %321
    %v324 = vadd.f32 %v308, %v322
    %v325 = vtanh.pop %v324
    %v326 = vsub.f32 1.0, %v314
    %328 = vrot.lane.b32.xlu0 %v325, 96
    %v329 = vpop.permute.xlu0 %328
    %v331 = vmul.f32 %v326, %v329
    %332 = vrot.lane.b32.xlu0 %v109, 32
    %v333 = vpop.permute.xlu0 %332
    %v335 = vmul.f32 %v314, %v333
    %v336 = vadd.f32 %v331, %v335
    %v338 = vsel %vm234, %v110, 0
    %340 = vmatprep.subr.mxu0 0.0
    %341 = vmatpush1.msra.mxu0 %v119
    %342 = vmatprep.subr.mxu0 0.0
    %343 = vmatpush1.msra.mxu0 %v120
    %344 = vmatprep.subr.mxu0 0.0
    %345 = vmatpush1.msra.mxu0 %v121
    %346 = vmatprep.subr.mxu0 0.0
    %347 = vmatpush1.msra.mxu0 %v122
    %348 = vmatprep.subr.mxu0 0.0
    %349 = vmatpush1.msra.mxu0 0.0
    %350 = vmatprep.subr.mxu0 0.0
    %351 = vmatpush1.msra.mxu0 0.0
    %352 = vmatprep.subr.mxu0 0.0
    %353 = vmatpush1.msra.mxu0 0.0
    %354 = vmatprep.subr.mxu0 0.0
    %355 = vmatpush1.msra.mxu0 0.0
    %356 = vmatprep.subr.mxu0 0.0
    %357 = vmatpush1.msra.mxu0 0.0
    %358 = vmatprep.subr.mxu0 0.0
    %359 = vmatpush1.msra.mxu0 0.0
    %360 = vmatprep.subr.mxu0 0.0
    %361 = vmatpush1.msra.mxu0 0.0
    %362 = vmatprep.subr.mxu0 0.0
    %363 = vmatpush1.msra.mxu0 0.0
    %364 = vmatprep.subr.mxu0 0.0
    %365 = vmatpush1.msra.mxu0 0.0
    %366 = vmatprep.subr.mxu0 0.0
    %367 = vmatpush1.msra.mxu0 0.0
    %368 = vmatprep.subr.mxu0 0.0
    %369 = vmatpush1.msra.mxu0 0.0
    %370 = vmatprep.subr.mxu0 0.0
    %371 = vmatpush1.msra.mxu0 0.0
    %372 = vmatprep.subr.mxu0 0.0
    %373 = vmatpush1.msra.mxu0 0.0
    %374 = vmatprep.subr.mxu0 0.0
    %375 = vmatpush1.msra.mxu0 0.0
    %376 = vmatprep.subr.mxu0 0.0
    %377 = vmatpush1.msra.mxu0 0.0
    %378 = vmatprep.subr.mxu0 0.0
    %379 = vmatpush1.msra.mxu0 0.0
    %380 = vmatprep.subr.mxu0 0.0
    %381 = vmatpush1.msra.mxu0 0.0
    %382 = vmatprep.subr.mxu0 0.0
    %383 = vmatpush1.msra.mxu0 0.0
    %384 = vmatprep.subr.mxu0 0.0
    %385 = vmatpush1.msra.mxu0 0.0
    %386 = vmatprep.subr.mxu0 0.0
    %387 = vmatpush1.msra.mxu0 0.0
    %388 = vmatprep.subr.mxu0 0.0
    %389 = vmatpush1.msra.mxu0 0.0
    %390 = vmatprep.subr.mxu0 0.0
    %391 = vmatpush1.msra.mxu0 0.0
    %392 = vmatprep.subr.mxu0 0.0
    %393 = vmatpush1.msra.mxu0 0.0
    %394 = vmatprep.subr.mxu0 0.0
    %395 = vmatpush1.msra.mxu0 0.0
    %396 = vmatprep.subr.mxu0 0.0
    %397 = vmatpush1.msra.mxu0 0.0
    %398 = vmatprep.subr.mxu0 0.0
    %399 = vmatpush1.msra.mxu0 0.0
    %400 = vmatprep.subr.mxu0 0.0
    %401 = vmatpush1.msra.mxu0 0.0
    %402 = vmatprep.subr.mxu0 0.0
    %403 = vmatpush1.msra.mxu0 0.0
    %404 = vmatprep.mubr.f32.mxu0 0.0
    %405 = vmatmul.mubr.f32.gmra.mrb[0].mxu0 %v338
    %v406 = vpop.f32.mrb[0].mxu0
    %v407 = vadd.f32 0.0, %v406
    %v408 = vpop.f32.mrb[0].mxu0
    %409 = vdwg.mxu0
    %411 = vrot.lane.b32.xlu0 %v336, 96
    %v412 = vpop.permute.xlu0 %411
    %v413 = vsel %vm234, %v412, 0
    %415 = vmatprep.subr.mxu0 0.0
    %416 = vmatpush1.msra.mxu0 %v115
    %417 = vmatprep.subr.mxu0 0.0
    %418 = vmatpush1.msra.mxu0 %v116
    %419 = vmatprep.subr.mxu0 0.0
    %420 = vmatpush1.msra.mxu0 %v117
    %421 = vmatprep.subr.mxu0 0.0
    %422 = vmatpush1.msra.mxu0 %v118
    %423 = vmatprep.subr.mxu0 0.0
    %424 = vmatpush1.msra.mxu0 0.0
    %425 = vmatprep.subr.mxu0 0.0
    %426 = vmatpush1.msra.mxu0 0.0
    %427 = vmatprep.subr.mxu0 0.0
    %428 = vmatpush1.msra.mxu0 0.0
    %429 = vmatprep.subr.mxu0 0.0
    %430 = vmatpush1.msra.mxu0 0.0
    %431 = vmatprep.subr.mxu0 0.0
    %432 = vmatpush1.msra.mxu0 0.0
    %433 = vmatprep.subr.mxu0 0.0
    %434 = vmatpush1.msra.mxu0 0.0
    %435 = vmatprep.subr.mxu0 0.0
    %436 = vmatpush1.msra.mxu0 0.0
    %437 = vmatprep.subr.mxu0 0.0
    %438 = vmatpush1.msra.mxu0 0.0
    %439 = vmatprep.subr.mxu0 0.0
    %440 = vmatpush1.msra.mxu0 0.0
    %441 = vmatprep.subr.mxu0 0.0
    %442 = vmatpush1.msra.mxu0 0.0
    %443 = vmatprep.subr.mxu0 0.0
    %444 = vmatpush1.msra.mxu0 0.0
    %445 = vmatprep.subr.mxu0 0.0
    %446 = vmatpush1.msra.mxu0 0.0
    %447 = vmatprep.subr.mxu0 0.0
    %448 = vmatpush1.msra.mxu0 0.0
    %449 = vmatprep.subr.mxu0 0.0
    %450 = vmatpush1.msra.mxu0 0.0
    %451 = vmatprep.subr.mxu0 0.0
    %452 = vmatpush1.msra.mxu0 0.0
    %453 = vmatprep.subr.mxu0 0.0
    %454 = vmatpush1.msra.mxu0 0.0
    %455 = vmatprep.subr.mxu0 0.0
    %456 = vmatpush1.msra.mxu0 0.0
    %457 = vmatprep.subr.mxu0 0.0
    %458 = vmatpush1.msra.mxu0 0.0
    %459 = vmatprep.subr.mxu0 0.0
    %460 = vmatpush1.msra.mxu0 0.0
    %461 = vmatprep.subr.mxu0 0.0
    %462 = vmatpush1.msra.mxu0 0.0
    %463 = vmatprep.subr.mxu0 0.0
    %464 = vmatpush1.msra.mxu0 0.0
    %465 = vmatprep.subr.mxu0 0.0
    %466 = vmatpush1.msra.mxu0 0.0
    %467 = vmatprep.subr.mxu0 0.0
    %468 = vmatpush1.msra.mxu0 0.0
    %469 = vmatprep.subr.mxu0 0.0
    %470 = vmatpush1.msra.mxu0 0.0
    %471 = vmatprep.subr.mxu0 0.0
    %472 = vmatpush1.msra.mxu0 0.0
    %473 = vmatprep.subr.mxu0 0.0
    %474 = vmatpush1.msra.mxu0 0.0
    %475 = vmatprep.subr.mxu0 0.0
    %476 = vmatpush1.msra.mxu0 0.0
    %477 = vmatprep.subr.mxu0 0.0
    %478 = vmatpush1.msra.mxu0 0.0
    %479 = vmatprep.mubr.f32.mxu0 0.0
    %480 = vmatmul.mubr.f32.gmra.mrb[0].mxu0 %v413
    %v481 = vpop.f32.mrb[0].mxu0
    %v482 = vadd.f32 %v407, %v481
    %v483 = vpop.f32.mrb[0].mxu0
    %484 = vdwg.mxu0
    %v485 = vadd.f32 %v482, %v220
    %v486 = vxor.u32 %v485, 2147483648
    %v487 = vmul.f32 %v486, 1.442695
    %v488 = vpow.pop %v487
    %v489 = vadd.f32 %v488, 1.0
    %v490 = vrcp.pop %v489
    %v491 = vmul.f32 1.0, %v490
    %493 = vrot.lane.b32.xlu0 %v485, 32
    %v494 = vpop.permute.xlu0 %493
    %v496 = vmul.f32 %v491, %v494
    %498 = vrot.lane.b32.xlu0 %v496, 64
    %v499 = vpop.permute.xlu0 %498
    %v501 = vadd.f32 %v485, %v499
    %v502 = vtanh.pop %v501
    %v503 = vsub.f32 1.0, %v491
    %505 = vrot.lane.b32.xlu0 %v502, 96
    %v506 = vpop.permute.xlu0 %505
    %v508 = vmul.f32 %v503, %v506
    %509 = vrot.lane.b32.xlu0 %v110, 32
    %v510 = vpop.permute.xlu0 %509
    %v512 = vmul.f32 %v491, %v510
    %v513 = vadd.f32 %v508, %v512
    %514 = vrot.lane.b32.xlu0 %v226, 32
    %v515 = vpop.permute.xlu0 %514
    %v517 = vmul.f32 %v513, %v515
    %519 = vrot.lane.b32.xlu0 %v517, 96
    %v520 = vpop.permute.xlu0 %519
    %vm522 = vcmask 254976
    %v523 = vsel %vm522, %v520, 0.0
    %524 = vadd.xlane.f32.xlu0 %v523
    %v525 = vpop.xlane.xlu0 %524
    %v526 = vadd.f32 %v525, %v227
    %v527 = vmax.f32 %v526, 0.0
    %v528 = vmul.f32 %v527, %v213
    %529 = vmatprep.subr.mxu0 0.0
    %530 = vmatpush1.msra.mxu0 %v111
    %531 = vmatprep.subr.mxu0 0.0
    %532 = vmatpush1.msra.mxu0 %v112
    %533 = vmatprep.subr.mxu0 0.0
    %534 = vmatpush1.msra.mxu0 %v113
    %535 = vmatprep.subr.mxu0 0.0
    %536 = vmatpush1.msra.mxu0 %v114
    %537 = vmatprep.subr.mxu0 0.0
    %538 = vmatpush1.msra.mxu0 0.0
    %539 = vmatprep.subr.mxu0 0.0
    %540 = vmatpush1.msra.mxu0 0.0
    %541 = vmatprep.subr.mxu0 0.0
    %542 = vmatpush1.msra.mxu0 0.0
    %543 = vmatprep.subr.mxu0 0.0
    %544 = vmatpush1.msra.mxu0 0.0
    %545 = vmatprep.subr.mxu0 0.0
    %546 = vmatpush1.msra.mxu0 0.0
    %547 = vmatprep.subr.mxu0 0.0
    %548 = vmatpush1.msra.mxu0 0.0
    %549 = vmatprep.subr.mxu0 0.0
    %550 = vmatpush1.msra.mxu0 0.0
    %551 = vmatprep.subr.mxu0 0.0
    %552 = vmatpush1.msra.mxu0 0.0
    %553 = vmatprep.subr.mxu0 0.0
    %554 = vmatpush1.msra.mxu0 0.0
    %555 = vmatprep.subr.mxu0 0.0
    %556 = vmatpush1.msra.mxu0 0.0
    %557 = vmatprep.subr.mxu0 0.0
    %558 = vmatpush1.msra.mxu0 0.0
    %559 = vmatprep.subr.mxu0 0.0
    %560 = vmatpush1.msra.mxu0 0.0
    %561 = vmatprep.subr.mxu0 0.0
    %562 = vmatpush1.msra.mxu0 0.0
    %563 = vmatprep.subr.mxu0 0.0
    %564 = vmatpush1.msra.mxu0 0.0
    %565 = vmatprep.subr.mxu0 0.0
    %566 = vmatpush1.msra.mxu0 0.0
    %567 = vmatprep.subr.mxu0 0.0
    %568 = vmatpush1.msra.mxu0 0.0
    %569 = vmatprep.subr.mxu0 0.0
    %570 = vmatpush1.msra.mxu0 0.0
    %571 = vmatprep.subr.mxu0 0.0
    %572 = vmatpush1.msra.mxu0 0.0
    %573 = vmatprep.subr.mxu0 0.0
    %574 = vmatpush1.msra.mxu0 0.0
    %575 = vmatprep.subr.mxu0 0.0
    %576 = vmatpush1.msra.mxu0 0.0
    %577 = vmatprep.subr.mxu0 0.0
    %578 = vmatpush1.msra.mxu0 0.0
    %579 = vmatprep.subr.mxu0 0.0
    %580 = vmatpush1.msra.mxu0 0.0
    %581 = vmatprep.subr.mxu0 0.0
    %582 = vmatpush1.msra.mxu0 0.0
    %583 = vmatprep.subr.mxu0 0.0
    %584 = vmatpush1.msra.mxu0 0.0
    %585 = vmatprep.subr.mxu0 0.0
    %586 = vmatpush1.msra.mxu0 0.0
    %587 = vmatprep.subr.mxu0 0.0
    %588 = vmatpush1.msra.mxu0 0.0
    %589 = vmatprep.subr.mxu0 0.0
    %590 = vmatpush1.msra.mxu0 0.0
    %591 = vmatprep.subr.mxu0 0.0
    %592 = vmatpush1.msra.mxu0 0.0
    %593 = vmatprep.mubr.f32.mxu0 0.0
    %594 = vmatmul.mubr.f32.gmra.mrb[0].mxu0 %v413
    %v595 = vpop.f32.mrb[0].mxu0
    %v596 = vadd.f32 %v528, %v595
    %v597 = vpop.f32.mrb[0].mxu0
    %598 = vdwg.mxu0
    %v599 = vadd.f32 %v596, %v205
    %v600 = vxor.u32 %v599, 2147483648
    %v601 = vmul.f32 %v600, 1.442695
    %v602 = vpow.pop %v601
    %v603 = vadd.f32 %v602, 1.0
    %v604 = vrcp.pop %v603
    %v605 = vmul.f32 1.0, %v604
    %607 = vrot.lane.b32.xlu0 %v599, 32
    %v608 = vpop.permute.xlu0 %607
    %v610 = vmul.f32 %v605, %v608
    %612 = vrot.lane.b32.xlu0 %v610, 64
    %v613 = vpop.permute.xlu0 %612
    %v615 = vadd.f32 %v599, %v613
    %v616 = vtanh.pop %v615
    %v617 = vsub.f32 1.0, %v605
    %619 = vrot.lane.b32.xlu0 %v616, 96
    %v620 = vpop.permute.xlu0 %619
    %v622 = vmul.f32 %v617, %v620
    %v623 = vmul.f32 %v605, %v336
    %v624 = vadd.f32 %v622, %v623
    %626 = vrot.lane.b32.xlu0 %v513, 96
    %v627 = vpop.permute.xlu0 %626
    %v628 = vsel %vm234, %v627, 0
    %630 = vmatprep.subr.mxu0 0.0
    %631 = vmatpush1.msra.mxu0 %v119
    %632 = vmatprep.subr.mxu0 0.0
    %633 = vmatpush1.msra.mxu0 %v120
    %634 = vmatprep.subr.mxu0 0.0
    %635 = vmatpush1.msra.mxu0 %v121
    %636 = vmatprep.subr.mxu0 0.0
    %637 = vmatpush1.msra.mxu0 %v122
    %638 = vmatprep.subr.mxu0 0.0
    %639 = vmatpush1.msra.mxu0 0.0
    %640 = vmatprep.subr.mxu0 0.0
    %641 = vmatpush1.msra.mxu0 0.0
    %642 = vmatprep.subr.mxu0 0.0
    %643 = vmatpush1.msra.mxu0 0.0
    %644 = vmatprep.subr.mxu0 0.0
    %645 = vmatpush1.msra.mxu0 0.0
    %646 = vmatprep.subr.mxu0 0.0
    %647 = vmatpush1.msra.mxu0 0.0
    %648 = vmatprep.subr.mxu0 0.0
    %649 = vmatpush1.msra.mxu0 0.0
    %650 = vmatprep.subr.mxu0 0.0
    %651 = vmatpush1.msra.mxu0 0.0
    %652 = vmatprep.subr.mxu0 0.0
    %653 = vmatpush1.msra.mxu0 0.0
    %654 = vmatprep.subr.mxu0 0.0
    %655 = vmatpush1.msra.mxu0 0.0
    %656 = vmatprep.subr.mxu0 0.0
    %657 = vmatpush1.msra.mxu0 0.0
    %658 = vmatprep.subr.mxu0 0.0
    %659 = vmatpush1.msra.mxu0 0.0
    %660 = vmatprep.subr.mxu0 0.0
    %661 = vmatpush1.msra.mxu0 0.0
    %662 = vmatprep.subr.mxu0 0.0
    %663 = vmatpush1.msra.mxu0 0.0
    %664 = vmatprep.subr.mxu0 0.0
    %665 = vmatpush1.msra.mxu0 0.0
    %666 = vmatprep.subr.mxu0 0.0
    %667 = vmatpush1.msra.mxu0 0.0
    %668 = vmatprep.subr.mxu0 0.0
    %669 = vmatpush1.msra.mxu0 0.0
    %670 = vmatprep.subr.mxu0 0.0
    %671 = vmatpush1.msra.mxu0 0.0
    %672 = vmatprep.subr.mxu0 0.0
    %673 = vmatpush1.msra.mxu0 0.0
    %674 = vmatprep.subr.mxu0 0.0
    %675 = vmatpush1.msra.mxu0 0.0
    %676 = vmatprep.subr.mxu0 0.0
    %677 = vmatpush1.msra.mxu0 0.0
    %678 = vmatprep.subr.mxu0 0.0
    %679 = vmatpush1.msra.mxu0 0.0
    %680 = vmatprep.subr.mxu0 0.0
    %681 = vmatpush1.msra.mxu0 0.0
    %682 = vmatprep.subr.mxu0 0.0
    %683 = vmatpush1.msra.mxu0 0.0
    %684 = vmatprep.subr.mxu0 0.0
    %685 = vmatpush1.msra.mxu0 0.0
    %686 = vmatprep.subr.mxu0 0.0
    %687 = vmatpush1.msra.mxu0 0.0
    %688 = vmatprep.subr.mxu0 0.0
    %689 = vmatpush1.msra.mxu0 0.0
    %690 = vmatprep.subr.mxu0 0.0
    %691 = vmatpush1.msra.mxu0 0.0
    %692 = vmatprep.subr.mxu0 0.0
    %693 = vmatpush1.msra.mxu0 0.0
    %694 = vmatprep.mubr.f32.mxu0 0.0
    %695 = vmatmul.mubr.f32.gmra.mrb[0].mxu0 %v628
    %v696 = vpop.f32.mrb[0].mxu0
    %v697 = vadd.f32 0.0, %v696
    %v698 = vpop.f32.mrb[0].mxu0
    %699 = vdwg.mxu0
    %701 = vrot.lane.b32.xlu0 %v624, 96
    %v702 = vpop.permute.xlu0 %701
    %v703 = vsel %vm234, %v702, 0
    %705 = vmatprep.subr.mxu0 0.0
    %706 = vmatpush1.msra.mxu0 %v115
    %707 = vmatprep.subr.mxu0 0.0
    %708 = vmatpush1.msra.mxu0 %v116
    %709 = vmatprep.subr.mxu0 0.0
    %710 = vmatpush1.msra.mxu0 %v117
    %711 = vmatprep.subr.mxu0 0.0
    %712 = vmatpush1.msra.mxu0 %v118
    %713 = vmatprep.subr.mxu0 0.0
    %714 = vmatpush1.msra.mxu0 0.0
    %715 = vmatprep.subr.mxu0 0.0
    %716 = vmatpush1.msra.mxu0 0.0
    %717 = vmatprep.subr.mxu0 0.0
    %718 = vmatpush1.msra.mxu0 0.0
    %719 = vmatprep.subr.mxu0 0.0
    %720 = vmatpush1.msra.mxu0 0.0
    %721 = vmatprep.subr.mxu0 0.0
    %722 = vmatpush1.msra.mxu0 0.0
    %723 = vmatprep.subr.mxu0 0.0
    %724 = vmatpush1.msra.mxu0 0.0
    %725 = vmatprep.subr.mxu0 0.0
    %726 = vmatpush1.msra.mxu0 0.0
    %727 = vmatprep.subr.mxu0 0.0
    %728 = vmatpush1.msra.mxu0 0.0
    %729 = vmatprep.subr.mxu0 0.0
    %730 = vmatpush1.msra.mxu0 0.0
    %731 = vmatprep.subr.mxu0 0.0
    %732 = vmatpush1.msra.mxu0 0.0
    %733 = vmatprep.subr.mxu0 0.0
    %734 = vmatpush1.msra.mxu0 0.0
    %735 = vmatprep.subr.mxu0 0.0
    %736 = vmatpush1.msra.mxu0 0.0
    %737 = vmatprep.subr.mxu0 0.0
    %738 = vmatpush1.msra.mxu0 0.0
    %739 = vmatprep.subr.mxu0 0.0
    %740 = vmatpush1.msra.mxu0 0.0
    %741 = vmatprep.subr.mxu0 0.0
    %742 = vmatpush1.msra.mxu0 0.0
    %743 = vmatprep.subr.mxu0 0.0
    %744 = vmatpush1.msra.mxu0 0.0
    %745 = vmatprep.subr.mxu0 0.0
    %746 = vmatpush1.msra.mxu0 0.0
    %747 = vmatprep.subr.mxu0 0.0
    %748 = vmatpush1.msra.mxu0 0.0
    %749 = vmatprep.subr.mxu0 0.0
    %750 = vmatpush1.msra.mxu0 0.0
    %751 = vmatprep.subr.mxu0 0.0
    %752 = vmatpush1.msra.mxu0 0.0
    %753 = vmatprep.subr.mxu0 0.0
    %754 = vmatpush1.msra.mxu0 0.0
    %755 = vmatprep.subr.mxu0 0.0
    %756 = vmatpush1.msra.mxu0 0.0
    %757 = vmatprep.subr.mxu0 0.0
    %758 = vmatpush1.msra.mxu0 0.0
    %759 = vmatprep.subr.mxu0 0.0
    %760 = vmatpush1.msra.mxu0 0.0
    %761 = vmatprep.subr.mxu0 0.0
    %762 = vmatpush1.msra.mxu0 0.0
    %763 = vmatprep.subr.mxu0 0.0
    %764 = vmatpush1.msra.mxu0 0.0
    %765 = vmatprep.subr.mxu0 0.0
    %766 = vmatpush1.msra.mxu0 0.0
    %767 = vmatprep.subr.mxu0 0.0
    %768 = vmatpush1.msra.mxu0 0.0
    %769 = vmatprep.mubr.f32.mxu0 0.0
    %770 = vmatmul.mubr.f32.gmra.mrb[0].mxu0 %v703
    %v771 = vpop.f32.mrb[0].mxu0
    %v772 = vadd.f32 %v697, %v771
    %v773 = vpop.f32.mrb[0].mxu0
    %774 = vdwg.mxu0
    %v775 = vadd.f32 %v772, %v220
    %v776 = vxor.u32 %v775, 2147483648
    %v777 = vmul.f32 %v776, 1.442695
    %v778 = vpow.pop %v777
    %v779 = vadd.f32 %v778, 1.0
    %v780 = vrcp.pop %v779
    %v781 = vmul.f32 1.0, %v780
    %783 = vrot.lane.b32.xlu0 %v775, 32
    %v784 = vpop.permute.xlu0 %783
    %v786 = vmul.f32 %v781, %v784
    %788 = vrot.lane.b32.xlu0 %v786, 64
    %v789 = vpop.permute.xlu0 %788
    %v791 = vadd.f32 %v775, %v789
    %v792 = vtanh.pop %v791
    %v793 = vsub.f32 1.0, %v781
    %795 = vrot.lane.b32.xlu0 %v792, 96
    %v796 = vpop.permute.xlu0 %795
    %v798 = vmul.f32 %v793, %v796
    %v799 = vmul.f32 %v781, %v513
    %v800 = vadd.f32 %v798, %v799
    %v801 = vmul.f32 %v800, %v515
    %803 = vrot.lane.b32.xlu0 %v801, 96
    %v804 = vpop.permute.xlu0 %803
    %v806 = vsel %vm522, %v804, 0.0
    %807 = vadd.xlane.f32.xlu0 %v806
    %v808 = vpop.xlane.xlu0 %807
    %v809 = vadd.f32 %v808, %v227
    %v810 = vmax.f32 %v809, 0.0
    %v811 = vmul.f32 %v810, %v213
    %812 = vmatprep.subr.mxu0 0.0
    %813 = vmatpush1.msra.mxu0 %v111
    %814 = vmatprep.subr.mxu0 0.0
    %815 = vmatpush1.msra.mxu0 %v112
    %816 = vmatprep.subr.mxu0 0.0
    %817 = vmatpush1.msra.mxu0 %v113
    %818 = vmatprep.subr.mxu0 0.0
    %819 = vmatpush1.msra.mxu0 %v114
    %820 = vmatprep.subr.mxu0 0.0
    %821 = vmatpush1.msra.mxu0 0.0
    %822 = vmatprep.subr.mxu0 0.0
    %823 = vmatpush1.msra.mxu0 0.0
    %824 = vmatprep.subr.mxu0 0.0
    %825 = vmatpush1.msra.mxu0 0.0
    %826 = vmatprep.subr.mxu0 0.0
    %827 = vmatpush1.msra.mxu0 0.0
    %828 = vmatprep.subr.mxu0 0.0
    %829 = vmatpush1.msra.mxu0 0.0
    %830 = vmatprep.subr.mxu0 0.0
    %831 = vmatpush1.msra.mxu0 0.0
    %832 = vmatprep.subr.mxu0 0.0
    %833 = vmatpush1.msra.mxu0 0.0
    %834 = vmatprep.subr.mxu0 0.0
    %835 = vmatpush1.msra.mxu0 0.0
    %836 = vmatprep.subr.mxu0 0.0
    %837 = vmatpush1.msra.mxu0 0.0
    %838 = vmatprep.subr.mxu0 0.0
    %839 = vmatpush1.msra.mxu0 0.0
    %840 = vmatprep.subr.mxu0 0.0
    %841 = vmatpush1.msra.mxu0 0.0
    %842 = vmatprep.subr.mxu0 0.0
    %843 = vmatpush1.msra.mxu0 0.0
    %844 = vmatprep.subr.mxu0 0.0
    %845 = vmatpush1.msra.mxu0 0.0
    %846 = vmatprep.subr.mxu0 0.0
    %847 = vmatpush1.msra.mxu0 0.0
    %848 = vmatprep.subr.mxu0 0.0
    %849 = vmatpush1.msra.mxu0 0.0
    %850 = vmatprep.subr.mxu0 0.0
    %851 = vmatpush1.msra.mxu0 0.0
    %852 = vmatprep.subr.mxu0 0.0
    %853 = vmatpush1.msra.mxu0 0.0
    %854 = vmatprep.subr.mxu0 0.0
    %855 = vmatpush1.msra.mxu0 0.0
    %856 = vmatprep.subr.mxu0 0.0
    %857 = vmatpush1.msra.mxu0 0.0
    %858 = vmatprep.subr.mxu0 0.0
    %859 = vmatpush1.msra.mxu0 0.0
    %860 = vmatprep.subr.mxu0 0.0
    %861 = vmatpush1.msra.mxu0 0.0
    %862 = vmatprep.subr.mxu0 0.0
    %863 = vmatpush1.msra.mxu0 0.0
    %864 = vmatprep.subr.mxu0 0.0
    %865 = vmatpush1.msra.mxu0 0.0
    %866 = vmatprep.subr.mxu0 0.0
    %867 = vmatpush1.msra.mxu0 0.0
    %868 = vmatprep.subr.mxu0 0.0
    %869 = vmatpush1.msra.mxu0 0.0
    %870 = vmatprep.subr.mxu0 0.0
    %871 = vmatpush1.msra.mxu0 0.0
    %872 = vmatprep.subr.mxu0 0.0
    %873 = vmatpush1.msra.mxu0 0.0
    %874 = vmatprep.subr.mxu0 0.0
    %875 = vmatpush1.msra.mxu0 0.0
    %876 = vmatprep.mubr.f32.mxu0 0.0
    %877 = vmatmul.mubr.f32.gmra.mrb[0].mxu0 %v703
    %v878 = vpop.f32.mrb[0].mxu0
    %v879 = vadd.f32 %v811, %v878
    %v880 = vpop.f32.mrb[0].mxu0
    %881 = vdwg.mxu0
    %v882 = vadd.f32 %v879, %v205
    %v883 = vxor.u32 %v882, 2147483648
    %v884 = vmul.f32 %v883, 1.442695
    %v885 = vpow.pop %v884
    %v886 = vadd.f32 %v885, 1.0
    %v887 = vrcp.pop %v886
    %v888 = vmul.f32 1.0, %v887
    %890 = vrot.lane.b32.xlu0 %v882, 32
    %v891 = vpop.permute.xlu0 %890
    %v893 = vmul.f32 %v888, %v891
    %895 = vrot.lane.b32.xlu0 %v893, 64
    %v896 = vpop.permute.xlu0 %895
    %v898 = vadd.f32 %v882, %v896
    %v899 = vtanh.pop %v898
    %v900 = vsub.f32 1.0, %v888
    %902 = vrot.lane.b32.xlu0 %v899, 96
    %v903 = vpop.permute.xlu0 %902
    %v905 = vmul.f32 %v900, %v903
    %v906 = vmul.f32 %v888, %v624
    %v907 = vadd.f32 %v905, %v906
    %909 = vrot.lane.b32.xlu0 %v800, 96
    %v910 = vpop.permute.xlu0 %909
    %v911 = vsel %vm234, %v910, 0
    %913 = vmatprep.subr.mxu0 0.0
    %914 = vmatpush1.msra.mxu0 %v119
    %915 = vmatprep.subr.mxu0 0.0
    %916 = vmatpush1.msra.mxu0 %v120
    %917 = vmatprep.subr.mxu0 0.0
    %918 = vmatpush1.msra.mxu0 %v121
    %919 = vmatprep.subr.mxu0 0.0
    %920 = vmatpush1.msra.mxu0 %v122
    %921 = vmatprep.subr.mxu0 0.0
    %922 = vmatpush1.msra.mxu0 0.0
    %923 = vmatprep.subr.mxu0 0.0
    %924 = vmatpush1.msra.mxu0 0.0
    %925 = vmatprep.subr.mxu0 0.0
    %926 = vmatpush1.msra.mxu0 0.0
    %927 = vmatprep.subr.mxu0 0.0
    %928 = vmatpush1.msra.mxu0 0.0
    %929 = vmatprep.subr.mxu0 0.0
    %930 = vmatpush1.msra.mxu0 0.0
    %931 = vmatprep.subr.mxu0 0.0
    %932 = vmatpush1.msra.mxu0 0.0
    %933 = vmatprep.subr.mxu0 0.0
    %934 = vmatpush1.msra.mxu0 0.0
    %935 = vmatprep.subr.mxu0 0.0
    %936 = vmatpush1.msra.mxu0 0.0
    %937 = vmatprep.subr.mxu0 0.0
    %938 = vmatpush1.msra.mxu0 0.0
    %939 = vmatprep.subr.mxu0 0.0
    %940 = vmatpush1.msra.mxu0 0.0
    %941 = vmatprep.subr.mxu0 0.0
    %942 = vmatpush1.msra.mxu0 0.0
    %943 = vmatprep.subr.mxu0 0.0
    %944 = vmatpush1.msra.mxu0 0.0
    %945 = vmatprep.subr.mxu0 0.0
    %946 = vmatpush1.msra.mxu0 0.0
    %947 = vmatprep.subr.mxu0 0.0
    %948 = vmatpush1.msra.mxu0 0.0
    %949 = vmatprep.subr.mxu0 0.0
    %950 = vmatpush1.msra.mxu0 0.0
    %951 = vmatprep.subr.mxu0 0.0
    %952 = vmatpush1.msra.mxu0 0.0
    %953 = vmatprep.subr.mxu0 0.0
    %954 = vmatpush1.msra.mxu0 0.0
    %955 = vmatprep.subr.mxu0 0.0
    %956 = vmatpush1.msra.mxu0 0.0
    %957 = vmatprep.subr.mxu0 0.0
    %958 = vmatpush1.msra.mxu0 0.0
    %959 = vmatprep.subr.mxu0 0.0
    %960 = vmatpush1.msra.mxu0 0.0
    %961 = vmatprep.subr.mxu0 0.0
    %962 = vmatpush1.msra.mxu0 0.0
    %963 = vmatprep.subr.mxu0 0.0
    %964 = vmatpush1.msra.mxu0 0.0
    %965 = vmatprep.subr.mxu0 0.0
    %966 = vmatpush1.msra.mxu0 0.0
    %967 = vmatprep.subr.mxu0 0.0
    %968 = vmatpush1.msra.mxu0 0.0
    %969 = vmatprep.subr.mxu0 0.0
    %970 = vmatpush1.msra.mxu0 0.0
    %971 = vmatprep.subr.mxu0 0.0
    %972 = vmatpush1.msra.mxu0 0.0
    %973 = vmatprep.subr.mxu0 0.0
    %974 = vmatpush1.msra.mxu0 0.0
    %975 = vmatprep.subr.mxu0 0.0
    %976 = vmatpush1.msra.mxu0 0.0
    %977 = vmatprep.mubr.f32.mxu0 0.0
    %978 = vmatmul.mubr.f32.gmra.mrb[0].mxu0 %v911
    %v979 = vpop.f32.mrb[0].mxu0
    %v980 = vadd.f32 0.0, %v979
    %v981 = vpop.f32.mrb[0].mxu0
    %982 = vdwg.mxu0
    %984 = vrot.lane.b32.xlu0 %v907, 96
    %v985 = vpop.permute.xlu0 %984
    %v986 = vsel %vm234, %v985, 0
    %988 = vmatprep.subr.mxu0 0.0
    %989 = vmatpush1.msra.mxu0 %v115
    %990 = vmatprep.subr.mxu0 0.0
    %991 = vmatpush1.msra.mxu0 %v116
    %992 = vmatprep.subr.mxu0 0.0
    %993 = vmatpush1.msra.mxu0 %v117
    %994 = vmatprep.subr.mxu0 0.0
    %995 = vmatpush1.msra.mxu0 %v118
    %996 = vmatprep.subr.mxu0 0.0
    %997 = vmatpush1.msra.mxu0 0.0
    %998 = vmatprep.subr.mxu0 0.0
    %999 = vmatpush1.msra.mxu0 0.0
    %1000 = vmatprep.subr.mxu0 0.0
    %1001 = vmatpush1.msra.mxu0 0.0
    %1002 = vmatprep.subr.mxu0 0.0
    %1003 = vmatpush1.msra.mxu0 0.0
    %1004 = vmatprep.subr.mxu0 0.0
    %1005 = vmatpush1.msra.mxu0 0.0
    %1006 = vmatprep.subr.mxu0 0.0
    %1007 = vmatpush1.msra.mxu0 0.0
    %1008 = vmatprep.subr.mxu0 0.0
    %1009 = vmatpush1.msra.mxu0 0.0
    %1010 = vmatprep.subr.mxu0 0.0
    %1011 = vmatpush1.msra.mxu0 0.0
    %1012 = vmatprep.subr.mxu0 0.0
    %1013 = vmatpush1.msra.mxu0 0.0
    %1014 = vmatprep.subr.mxu0 0.0
    %1015 = vmatpush1.msra.mxu0 0.0
    %1016 = vmatprep.subr.mxu0 0.0
    %1017 = vmatpush1.msra.mxu0 0.0
    %1018 = vmatprep.subr.mxu0 0.0
    %1019 = vmatpush1.msra.mxu0 0.0
    %1020 = vmatprep.subr.mxu0 0.0
    %1021 = vmatpush1.msra.mxu0 0.0
    %1022 = vmatprep.subr.mxu0 0.0
    %1023 = vmatpush1.msra.mxu0 0.0
    %1024 = vmatprep.subr.mxu0 0.0
    %1025 = vmatpush1.msra.mxu0 0.0
    %1026 = vmatprep.subr.mxu0 0.0
    %1027 = vmatpush1.msra.mxu0 0.0
    %1028 = vmatprep.subr.mxu0 0.0
    %1029 = vmatpush1.msra.mxu0 0.0
    %1030 = vmatprep.subr.mxu0 0.0
    %1031 = vmatpush1.msra.mxu0 0.0
    %1032 = vmatprep.subr.mxu0 0.0
    %1033 = vmatpush1.msra.mxu0 0.0
    %1034 = vmatprep.subr.mxu0 0.0
    %1035 = vmatpush1.msra.mxu0 0.0
    %1036 = vmatprep.subr.mxu0 0.0
    %1037 = vmatpush1.msra.mxu0 0.0
    %1038 = vmatprep.subr.mxu0 0.0
    %1039 = vmatpush1.msra.mxu0 0.0
    %1040 = vmatprep.subr.mxu0 0.0
    %1041 = vmatpush1.msra.mxu0 0.0
    %1042 = vmatprep.subr.mxu0 0.0
    %1043 = vmatpush1.msra.mxu0 0.0
    %1044 = vmatprep.subr.mxu0 0.0
    %1045 = vmatpush1.msra.mxu0 0.0
    %1046 = vmatprep.subr.mxu0 0.0
    %1047 = vmatpush1.msra.mxu0 0.0
    %1048 = vmatprep.subr.mxu0 0.0
    %1049 = vmatpush1.msra.mxu0 0.0
    %1050 = vmatprep.subr.mxu0 0.0
    %1051 = vmatpush1.msra.mxu0 0.0
    %1052 = vmatprep.mubr.f32.mxu0 0.0
    %1053 = vmatmul.mubr.f32.gmra.mrb[0].mxu0 %v986
    %v1054 = vpop.f32.mrb[0].mxu0
    %v1055 = vadd.f32 %v980, %v1054
    %v1056 = vpop.f32.mrb[0].mxu0
    %1057 = vdwg.mxu0
    %v1058 = vadd.f32 %v1055, %v220
    %v1059 = vxor.u32 %v1058, 2147483648
    %v1060 = vmul.f32 %v1059, 1.442695
    %v1061 = vpow.pop %v1060
    %v1062 = vadd.f32 %v1061, 1.0
    %v1063 = vrcp.pop %v1062
    %v1064 = vmul.f32 1.0, %v1063
    %1066 = vrot.lane.b32.xlu0 %v1058, 32
    %v1067 = vpop.permute.xlu0 %1066
    %v1069 = vmul.f32 %v1064, %v1067
    %1071 = vrot.lane.b32.xlu0 %v1069, 64
    %v1072 = vpop.permute.xlu0 %1071
    %v1074 = vadd.f32 %v1058, %v1072
    %v1075 = vtanh.pop %v1074
    %v1076 = vsub.f32 1.0, %v1064
    %1078 = vrot.lane.b32.xlu0 %v1075, 96
    %v1079 = vpop.permute.xlu0 %1078
    %v1081 = vmul.f32 %v1076, %v1079
    %v1082 = vmul.f32 %v1064, %v800
    %v1083 = vadd.f32 %v1081, %v1082
    %v1084 = vmul.f32 %v1083, %v515
    %1086 = vrot.lane.b32.xlu0 %v1084, 96
    %v1087 = vpop.permute.xlu0 %1086
    %v1089 = vsel %vm522, %v1087, 0.0
    %1090 = vadd.xlane.f32.xlu0 %v1089
    %v1091 = vpop.xlane.xlu0 %1090
    %v1092 = vadd.f32 %v1091, %v227
    %v1093 = vmax.f32 %v1092, 0.0
    %v1094 = vmul.f32 %v1093, %v213
    %1095 = vmatprep.subr.mxu0 0.0
    %1096 = vmatpush1.msra.mxu0 %v111
    %1097 = vmatprep.subr.mxu0 0.0
    %1098 = vmatpush1.msra.mxu0 %v112
    %1099 = vmatprep.subr.mxu0 0.0
    %1100 = vmatpush1.msra.mxu0 %v113
    %1101 = vmatprep.subr.mxu0 0.0
    %1102 = vmatpush1.msra.mxu0 %v114
    %1103 = vmatprep.subr.mxu0 0.0
    %1104 = vmatpush1.msra.mxu0 0.0
    %1105 = vmatprep.subr.mxu0 0.0
    %1106 = vmatpush1.msra.mxu0 0.0
    %1107 = vmatprep.subr.mxu0 0.0
    %1108 = vmatpush1.msra.mxu0 0.0
    %1109 = vmatprep.subr.mxu0 0.0
    %1110 = vmatpush1.msra.mxu0 0.0
    %1111 = vmatprep.subr.mxu0 0.0
    %1112 = vmatpush1.msra.mxu0 0.0
    %1113 = vmatprep.subr.mxu0 0.0
    %1114 = vmatpush1.msra.mxu0 0.0
    %1115 = vmatprep.subr.mxu0 0.0
    %1116 = vmatpush1.msra.mxu0 0.0
    %1117 = vmatprep.subr.mxu0 0.0
    %1118 = vmatpush1.msra.mxu0 0.0
    %1119 = vmatprep.subr.mxu0 0.0
    %1120 = vmatpush1.msra.mxu0 0.0
    %1121 = vmatprep.subr.mxu0 0.0
    %1122 = vmatpush1.msra.mxu0 0.0
    %1123 = vmatprep.subr.mxu0 0.0
    %1124 = vmatpush1.msra.mxu0 0.0
    %1125 = vmatprep.subr.mxu0 0.0
    %1126 = vmatpush1.msra.mxu0 0.0
    %1127 = vmatprep.subr.mxu0 0.0
    %1128 = vmatpush1.msra.mxu0 0.0
    %1129 = vmatprep.subr.mxu0 0.0
    %1130 = vmatpush1.msra.mxu0 0.0
    %1131 = vmatprep.subr.mxu0 0.0
    %1132 = vmatpush1.msra.mxu0 0.0
    %1133 = vmatprep.subr.mxu0 0.0
    %1134 = vmatpush1.msra.mxu0 0.0
    %1135 = vmatprep.subr.mxu0 0.0
    %1136 = vmatpush1.msra.mxu0 0.0
    %1137 = vmatprep.subr.mxu0 0.0
    %1138 = vmatpush1.msra.mxu0 0.0
    %1139 = vmatprep.subr.mxu0 0.0
    %1140 = vmatpush1.msra.mxu0 0.0
    %1141 = vmatprep.subr.mxu0 0.0
    %1142 = vmatpush1.msra.mxu0 0.0
    %1143 = vmatprep.subr.mxu0 0.0
    %1144 = vmatpush1.msra.mxu0 0.0
    %1145 = vmatprep.subr.mxu0 0.0
    %1146 = vmatpush1.msra.mxu0 0.0
    %1147 = vmatprep.subr.mxu0 0.0
    %1148 = vmatpush1.msra.mxu0 0.0
    %1149 = vmatprep.subr.mxu0 0.0
    %1150 = vmatpush1.msra.mxu0 0.0
    %1151 = vmatprep.subr.mxu0 0.0
    %1152 = vmatpush1.msra.mxu0 0.0
    %1153 = vmatprep.subr.mxu0 0.0
    %1154 = vmatpush1.msra.mxu0 0.0
    %1155 = vmatprep.subr.mxu0 0.0
    %1156 = vmatpush1.msra.mxu0 0.0
    %1157 = vmatprep.subr.mxu0 0.0
    %1158 = vmatpush1.msra.mxu0 0.0
    %1159 = vmatprep.mubr.f32.mxu0 0.0
    %1160 = vmatmul.mubr.f32.gmra.mrb[0].mxu0 %v986
    %v1161 = vpop.f32.mrb[0].mxu0
    %v1162 = vadd.f32 %v1094, %v1161
    %v1163 = vpop.f32.mrb[0].mxu0
    %1164 = vdwg.mxu0
    %v1165 = vadd.f32 %v1162, %v205
    %v1166 = vxor.u32 %v1165, 2147483648
    %v1167 = vmul.f32 %v1166, 1.442695
    %v1168 = vpow.pop %v1167
    %v1169 = vadd.f32 %v1168, 1.0
    %v1170 = vrcp.pop %v1169
    %v1171 = vmul.f32 1.0, %v1170
    %1173 = vrot.lane.b32.xlu0 %v1165, 32
    %v1174 = vpop.permute.xlu0 %1173
    %v1176 = vmul.f32 %v1171, %v1174
    %1178 = vrot.lane.b32.xlu0 %v1176, 64
    %v1179 = vpop.permute.xlu0 %1178
    %v1181 = vadd.f32 %v1165, %v1179
    %v1182 = vtanh.pop %v1181
    %v1183 = vsub.f32 1.0, %v1171
    %1185 = vrot.lane.b32.xlu0 %v1182, 96
    %v1186 = vpop.permute.xlu0 %1185
    %v1188 = vmul.f32 %v1183, %v1186
    %v1189 = vmul.f32 %v1171, %v907
    %v1190 = vadd.f32 %v1188, %v1189
    %1192 = vrot.lane.b32.xlu0 %v1083, 96
    %v1193 = vpop.permute.xlu0 %1192
    %v1194 = vsel %vm234, %v1193, 0
    %1196 = vmatprep.subr.mxu0 0.0
    %1197 = vmatpush1.msra.mxu0 %v119
    %1198 = vmatprep.subr.mxu0 0.0
    %1199 = vmatpush1.msra.mxu0 %v120
    %1200 = vmatprep.subr.mxu0 0.0
    %1201 = vmatpush1.msra.mxu0 %v121
    %1202 = vmatprep.subr.mxu0 0.0
    %1203 = vmatpush1.msra.mxu0 %v122
    %1204 = vmatprep.subr.mxu0 0.0
    %1205 = vmatpush1.msra.mxu0 0.0
    %1206 = vmatprep.subr.mxu0 0.0
    %1207 = vmatpush1.msra.mxu0 0.0
    %1208 = vmatprep.subr.mxu0 0.0
    %1209 = vmatpush1.msra.mxu0 0.0
    %1210 = vmatprep.subr.mxu0 0.0
    %1211 = vmatpush1.msra.mxu0 0.0
    %1212 = vmatprep.subr.mxu0 0.0
    %1213 = vmatpush1.msra.mxu0 0.0
    %1214 = vmatprep.subr.mxu0 0.0
    %1215 = vmatpush1.msra.mxu0 0.0
    %1216 = vmatprep.subr.mxu0 0.0
    %1217 = vmatpush1.msra.mxu0 0.0
    %1218 = vmatprep.subr.mxu0 0.0
    %1219 = vmatpush1.msra.mxu0 0.0
    %1220 = vmatprep.subr.mxu0 0.0
    %1221 = vmatpush1.msra.mxu0 0.0
    %1222 = vmatprep.subr.mxu0 0.0
    %1223 = vmatpush1.msra.mxu0 0.0
    %1224 = vmatprep.subr.mxu0 0.0
    %1225 = vmatpush1.msra.mxu0 0.0
    %1226 = vmatprep.subr.mxu0 0.0
    %1227 = vmatpush1.msra.mxu0 0.0
    %1228 = vmatprep.subr.mxu0 0.0
    %1229 = vmatpush1.msra.mxu0 0.0
    %1230 = vmatprep.subr.mxu0 0.0
    %1231 = vmatpush1.msra.mxu0 0.0
    %1232 = vmatprep.subr.mxu0 0.0
    %1233 = vmatpush1.msra.mxu0 0.0
    %1234 = vmatprep.subr.mxu0 0.0
    %1235 = vmatpush1.msra.mxu0 0.0
    %1236 = vmatprep.subr.mxu0 0.0
    %1237 = vmatpush1.msra.mxu0 0.0
    %1238 = vmatprep.subr.mxu0 0.0
    %1239 = vmatpush1.msra.mxu0 0.0
    %1240 = vmatprep.subr.mxu0 0.0
    %1241 = vmatpush1.msra.mxu0 0.0
    %1242 = vmatprep.subr.mxu0 0.0
    %1243 = vmatpush1.msra.mxu0 0.0
    %1244 = vmatprep.subr.mxu0 0.0
    %1245 = vmatpush1.msra.mxu0 0.0
    %1246 = vmatprep.subr.mxu0 0.0
    %1247 = vmatpush1.msra.mxu0 0.0
    %1248 = vmatprep.subr.mxu0 0.0
    %1249 = vmatpush1.msra.mxu0 0.0
    %1250 = vmatprep.subr.mxu0 0.0
    %1251 = vmatpush1.msra.mxu0 0.0
    %1252 = vmatprep.subr.mxu0 0.0
    %1253 = vmatpush1.msra.mxu0 0.0
    %1254 = vmatprep.subr.mxu0 0.0
    %1255 = vmatpush1.msra.mxu0 0.0
    %1256 = vmatprep.subr.mxu0 0.0
    %1257 = vmatpush1.msra.mxu0 0.0
    %1258 = vmatprep.subr.mxu0 0.0
    %1259 = vmatpush1.msra.mxu0 0.0
    %1260 = vmatprep.mubr.f32.mxu0 0.0
    %1261 = vmatmul.mubr.f32.gmra.mrb[0].mxu0 %v1194
    %v1262 = vpop.f32.mrb[0].mxu0
    %v1263 = vadd.f32 0.0, %v1262
    %v1264 = vpop.f32.mrb[0].mxu0
    %1265 = vdwg.mxu0
    %1267 = vrot.lane.b32.xlu0 %v1190, 96
    %v1268 = vpop.permute.xlu0 %1267
    %v1269 = vsel %vm234, %v1268, 0
    %1271 = vmatprep.subr.mxu0 0.0
    %1272 = vmatpush1.msra.mxu0 %v115
    %1273 = vmatprep.subr.mxu0 0.0
    %1274 = vmatpush1.msra.mxu0 %v116
    %1275 = vmatprep.subr.mxu0 0.0
    %1276 = vmatpush1.msra.mxu0 %v117
    %1277 = vmatprep.subr.mxu0 0.0
    %1278 = vmatpush1.msra.mxu0 %v118
    %1279 = vmatprep.subr.mxu0 0.0
    %1280 = vmatpush1.msra.mxu0 0.0
    %1281 = vmatprep.subr.mxu0 0.0
    %1282 = vmatpush1.msra.mxu0 0.0
    %1283 = vmatprep.subr.mxu0 0.0
    %1284 = vmatpush1.msra.mxu0 0.0
    %1285 = vmatprep.subr.mxu0 0.0
    %1286 = vmatpush1.msra.mxu0 0.0
    %1287 = vmatprep.subr.mxu0 0.0
    %1288 = vmatpush1.msra.mxu0 0.0
    %1289 = vmatprep.subr.mxu0 0.0
    %1290 = vmatpush1.msra.mxu0 0.0
    %1291 = vmatprep.subr.mxu0 0.0
    %1292 = vmatpush1.msra.mxu0 0.0
    %1293 = vmatprep.subr.mxu0 0.0
    %1294 = vmatpush1.msra.mxu0 0.0
    %1295 = vmatprep.subr.mxu0 0.0
    %1296 = vmatpush1.msra.mxu0 0.0
    %1297 = vmatprep.subr.mxu0 0.0
    %1298 = vmatpush1.msra.mxu0 0.0
    %1299 = vmatprep.subr.mxu0 0.0
    %1300 = vmatpush1.msra.mxu0 0.0
    %1301 = vmatprep.subr.mxu0 0.0
    %1302 = vmatpush1.msra.mxu0 0.0
    %1303 = vmatprep.subr.mxu0 0.0
    %1304 = vmatpush1.msra.mxu0 0.0
    %1305 = vmatprep.subr.mxu0 0.0
    %1306 = vmatpush1.msra.mxu0 0.0
    %1307 = vmatprep.subr.mxu0 0.0
    %1308 = vmatpush1.msra.mxu0 0.0
    %1309 = vmatprep.subr.mxu0 0.0
    %1310 = vmatpush1.msra.mxu0 0.0
    %1311 = vmatprep.subr.mxu0 0.0
    %1312 = vmatpush1.msra.mxu0 0.0
    %1313 = vmatprep.subr.mxu0 0.0
    %1314 = vmatpush1.msra.mxu0 0.0
    %1315 = vmatprep.subr.mxu0 0.0
    %1316 = vmatpush1.msra.mxu0 0.0
    %1317 = vmatprep.subr.mxu0 0.0
    %1318 = vmatpush1.msra.mxu0 0.0
    %1319 = vmatprep.subr.mxu0 0.0
    %1320 = vmatpush1.msra.mxu0 0.0
    %1321 = vmatprep.subr.mxu0 0.0
    %1322 = vmatpush1.msra.mxu0 0.0
    %1323 = vmatprep.subr.mxu0 0.0
    %1324 = vmatpush1.msra.mxu0 0.0
    %1325 = vmatprep.subr.mxu0 0.0
    %1326 = vmatpush1.msra.mxu0 0.0
    %1327 = vmatprep.subr.mxu0 0.0
    %1328 = vmatpush1.msra.mxu0 0.0
    %1329 = vmatprep.subr.mxu0 0.0
    %1330 = vmatpush1.msra.mxu0 0.0
    %1331 = vmatprep.subr.mxu0 0.0
    %1332 = vmatpush1.msra.mxu0 0.0
    %1333 = vmatprep.subr.mxu0 0.0
    %1334 = vmatpush1.msra.mxu0 0.0
    %1335 = vmatprep.mubr.f32.mxu0 0.0
    %1336 = vmatmul.mubr.f32.gmra.mrb[0].mxu0 %v1269
    %v1337 = vpop.f32.mrb[0].mxu0
    %v1338 = vadd.f32 %v1263, %v1337
    %v1339 = vpop.f32.mrb[0].mxu0
    %1340 = vdwg.mxu0
    %v1341 = vadd.f32 %v1338, %v220
    %v1342 = vxor.u32 %v1341, 2147483648
    %v1343 = vmul.f32 %v1342, 1.442695
    %v1344 = vpow.pop %v1343
    %v1345 = vadd.f32 %v1344, 1.0
    %v1346 = vrcp.pop %v1345
    %v1347 = vmul.f32 1.0, %v1346
    %1349 = vrot.lane.b32.xlu0 %v1341, 32
    %v1350 = vpop.permute.xlu0 %1349
    %v1352 = vmul.f32 %v1347, %v1350
    %1354 = vrot.lane.b32.xlu0 %v1352, 64
    %v1355 = vpop.permute.xlu0 %1354
    %v1357 = vadd.f32 %v1341, %v1355
    %v1358 = vtanh.pop %v1357
    %v1359 = vsub.f32 1.0, %v1347
    %1361 = vrot.lane.b32.xlu0 %v1358, 96
    %v1362 = vpop.permute.xlu0 %1361
    %v1364 = vmul.f32 %v1359, %v1362
    %v1365 = vmul.f32 %v1347, %v1083
    %v1366 = vadd.f32 %v1364, %v1365
    %v1367 = vmul.f32 %v1366, %v515
    %1369 = vrot.lane.b32.xlu0 %v1367, 96
    %v1370 = vpop.permute.xlu0 %1369
    %v1372 = vsel %vm522, %v1370, 0.0
    %1373 = vadd.xlane.f32.xlu0 %v1372
    %v1374 = vpop.xlane.xlu0 %1373
    %v1375 = vadd.f32 %v1374, %v227
    %v1376 = vmax.f32 %v1375, 0.0
    %v1377 = vmul.f32 %v1376, %v213
    %1378 = vmatprep.subr.mxu0 0.0
    %1379 = vmatpush1.msra.mxu0 %v111
    %1380 = vmatprep.subr.mxu0 0.0
    %1381 = vmatpush1.msra.mxu0 %v112
    %1382 = vmatprep.subr.mxu0 0.0
    %1383 = vmatpush1.msra.mxu0 %v113
    %1384 = vmatprep.subr.mxu0 0.0
    %1385 = vmatpush1.msra.mxu0 %v114
    %1386 = vmatprep.subr.mxu0 0.0
    %1387 = vmatpush1.msra.mxu0 0.0
    %1388 = vmatprep.subr.mxu0 0.0
    %1389 = vmatpush1.msra.mxu0 0.0
    %1390 = vmatprep.subr.mxu0 0.0
    %1391 = vmatpush1.msra.mxu0 0.0
    %1392 = vmatprep.subr.mxu0 0.0
    %1393 = vmatpush1.msra.mxu0 0.0
    %1394 = vmatprep.subr.mxu0 0.0
    %1395 = vmatpush1.msra.mxu0 0.0
    %1396 = vmatprep.subr.mxu0 0.0
    %1397 = vmatpush1.msra.mxu0 0.0
    %1398 = vmatprep.subr.mxu0 0.0
    %1399 = vmatpush1.msra.mxu0 0.0
    %1400 = vmatprep.subr.mxu0 0.0
    %1401 = vmatpush1.msra.mxu0 0.0
    %1402 = vmatprep.subr.mxu0 0.0
    %1403 = vmatpush1.msra.mxu0 0.0
    %1404 = vmatprep.subr.mxu0 0.0
    %1405 = vmatpush1.msra.mxu0 0.0
    %1406 = vmatprep.subr.mxu0 0.0
    %1407 = vmatpush1.msra.mxu0 0.0
    %1408 = vmatprep.subr.mxu0 0.0
    %1409 = vmatpush1.msra.mxu0 0.0
    %1410 = vmatprep.subr.mxu0 0.0
    %1411 = vmatpush1.msra.mxu0 0.0
    %1412 = vmatprep.subr.mxu0 0.0
    %1413 = vmatpush1.msra.mxu0 0.0
    %1414 = vmatprep.subr.mxu0 0.0
    %1415 = vmatpush1.msra.mxu0 0.0
    %1416 = vmatprep.subr.mxu0 0.0
    %1417 = vmatpush1.msra.mxu0 0.0
    %1418 = vmatprep.subr.mxu0 0.0
    %1419 = vmatpush1.msra.mxu0 0.0
    %1420 = vmatprep.subr.mxu0 0.0
    %1421 = vmatpush1.msra.mxu0 0.0
    %1422 = vmatprep.subr.mxu0 0.0
    %1423 = vmatpush1.msra.mxu0 0.0
    %1424 = vmatprep.subr.mxu0 0.0
    %1425 = vmatpush1.msra.mxu0 0.0
    %1426 = vmatprep.subr.mxu0 0.0
    %1427 = vmatpush1.msra.mxu0 0.0
    %1428 = vmatprep.subr.mxu0 0.0
    %1429 = vmatpush1.msra.mxu0 0.0
    %1430 = vmatprep.subr.mxu0 0.0
    %1431 = vmatpush1.msra.mxu0 0.0
    %1432 = vmatprep.subr.mxu0 0.0
    %1433 = vmatpush1.msra.mxu0 0.0
    %1434 = vmatprep.subr.mxu0 0.0
    %1435 = vmatpush1.msra.mxu0 0.0
    %1436 = vmatprep.subr.mxu0 0.0
    %1437 = vmatpush1.msra.mxu0 0.0
    %1438 = vmatprep.subr.mxu0 0.0
    %1439 = vmatpush1.msra.mxu0 0.0
    %1440 = vmatprep.subr.mxu0 0.0
    %1441 = vmatpush1.msra.mxu0 0.0
    %1442 = vmatprep.mubr.f32.mxu0 0.0
    %1443 = vmatmul.mubr.f32.gmra.mrb[0].mxu0 %v1269
    %v1444 = vpop.f32.mrb[0].mxu0
    %v1445 = vadd.f32 %v1377, %v1444
    %v1446 = vpop.f32.mrb[0].mxu0
    %1447 = vdwg.mxu0
    %v1448 = vadd.f32 %v1445, %v205
    %v1449 = vxor.u32 %v1448, 2147483648
    %v1450 = vmul.f32 %v1449, 1.442695
    %v1451 = vpow.pop %v1450
    %v1452 = vadd.f32 %v1451, 1.0
    %v1453 = vrcp.pop %v1452
    %v1454 = vmul.f32 1.0, %v1453
    %1456 = vrot.lane.b32.xlu0 %v1448, 32
    %v1457 = vpop.permute.xlu0 %1456
    %v1459 = vmul.f32 %v1454, %v1457
    %1461 = vrot.lane.b32.xlu0 %v1459, 64
    %v1462 = vpop.permute.xlu0 %1461
    %v1464 = vadd.f32 %v1448, %v1462
    %v1465 = vtanh.pop %v1464
    %v1466 = vsub.f32 1.0, %v1454
    %1468 = vrot.lane.b32.xlu0 %v1465, 96
    %v1469 = vpop.permute.xlu0 %1468
    %v1471 = vmul.f32 %v1466, %v1469
    %v1472 = vmul.f32 %v1454, %v1190
    %v1473 = vadd.f32 %v1471, %v1472
    %1475 = vrot.lane.b32.xlu0 %v1366, 96
    %v1476 = vpop.permute.xlu0 %1475
    %v1477 = vsel %vm234, %v1476, 0
    %1479 = vmatprep.subr.mxu0 0.0
    %1480 = vmatpush1.msra.mxu0 %v119
    %1481 = vmatprep.subr.mxu0 0.0
    %1482 = vmatpush1.msra.mxu0 %v120
    %1483 = vmatprep.subr.mxu0 0.0
    %1484 = vmatpush1.msra.mxu0 %v121
    %1485 = vmatprep.subr.mxu0 0.0
    %1486 = vmatpush1.msra.mxu0 %v122
    %1487 = vmatprep.subr.mxu0 0.0
    %1488 = vmatpush1.msra.mxu0 0.0
    %1489 = vmatprep.subr.mxu0 0.0
    %1490 = vmatpush1.msra.mxu0 0.0
    %1491 = vmatprep.subr.mxu0 0.0
    %1492 = vmatpush1.msra.mxu0 0.0
    %1493 = vmatprep.subr.mxu0 0.0
    %1494 = vmatpush1.msra.mxu0 0.0
    %1495 = vmatprep.subr.mxu0 0.0
    %1496 = vmatpush1.msra.mxu0 0.0
    %1497 = vmatprep.subr.mxu0 0.0
    %1498 = vmatpush1.msra.mxu0 0.0
    %1499 = vmatprep.subr.mxu0 0.0
    %1500 = vmatpush1.msra.mxu0 0.0
    %1501 = vmatprep.subr.mxu0 0.0
    %1502 = vmatpush1.msra.mxu0 0.0
    %1503 = vmatprep.subr.mxu0 0.0
    %1504 = vmatpush1.msra.mxu0 0.0
    %1505 = vmatprep.subr.mxu0 0.0
    %1506 = vmatpush1.msra.mxu0 0.0
    %1507 = vmatprep.subr.mxu0 0.0
    %1508 = vmatpush1.msra.mxu0 0.0
    %1509 = vmatprep.subr.mxu0 0.0
    %1510 = vmatpush1.msra.mxu0 0.0
    %1511 = vmatprep.subr.mxu0 0.0
    %1512 = vmatpush1.msra.mxu0 0.0
    %1513 = vmatprep.subr.mxu0 0.0
    %1514 = vmatpush1.msra.mxu0 0.0
    %1515 = vmatprep.subr.mxu0 0.0
    %1516 = vmatpush1.msra.mxu0 0.0
    %1517 = vmatprep.subr.mxu0 0.0
    %1518 = vmatpush1.msra.mxu0 0.0
    %1519 = vmatprep.subr.mxu0 0.0
    %1520 = vmatpush1.msra.mxu0 0.0
    %1521 = vmatprep.subr.mxu0 0.0
    %1522 = vmatpush1.msra.mxu0 0.0
    %1523 = vmatprep.subr.mxu0 0.0
    %1524 = vmatpush1.msra.mxu0 0.0
    %1525 = vmatprep.subr.mxu0 0.0
    %1526 = vmatpush1.msra.mxu0 0.0
    %1527 = vmatprep.subr.mxu0 0.0
    %1528 = vmatpush1.msra.mxu0 0.0
    %1529 = vmatprep.subr.mxu0 0.0
    %1530 = vmatpush1.msra.mxu0 0.0
    %1531 = vmatprep.subr.mxu0 0.0
    %1532 = vmatpush1.msra.mxu0 0.0
    %1533 = vmatprep.subr.mxu0 0.0
    %1534 = vmatpush1.msra.mxu0 0.0
    %1535 = vmatprep.subr.mxu0 0.0
    %1536 = vmatpush1.msra.mxu0 0.0
    %1537 = vmatprep.subr.mxu0 0.0
    %1538 = vmatpush1.msra.mxu0 0.0
    %1539 = vmatprep.subr.mxu0 0.0
    %1540 = vmatpush1.msra.mxu0 0.0
    %1541 = vmatprep.subr.mxu0 0.0
    %1542 = vmatpush1.msra.mxu0 0.0
    %1543 = vmatprep.mubr.f32.mxu0 0.0
    %1544 = vmatmul.mubr.f32.gmra.mrb[0].mxu0 %v1477
    %v1545 = vpop.f32.mrb[0].mxu0
    %v1546 = vadd.f32 0.0, %v1545
    %v1547 = vpop.f32.mrb[0].mxu0
    %1548 = vdwg.mxu0
    %1550 = vrot.lane.b32.xlu0 %v1473, 96
    %v1551 = vpop.permute.xlu0 %1550
    %v1552 = vsel %vm234, %v1551, 0
    %1554 = vmatprep.subr.mxu0 0.0
    %1555 = vmatpush1.msra.mxu0 %v115
    %1556 = vmatprep.subr.mxu0 0.0
    %1557 = vmatpush1.msra.mxu0 %v116
    %1558 = vmatprep.subr.mxu0 0.0
    %1559 = vmatpush1.msra.mxu0 %v117
    %1560 = vmatprep.subr.mxu0 0.0
    %1561 = vmatpush1.msra.mxu0 %v118
    %1562 = vmatprep.subr.mxu0 0.0
    %1563 = vmatpush1.msra.mxu0 0.0
    %1564 = vmatprep.subr.mxu0 0.0
    %1565 = vmatpush1.msra.mxu0 0.0
    %1566 = vmatprep.subr.mxu0 0.0
    %1567 = vmatpush1.msra.mxu0 0.0
    %1568 = vmatprep.subr.mxu0 0.0
    %1569 = vmatpush1.msra.mxu0 0.0
    %1570 = vmatprep.subr.mxu0 0.0
    %1571 = vmatpush1.msra.mxu0 0.0
    %1572 = vmatprep.subr.mxu0 0.0
    %1573 = vmatpush1.msra.mxu0 0.0
    %1574 = vmatprep.subr.mxu0 0.0
    %1575 = vmatpush1.msra.mxu0 0.0
    %1576 = vmatprep.subr.mxu0 0.0
    %1577 = vmatpush1.msra.mxu0 0.0
    %1578 = vmatprep.subr.mxu0 0.0
    %1579 = vmatpush1.msra.mxu0 0.0
    %1580 = vmatprep.subr.mxu0 0.0
    %1581 = vmatpush1.msra.mxu0 0.0
    %1582 = vmatprep.subr.mxu0 0.0
    %1583 = vmatpush1.msra.mxu0 0.0
    %1584 = vmatprep.subr.mxu0 0.0
    %1585 = vmatpush1.msra.mxu0 0.0
    %1586 = vmatprep.subr.mxu0 0.0
    %1587 = vmatpush1.msra.mxu0 0.0
    %1588 = vmatprep.subr.mxu0 0.0
    %1589 = vmatpush1.msra.mxu0 0.0
    %1590 = vmatprep.subr.mxu0 0.0
    %1591 = vmatpush1.msra.mxu0 0.0
    %1592 = vmatprep.subr.mxu0 0.0
    %1593 = vmatpush1.msra.mxu0 0.0
    %1594 = vmatprep.subr.mxu0 0.0
    %1595 = vmatpush1.msra.mxu0 0.0
    %1596 = vmatprep.subr.mxu0 0.0
    %1597 = vmatpush1.msra.mxu0 0.0
    %1598 = vmatprep.subr.mxu0 0.0
    %1599 = vmatpush1.msra.mxu0 0.0
    %1600 = vmatprep.subr.mxu0 0.0
    %1601 = vmatpush1.msra.mxu0 0.0
    %1602 = vmatprep.subr.mxu0 0.0
    %1603 = vmatpush1.msra.mxu0 0.0
    %1604 = vmatprep.subr.mxu0 0.0
    %1605 = vmatpush1.msra.mxu0 0.0
    %1606 = vmatprep.subr.mxu0 0.0
    %1607 = vmatpush1.msra.mxu0 0.0
    %1608 = vmatprep.subr.mxu0 0.0
    %1609 = vmatpush1.msra.mxu0 0.0
    %1610 = vmatprep.subr.mxu0 0.0
    %1611 = vmatpush1.msra.mxu0 0.0
    %1612 = vmatprep.subr.mxu0 0.0
    %1613 = vmatpush1.msra.mxu0 0.0
    %1614 = vmatprep.subr.mxu0 0.0
    %1615 = vmatpush1.msra.mxu0 0.0
    %1616 = vmatprep.subr.mxu0 0.0
    %1617 = vmatpush1.msra.mxu0 0.0
    %1618 = vmatprep.mubr.f32.mxu0 0.0
    %1619 = vmatmul.mubr.f32.gmra.mrb[0].mxu0 %v1552
    %v1620 = vpop.f32.mrb[0].mxu0
    %v1621 = vadd.f32 %v1546, %v1620
    %v1622 = vpop.f32.mrb[0].mxu0
    %1623 = vdwg.mxu0
    %v1624 = vadd.f32 %v1621, %v220
    %v1625 = vxor.u32 %v1624, 2147483648
    %v1626 = vmul.f32 %v1625, 1.442695
    %v1627 = vpow.pop %v1626
    %v1628 = vadd.f32 %v1627, 1.0
    %v1629 = vrcp.pop %v1628
    %v1630 = vmul.f32 1.0, %v1629
    %1632 = vrot.lane.b32.xlu0 %v1624, 32
    %v1633 = vpop.permute.xlu0 %1632
    %v1635 = vmul.f32 %v1630, %v1633
    %1637 = vrot.lane.b32.xlu0 %v1635, 64
    %v1638 = vpop.permute.xlu0 %1637
    %v1640 = vadd.f32 %v1624, %v1638
    %v1641 = vtanh.pop %v1640
    %v1642 = vsub.f32 1.0, %v1630
    %1644 = vrot.lane.b32.xlu0 %v1641, 96
    %v1645 = vpop.permute.xlu0 %1644
    %v1647 = vmul.f32 %v1642, %v1645
    %v1648 = vmul.f32 %v1630, %v1366
    %v1649 = vadd.f32 %v1647, %v1648
    %v1650 = vmul.f32 %v1649, %v515
    %1652 = vrot.lane.b32.xlu0 %v1650, 96
    %v1653 = vpop.permute.xlu0 %1652
    %v1655 = vsel %vm522, %v1653, 0.0
    %1656 = vadd.xlane.f32.xlu0 %v1655
    %v1657 = vpop.xlane.xlu0 %1656
    %v1658 = vadd.f32 %v1657, %v227
    %v1659 = vmax.f32 %v1658, 0.0
    %v1660 = vmul.f32 %v1659, %v213
    %1661 = vmatprep.subr.mxu0 0.0
    %1662 = vmatpush1.msra.mxu0 %v111
    %1663 = vmatprep.subr.mxu0 0.0
    %1664 = vmatpush1.msra.mxu0 %v112
    %1665 = vmatprep.subr.mxu0 0.0
    %1666 = vmatpush1.msra.mxu0 %v113
    %1667 = vmatprep.subr.mxu0 0.0
    %1668 = vmatpush1.msra.mxu0 %v114
    %1669 = vmatprep.subr.mxu0 0.0
    %1670 = vmatpush1.msra.mxu0 0.0
    %1671 = vmatprep.subr.mxu0 0.0
    %1672 = vmatpush1.msra.mxu0 0.0
    %1673 = vmatprep.subr.mxu0 0.0
    %1674 = vmatpush1.msra.mxu0 0.0
    %1675 = vmatprep.subr.mxu0 0.0
    %1676 = vmatpush1.msra.mxu0 0.0
    %1677 = vmatprep.subr.mxu0 0.0
    %1678 = vmatpush1.msra.mxu0 0.0
    %1679 = vmatprep.subr.mxu0 0.0
    %1680 = vmatpush1.msra.mxu0 0.0
    %1681 = vmatprep.subr.mxu0 0.0
    %1682 = vmatpush1.msra.mxu0 0.0
    %1683 = vmatprep.subr.mxu0 0.0
    %1684 = vmatpush1.msra.mxu0 0.0
    %1685 = vmatprep.subr.mxu0 0.0
    %1686 = vmatpush1.msra.mxu0 0.0
    %1687 = vmatprep.subr.mxu0 0.0
    %1688 = vmatpush1.msra.mxu0 0.0
    %1689 = vmatprep.subr.mxu0 0.0
    %1690 = vmatpush1.msra.mxu0 0.0
    %1691 = vmatprep.subr.mxu0 0.0
    %1692 = vmatpush1.msra.mxu0 0.0
    %1693 = vmatprep.subr.mxu0 0.0
    %1694 = vmatpush1.msra.mxu0 0.0
    %1695 = vmatprep.subr.mxu0 0.0
    %1696 = vmatpush1.msra.mxu0 0.0
    %1697 = vmatprep.subr.mxu0 0.0
    %1698 = vmatpush1.msra.mxu0 0.0
    %1699 = vmatprep.subr.mxu0 0.0
    %1700 = vmatpush1.msra.mxu0 0.0
    %1701 = vmatprep.subr.mxu0 0.0
    %1702 = vmatpush1.msra.mxu0 0.0
    %1703 = vmatprep.subr.mxu0 0.0
    %1704 = vmatpush1.msra.mxu0 0.0
    %1705 = vmatprep.subr.mxu0 0.0
    %1706 = vmatpush1.msra.mxu0 0.0
    %1707 = vmatprep.subr.mxu0 0.0
    %1708 = vmatpush1.msra.mxu0 0.0
    %1709 = vmatprep.subr.mxu0 0.0
    %1710 = vmatpush1.msra.mxu0 0.0
    %1711 = vmatprep.subr.mxu0 0.0
    %1712 = vmatpush1.msra.mxu0 0.0
    %1713 = vmatprep.subr.mxu0 0.0
    %1714 = vmatpush1.msra.mxu0 0.0
    %1715 = vmatprep.subr.mxu0 0.0
    %1716 = vmatpush1.msra.mxu0 0.0
    %1717 = vmatprep.subr.mxu0 0.0
    %1718 = vmatpush1.msra.mxu0 0.0
    %1719 = vmatprep.subr.mxu0 0.0
    %1720 = vmatpush1.msra.mxu0 0.0
    %1721 = vmatprep.subr.mxu0 0.0
    %1722 = vmatpush1.msra.mxu0 0.0
    %1723 = vmatprep.subr.mxu0 0.0
    %1724 = vmatpush1.msra.mxu0 0.0
    %1725 = vmatprep.mubr.f32.mxu0 0.0
    %1726 = vmatmul.mubr.f32.gmra.mrb[0].mxu0 %v1552
    %v1727 = vpop.f32.mrb[0].mxu0
    %v1728 = vadd.f32 %v1660, %v1727
    %v1729 = vpop.f32.mrb[0].mxu0
    %1730 = vdwg.mxu0
    %v1731 = vadd.f32 %v1728, %v205
    %v1732 = vxor.u32 %v1731, 2147483648
    %v1733 = vmul.f32 %v1732, 1.442695
    %v1734 = vpow.pop %v1733
    %v1735 = vadd.f32 %v1734, 1.0
    %v1736 = vrcp.pop %v1735
    %v1737 = vmul.f32 1.0, %v1736
    %1739 = vrot.lane.b32.xlu0 %v1731, 32
    %v1740 = vpop.permute.xlu0 %1739
    %v1742 = vmul.f32 %v1737, %v1740
    %1744 = vrot.lane.b32.xlu0 %v1742, 64
    %v1745 = vpop.permute.xlu0 %1744
    %v1747 = vadd.f32 %v1731, %v1745
    %v1748 = vtanh.pop %v1747
    %v1749 = vsub.f32 1.0, %v1737
    %1751 = vrot.lane.b32.xlu0 %v1748, 96
    %v1752 = vpop.permute.xlu0 %1751
    %v1754 = vmul.f32 %v1749, %v1752
    %v1755 = vmul.f32 %v1737, %v1473
    %v1756 = vadd.f32 %v1754, %v1755
    %1758 = vrot.lane.b32.xlu0 %v1649, 96
    %v1759 = vpop.permute.xlu0 %1758
    %v1760 = vsel %vm234, %v1759, 0
    %1762 = vmatprep.subr.mxu0 0.0
    %1763 = vmatpush1.msra.mxu0 %v119
    %1764 = vmatprep.subr.mxu0 0.0
    %1765 = vmatpush1.msra.mxu0 %v120
    %1766 = vmatprep.subr.mxu0 0.0
    %1767 = vmatpush1.msra.mxu0 %v121
    %1768 = vmatprep.subr.mxu0 0.0
    %1769 = vmatpush1.msra.mxu0 %v122
    %1770 = vmatprep.subr.mxu0 0.0
    %1771 = vmatpush1.msra.mxu0 0.0
    %1772 = vmatprep.subr.mxu0 0.0
    %1773 = vmatpush1.msra.mxu0 0.0
    %1774 = vmatprep.subr.mxu0 0.0
    %1775 = vmatpush1.msra.mxu0 0.0
    %1776 = vmatprep.subr.mxu0 0.0
    %1777 = vmatpush1.msra.mxu0 0.0
    %1778 = vmatprep.subr.mxu0 0.0
    %1779 = vmatpush1.msra.mxu0 0.0
    %1780 = vmatprep.subr.mxu0 0.0
    %1781 = vmatpush1.msra.mxu0 0.0
    %1782 = vmatprep.subr.mxu0 0.0
    %1783 = vmatpush1.msra.mxu0 0.0
    %1784 = vmatprep.subr.mxu0 0.0
    %1785 = vmatpush1.msra.mxu0 0.0
    %1786 = vmatprep.subr.mxu0 0.0
    %1787 = vmatpush1.msra.mxu0 0.0
    %1788 = vmatprep.subr.mxu0 0.0
    %1789 = vmatpush1.msra.mxu0 0.0
    %1790 = vmatprep.subr.mxu0 0.0
    %1791 = vmatpush1.msra.mxu0 0.0
    %1792 = vmatprep.subr.mxu0 0.0
    %1793 = vmatpush1.msra.mxu0 0.0
    %1794 = vmatprep.subr.mxu0 0.0
    %1795 = vmatpush1.msra.mxu0 0.0
    %1796 = vmatprep.subr.mxu0 0.0
    %1797 = vmatpush1.msra.mxu0 0.0
    %1798 = vmatprep.subr.mxu0 0.0
    %1799 = vmatpush1.msra.mxu0 0.0
    %1800 = vmatprep.subr.mxu0 0.0
    %1801 = vmatpush1.msra.mxu0 0.0
    %1802 = vmatprep.subr.mxu0 0.0
    %1803 = vmatpush1.msra.mxu0 0.0
    %1804 = vmatprep.subr.mxu0 0.0
    %1805 = vmatpush1.msra.mxu0 0.0
    %1806 = vmatprep.subr.mxu0 0.0
    %1807 = vmatpush1.msra.mxu0 0.0
    %1808 = vmatprep.subr.mxu0 0.0
    %1809 = vmatpush1.msra.mxu0 0.0
    %1810 = vmatprep.subr.mxu0 0.0
    %1811 = vmatpush1.msra.mxu0 0.0
    %1812 = vmatprep.subr.mxu0 0.0
    %1813 = vmatpush1.msra.mxu0 0.0
    %1814 = vmatprep.subr.mxu0 0.0
    %1815 = vmatpush1.msra.mxu0 0.0
    %1816 = vmatprep.subr.mxu0 0.0
    %1817 = vmatpush1.msra.mxu0 0.0
    %1818 = vmatprep.subr.mxu0 0.0
    %1819 = vmatpush1.msra.mxu0 0.0
    %1820 = vmatprep.subr.mxu0 0.0
    %1821 = vmatpush1.msra.mxu0 0.0
    %1822 = vmatprep.subr.mxu0 0.0
    %1823 = vmatpush1.msra.mxu0 0.0
    %1824 = vmatprep.subr.mxu0 0.0
    %1825 = vmatpush1.msra.mxu0 0.0
    %1826 = vmatprep.mubr.f32.mxu0 0.0
    %1827 = vmatmul.mubr.f32.gmra.mrb[0].mxu0 %v1760
    %v1828 = vpop.f32.mrb[0].mxu0
    %v1829 = vadd.f32 0.0, %v1828
    %v1830 = vpop.f32.mrb[0].mxu0
    %1831 = vdwg.mxu0
    %1833 = vrot.lane.b32.xlu0 %v1756, 96
    %v1834 = vpop.permute.xlu0 %1833
    %v1835 = vsel %vm234, %v1834, 0
    %1837 = vmatprep.subr.mxu0 0.0
    %1838 = vmatpush1.msra.mxu0 %v115
    %1839 = vmatprep.subr.mxu0 0.0
    %1840 = vmatpush1.msra.mxu0 %v116
    %1841 = vmatprep.subr.mxu0 0.0
    %1842 = vmatpush1.msra.mxu0 %v117
    %1843 = vmatprep.subr.mxu0 0.0
    %1844 = vmatpush1.msra.mxu0 %v118
    %1845 = vmatprep.subr.mxu0 0.0
    %1846 = vmatpush1.msra.mxu0 0.0
    %1847 = vmatprep.subr.mxu0 0.0
    %1848 = vmatpush1.msra.mxu0 0.0
    %1849 = vmatprep.subr.mxu0 0.0
    %1850 = vmatpush1.msra.mxu0 0.0
    %1851 = vmatprep.subr.mxu0 0.0
    %1852 = vmatpush1.msra.mxu0 0.0
    %1853 = vmatprep.subr.mxu0 0.0
    %1854 = vmatpush1.msra.mxu0 0.0
    %1855 = vmatprep.subr.mxu0 0.0
    %1856 = vmatpush1.msra.mxu0 0.0
    %1857 = vmatprep.subr.mxu0 0.0
    %1858 = vmatpush1.msra.mxu0 0.0
    %1859 = vmatprep.subr.mxu0 0.0
    %1860 = vmatpush1.msra.mxu0 0.0
    %1861 = vmatprep.subr.mxu0 0.0
    %1862 = vmatpush1.msra.mxu0 0.0
    %1863 = vmatprep.subr.mxu0 0.0
    %1864 = vmatpush1.msra.mxu0 0.0
    %1865 = vmatprep.subr.mxu0 0.0
    %1866 = vmatpush1.msra.mxu0 0.0
    %1867 = vmatprep.subr.mxu0 0.0
    %1868 = vmatpush1.msra.mxu0 0.0
    %1869 = vmatprep.subr.mxu0 0.0
    %1870 = vmatpush1.msra.mxu0 0.0
    %1871 = vmatprep.subr.mxu0 0.0
    %1872 = vmatpush1.msra.mxu0 0.0
    %1873 = vmatprep.subr.mxu0 0.0
    %1874 = vmatpush1.msra.mxu0 0.0
    %1875 = vmatprep.subr.mxu0 0.0
    %1876 = vmatpush1.msra.mxu0 0.0
    %1877 = vmatprep.subr.mxu0 0.0
    %1878 = vmatpush1.msra.mxu0 0.0
    %1879 = vmatprep.subr.mxu0 0.0
    %1880 = vmatpush1.msra.mxu0 0.0
    %1881 = vmatprep.subr.mxu0 0.0
    %1882 = vmatpush1.msra.mxu0 0.0
    %1883 = vmatprep.subr.mxu0 0.0
    %1884 = vmatpush1.msra.mxu0 0.0
    %1885 = vmatprep.subr.mxu0 0.0
    %1886 = vmatpush1.msra.mxu0 0.0
    %1887 = vmatprep.subr.mxu0 0.0
    %1888 = vmatpush1.msra.mxu0 0.0
    %1889 = vmatprep.subr.mxu0 0.0
    %1890 = vmatpush1.msra.mxu0 0.0
    %1891 = vmatprep.subr.mxu0 0.0
    %1892 = vmatpush1.msra.mxu0 0.0
    %1893 = vmatprep.subr.mxu0 0.0
    %1894 = vmatpush1.msra.mxu0 0.0
    %1895 = vmatprep.subr.mxu0 0.0
    %1896 = vmatpush1.msra.mxu0 0.0
    %1897 = vmatprep.subr.mxu0 0.0
    %1898 = vmatpush1.msra.mxu0 0.0
    %1899 = vmatprep.subr.mxu0 0.0
    %1900 = vmatpush1.msra.mxu0 0.0
    %1901 = vmatprep.mubr.f32.mxu0 0.0
    %1902 = vmatmul.mubr.f32.gmra.mrb[0].mxu0 %v1835
    %v1903 = vpop.f32.mrb[0].mxu0
    %v1904 = vadd.f32 %v1829, %v1903
    %v1905 = vpop.f32.mrb[0].mxu0
    %1906 = vdwg.mxu0
    %v1907 = vadd.f32 %v1904, %v220
    %v1908 = vxor.u32 %v1907, 2147483648
    %v1909 = vmul.f32 %v1908, 1.442695
    %v1910 = vpow.pop %v1909
    %v1911 = vadd.f32 %v1910, 1.0
    %v1912 = vrcp.pop %v1911
    %v1913 = vmul.f32 1.0, %v1912
    %1915 = vrot.lane.b32.xlu0 %v1907, 32
    %v1916 = vpop.permute.xlu0 %1915
    %v1918 = vmul.f32 %v1913, %v1916
    %1920 = vrot.lane.b32.xlu0 %v1918, 64
    %v1921 = vpop.permute.xlu0 %1920
    %v1923 = vadd.f32 %v1907, %v1921
    %v1924 = vtanh.pop %v1923
    %v1925 = vsub.f32 1.0, %v1913
    %1927 = vrot.lane.b32.xlu0 %v1924, 96
    %v1928 = vpop.permute.xlu0 %1927
    %v1930 = vmul.f32 %v1925, %v1928
    %v1931 = vmul.f32 %v1913, %v1649
    %v1932 = vadd.f32 %v1930, %v1931
    %v1933 = vmul.f32 %v1932, %v515
    %1935 = vrot.lane.b32.xlu0 %v1933, 96
    %v1936 = vpop.permute.xlu0 %1935
    %v1938 = vsel %vm522, %v1936, 0.0
    %1939 = vadd.xlane.f32.xlu0 %v1938
    %v1940 = vpop.xlane.xlu0 %1939
    %v1941 = vadd.f32 %v1940, %v227
    %v1942 = vmax.f32 %v1941, 0.0
    %v1943 = vmul.f32 %v1942, %v213
    %1944 = vmatprep.subr.mxu0 0.0
    %1945 = vmatpush1.msra.mxu0 %v111
    %1946 = vmatprep.subr.mxu0 0.0
    %1947 = vmatpush1.msra.mxu0 %v112
    %1948 = vmatprep.subr.mxu0 0.0
    %1949 = vmatpush1.msra.mxu0 %v113
    %1950 = vmatprep.subr.mxu0 0.0
    %1951 = vmatpush1.msra.mxu0 %v114
    %1952 = vmatprep.subr.mxu0 0.0
    %1953 = vmatpush1.msra.mxu0 0.0
    %1954 = vmatprep.subr.mxu0 0.0
    %1955 = vmatpush1.msra.mxu0 0.0
    %1956 = vmatprep.subr.mxu0 0.0
    %1957 = vmatpush1.msra.mxu0 0.0
    %1958 = vmatprep.subr.mxu0 0.0
    %1959 = vmatpush1.msra.mxu0 0.0
    %1960 = vmatprep.subr.mxu0 0.0
    %1961 = vmatpush1.msra.mxu0 0.0
    %1962 = vmatprep.subr.mxu0 0.0
    %1963 = vmatpush1.msra.mxu0 0.0
    %1964 = vmatprep.subr.mxu0 0.0
    %1965 = vmatpush1.msra.mxu0 0.0
    %1966 = vmatprep.subr.mxu0 0.0
    %1967 = vmatpush1.msra.mxu0 0.0
    %1968 = vmatprep.subr.mxu0 0.0
    %1969 = vmatpush1.msra.mxu0 0.0
    %1970 = vmatprep.subr.mxu0 0.0
    %1971 = vmatpush1.msra.mxu0 0.0
    %1972 = vmatprep.subr.mxu0 0.0
    %1973 = vmatpush1.msra.mxu0 0.0
    %1974 = vmatprep.subr.mxu0 0.0
    %1975 = vmatpush1.msra.mxu0 0.0
    %1976 = vmatprep.subr.mxu0 0.0
    %1977 = vmatpush1.msra.mxu0 0.0
    %1978 = vmatprep.subr.mxu0 0.0
    %1979 = vmatpush1.msra.mxu0 0.0
    %1980 = vmatprep.subr.mxu0 0.0
    %1981 = vmatpush1.msra.mxu0 0.0
    %1982 = vmatprep.subr.mxu0 0.0
    %1983 = vmatpush1.msra.mxu0 0.0
    %1984 = vmatprep.subr.mxu0 0.0
    %1985 = vmatpush1.msra.mxu0 0.0
    %1986 = vmatprep.subr.mxu0 0.0
    %1987 = vmatpush1.msra.mxu0 0.0
    %1988 = vmatprep.subr.mxu0 0.0
    %1989 = vmatpush1.msra.mxu0 0.0
    %1990 = vmatprep.subr.mxu0 0.0
    %1991 = vmatpush1.msra.mxu0 0.0
    %1992 = vmatprep.subr.mxu0 0.0
    %1993 = vmatpush1.msra.mxu0 0.0
    %1994 = vmatprep.subr.mxu0 0.0
    %1995 = vmatpush1.msra.mxu0 0.0
    %1996 = vmatprep.subr.mxu0 0.0
    %1997 = vmatpush1.msra.mxu0 0.0
    %1998 = vmatprep.subr.mxu0 0.0
    %1999 = vmatpush1.msra.mxu0 0.0
    %2000 = vmatprep.subr.mxu0 0.0
    %2001 = vmatpush1.msra.mxu0 0.0
    %2002 = vmatprep.subr.mxu0 0.0
    %2003 = vmatpush1.msra.mxu0 0.0
    %2004 = vmatprep.subr.mxu0 0.0
    %2005 = vmatpush1.msra.mxu0 0.0
    %2006 = vmatprep.subr.mxu0 0.0
    %2007 = vmatpush1.msra.mxu0 0.0
    %2008 = vmatprep.mubr.f32.mxu0 0.0
    %2009 = vmatmul.mubr.f32.gmra.mrb[0].mxu0 %v1835
    %v2010 = vpop.f32.mrb[0].mxu0
    %v2011 = vadd.f32 %v1943, %v2010
    %v2012 = vpop.f32.mrb[0].mxu0
    %2013 = vdwg.mxu0
    %v2014 = vadd.f32 %v2011, %v205
    %v2015 = vxor.u32 %v2014, 2147483648
    %v2016 = vmul.f32 %v2015, 1.442695
    %v2017 = vpow.pop %v2016
    %v2018 = vadd.f32 %v2017, 1.0
    %v2019 = vrcp.pop %v2018
    %v2020 = vmul.f32 1.0, %v2019
    %2022 = vrot.lane.b32.xlu0 %v2014, 32
    %v2023 = vpop.permute.xlu0 %2022
    %v2025 = vmul.f32 %v2020, %v2023
    %2027 = vrot.lane.b32.xlu0 %v2025, 64
    %v2028 = vpop.permute.xlu0 %2027
    %v2030 = vadd.f32 %v2014, %v2028
    %v2031 = vtanh.pop %v2030
    %v2032 = vsub.f32 1.0, %v2020
    %2034 = vrot.lane.b32.xlu0 %v2031, 96
    %v2035 = vpop.permute.xlu0 %2034
    %v2037 = vmul.f32 %v2032, %v2035
    %v2038 = vmul.f32 %v2020, %v1756
    %v2039 = vadd.f32 %v2037, %v2038
    %2041 = vrot.lane.b32.xlu0 %v1932, 96
    %v2042 = vpop.permute.xlu0 %2041
    %v2043 = vsel %vm234, %v2042, 0
    %2045 = vmatprep.subr.mxu0 0.0
    %2046 = vmatpush1.msra.mxu0 %v119
    %2047 = vmatprep.subr.mxu0 0.0
    %2048 = vmatpush1.msra.mxu0 %v120
    %2049 = vmatprep.subr.mxu0 0.0
    %2050 = vmatpush1.msra.mxu0 %v121
    %2051 = vmatprep.subr.mxu0 0.0
    %2052 = vmatpush1.msra.mxu0 %v122
    %2053 = vmatprep.subr.mxu0 0.0
    %2054 = vmatpush1.msra.mxu0 0.0
    %2055 = vmatprep.subr.mxu0 0.0
    %2056 = vmatpush1.msra.mxu0 0.0
    %2057 = vmatprep.subr.mxu0 0.0
    %2058 = vmatpush1.msra.mxu0 0.0
    %2059 = vmatprep.subr.mxu0 0.0
    %2060 = vmatpush1.msra.mxu0 0.0
    %2061 = vmatprep.subr.mxu0 0.0
    %2062 = vmatpush1.msra.mxu0 0.0
    %2063 = vmatprep.subr.mxu0 0.0
    %2064 = vmatpush1.msra.mxu0 0.0
    %2065 = vmatprep.subr.mxu0 0.0
    %2066 = vmatpush1.msra.mxu0 0.0
    %2067 = vmatprep.subr.mxu0 0.0
    %2068 = vmatpush1.msra.mxu0 0.0
    %2069 = vmatprep.subr.mxu0 0.0
    %2070 = vmatpush1.msra.mxu0 0.0
    %2071 = vmatprep.subr.mxu0 0.0
    %2072 = vmatpush1.msra.mxu0 0.0
    %2073 = vmatprep.subr.mxu0 0.0
    %2074 = vmatpush1.msra.mxu0 0.0
    %2075 = vmatprep.subr.mxu0 0.0
    %2076 = vmatpush1.msra.mxu0 0.0
    %2077 = vmatprep.subr.mxu0 0.0
    %2078 = vmatpush1.msra.mxu0 0.0
    %2079 = vmatprep.subr.mxu0 0.0
    %2080 = vmatpush1.msra.mxu0 0.0
    %2081 = vmatprep.subr.mxu0 0.0
    %2082 = vmatpush1.msra.mxu0 0.0
    %2083 = vmatprep.subr.mxu0 0.0
    %2084 = vmatpush1.msra.mxu0 0.0
    %2085 = vmatprep.subr.mxu0 0.0
    %2086 = vmatpush1.msra.mxu0 0.0
    %2087 = vmatprep.subr.mxu0 0.0
    %2088 = vmatpush1.msra.mxu0 0.0
    %2089 = vmatprep.subr.mxu0 0.0
    %2090 = vmatpush1.msra.mxu0 0.0
    %2091 = vmatprep.subr.mxu0 0.0
    %2092 = vmatpush1.msra.mxu0 0.0
    %2093 = vmatprep.subr.mxu0 0.0
    %2094 = vmatpush1.msra.mxu0 0.0
    %2095 = vmatprep.subr.mxu0 0.0
    %2096 = vmatpush1.msra.mxu0 0.0
    %2097 = vmatprep.subr.mxu0 0.0
    %2098 = vmatpush1.msra.mxu0 0.0
    %2099 = vmatprep.subr.mxu0 0.0
    %2100 = vmatpush1.msra.mxu0 0.0
    %2101 = vmatprep.subr.mxu0 0.0
    %2102 = vmatpush1.msra.mxu0 0.0
    %2103 = vmatprep.subr.mxu0 0.0
    %2104 = vmatpush1.msra.mxu0 0.0
    %2105 = vmatprep.subr.mxu0 0.0
    %2106 = vmatpush1.msra.mxu0 0.0
    %2107 = vmatprep.subr.mxu0 0.0
    %2108 = vmatpush1.msra.mxu0 0.0
    %2109 = vmatprep.mubr.f32.mxu0 0.0
    %2110 = vmatmul.mubr.f32.gmra.mrb[0].mxu0 %v2043
    %v2111 = vpop.f32.mrb[0].mxu0
    %v2112 = vadd.f32 0.0, %v2111
    %v2113 = vpop.f32.mrb[0].mxu0
    %2114 = vdwg.mxu0
    %2116 = vrot.lane.b32.xlu0 %v2039, 96
    %v2117 = vpop.permute.xlu0 %2116
    %v2118 = vsel %vm234, %v2117, 0
    %2120 = vmatprep.subr.mxu0 0.0
    %2121 = vmatpush1.msra.mxu0 %v115
    %2122 = vmatprep.subr.mxu0 0.0
    %2123 = vmatpush1.msra.mxu0 %v116
    %2124 = vmatprep.subr.mxu0 0.0
    %2125 = vmatpush1.msra.mxu0 %v117
    %2126 = vmatprep.subr.mxu0 0.0
    %2127 = vmatpush1.msra.mxu0 %v118
    %2128 = vmatprep.subr.mxu0 0.0
    %2129 = vmatpush1.msra.mxu0 0.0
    %2130 = vmatprep.subr.mxu0 0.0
    %2131 = vmatpush1.msra.mxu0 0.0
    %2132 = vmatprep.subr.mxu0 0.0
    %2133 = vmatpush1.msra.mxu0 0.0
    %2134 = vmatprep.subr.mxu0 0.0
    %2135 = vmatpush1.msra.mxu0 0.0
    %2136 = vmatprep.subr.mxu0 0.0
    %2137 = vmatpush1.msra.mxu0 0.0
    %2138 = vmatprep.subr.mxu0 0.0
    %2139 = vmatpush1.msra.mxu0 0.0
    %2140 = vmatprep.subr.mxu0 0.0
    %2141 = vmatpush1.msra.mxu0 0.0
    %2142 = vmatprep.subr.mxu0 0.0
    %2143 = vmatpush1.msra.mxu0 0.0
    %2144 = vmatprep.subr.mxu0 0.0
    %2145 = vmatpush1.msra.mxu0 0.0
    %2146 = vmatprep.subr.mxu0 0.0
    %2147 = vmatpush1.msra.mxu0 0.0
    %2148 = vmatprep.subr.mxu0 0.0
    %2149 = vmatpush1.msra.mxu0 0.0
    %2150 = vmatprep.subr.mxu0 0.0
    %2151 = vmatpush1.msra.mxu0 0.0
    %2152 = vmatprep.subr.mxu0 0.0
    %2153 = vmatpush1.msra.mxu0 0.0
    %2154 = vmatprep.subr.mxu0 0.0
    %2155 = vmatpush1.msra.mxu0 0.0
    %2156 = vmatprep.subr.mxu0 0.0
    %2157 = vmatpush1.msra.mxu0 0.0
    %2158 = vmatprep.subr.mxu0 0.0
    %2159 = vmatpush1.msra.mxu0 0.0
    %2160 = vmatprep.subr.mxu0 0.0
    %2161 = vmatpush1.msra.mxu0 0.0
    %2162 = vmatprep.subr.mxu0 0.0
    %2163 = vmatpush1.msra.mxu0 0.0
    %2164 = vmatprep.subr.mxu0 0.0
    %2165 = vmatpush1.msra.mxu0 0.0
    %2166 = vmatprep.subr.mxu0 0.0
    %2167 = vmatpush1.msra.mxu0 0.0
    %2168 = vmatprep.subr.mxu0 0.0
    %2169 = vmatpush1.msra.mxu0 0.0
    %2170 = vmatprep.subr.mxu0 0.0
    %2171 = vmatpush1.msra.mxu0 0.0
    %2172 = vmatprep.subr.mxu0 0.0
    %2173 = vmatpush1.msra.mxu0 0.0
    %2174 = vmatprep.subr.mxu0 0.0
    %2175 = vmatpush1.msra.mxu0 0.0
    %2176 = vmatprep.subr.mxu0 0.0
    %2177 = vmatpush1.msra.mxu0 0.0
    %2178 = vmatprep.subr.mxu0 0.0
    %2179 = vmatpush1.msra.mxu0 0.0
    %2180 = vmatprep.subr.mxu0 0.0
    %2181 = vmatpush1.msra.mxu0 0.0
    %2182 = vmatprep.subr.mxu0 0.0
    %2183 = vmatpush1.msra.mxu0 0.0
    %2184 = vmatprep.mubr.f32.mxu0 0.0
    %2185 = vmatmul.mubr.f32.gmra.mrb[0].mxu0 %v2118
    %v2186 = vpop.f32.mrb[0].mxu0
    %v2187 = vadd.f32 %v2112, %v2186
    %v2188 = vpop.f32.mrb[0].mxu0
    %2189 = vdwg.mxu0
    %v2190 = vadd.f32 %v2187, %v220
    %v2191 = vxor.u32 %v2190, 2147483648
    %v2192 = vmul.f32 %v2191, 1.442695
    %v2193 = vpow.pop %v2192
    %v2194 = vadd.f32 %v2193, 1.0
    %v2195 = vrcp.pop %v2194
    %v2196 = vmul.f32 1.0, %v2195
    %2198 = vrot.lane.b32.xlu0 %v2190, 32
    %v2199 = vpop.permute.xlu0 %2198
    %v2201 = vmul.f32 %v2196, %v2199
    %2203 = vrot.lane.b32.xlu0 %v2201, 64
    %v2204 = vpop.permute.xlu0 %2203
    %v2206 = vadd.f32 %v2190, %v2204
    %v2207 = vtanh.pop %v2206
    %v2208 = vsub.f32 1.0, %v2196
    %2210 = vrot.lane.b32.xlu0 %v2207, 96
    %v2211 = vpop.permute.xlu0 %2210
    %v2213 = vmul.f32 %v2208, %v2211
    %v2214 = vmul.f32 %v2196, %v1932
    %v2215 = vadd.f32 %v2213, %v2214
    %v2216 = vmul.f32 %v2215, %v515
    %2218 = vrot.lane.b32.xlu0 %v2216, 96
    %v2219 = vpop.permute.xlu0 %2218
    %v2221 = vsel %vm522, %v2219, 0.0
    %2222 = vadd.xlane.f32.xlu0 %v2221
    %v2223 = vpop.xlane.xlu0 %2222
    %v2224 = vadd.f32 %v2223, %v227
    %v2225 = vmax.f32 %v2224, 0.0
    %v2226 = vmul.f32 %v2225, %v213
    %2227 = vmatprep.subr.mxu0 0.0
    %2228 = vmatpush1.msra.mxu0 %v111
    %2229 = vmatprep.subr.mxu0 0.0
    %2230 = vmatpush1.msra.mxu0 %v112
    %2231 = vmatprep.subr.mxu0 0.0
    %2232 = vmatpush1.msra.mxu0 %v113
    %2233 = vmatprep.subr.mxu0 0.0
    %2234 = vmatpush1.msra.mxu0 %v114
    %2235 = vmatprep.subr.mxu0 0.0
    %2236 = vmatpush1.msra.mxu0 0.0
    %2237 = vmatprep.subr.mxu0 0.0
    %2238 = vmatpush1.msra.mxu0 0.0
    %2239 = vmatprep.subr.mxu0 0.0
    %2240 = vmatpush1.msra.mxu0 0.0
    %2241 = vmatprep.subr.mxu0 0.0
    %2242 = vmatpush1.msra.mxu0 0.0
    %2243 = vmatprep.subr.mxu0 0.0
    %2244 = vmatpush1.msra.mxu0 0.0
    %2245 = vmatprep.subr.mxu0 0.0
    %2246 = vmatpush1.msra.mxu0 0.0
    %2247 = vmatprep.subr.mxu0 0.0
    %2248 = vmatpush1.msra.mxu0 0.0
    %2249 = vmatprep.subr.mxu0 0.0
    %2250 = vmatpush1.msra.mxu0 0.0
    %2251 = vmatprep.subr.mxu0 0.0
    %2252 = vmatpush1.msra.mxu0 0.0
    %2253 = vmatprep.subr.mxu0 0.0
    %2254 = vmatpush1.msra.mxu0 0.0
    %2255 = vmatprep.subr.mxu0 0.0
    %2256 = vmatpush1.msra.mxu0 0.0
    %2257 = vmatprep.subr.mxu0 0.0
    %2258 = vmatpush1.msra.mxu0 0.0
    %2259 = vmatprep.subr.mxu0 0.0
    %2260 = vmatpush1.msra.mxu0 0.0
    %2261 = vmatprep.subr.mxu0 0.0
    %2262 = vmatpush1.msra.mxu0 0.0
    %2263 = vmatprep.subr.mxu0 0.0
    %2264 = vmatpush1.msra.mxu0 0.0
    %2265 = vmatprep.subr.mxu0 0.0
    %2266 = vmatpush1.msra.mxu0 0.0
    %2267 = vmatprep.subr.mxu0 0.0
    %2268 = vmatpush1.msra.mxu0 0.0
    %2269 = vmatprep.subr.mxu0 0.0
    %2270 = vmatpush1.msra.mxu0 0.0
    %2271 = vmatprep.subr.mxu0 0.0
    %2272 = vmatpush1.msra.mxu0 0.0
    %2273 = vmatprep.subr.mxu0 0.0
    %2274 = vmatpush1.msra.mxu0 0.0
    %2275 = vmatprep.subr.mxu0 0.0
    %2276 = vmatpush1.msra.mxu0 0.0
    %2277 = vmatprep.subr.mxu0 0.0
    %2278 = vmatpush1.msra.mxu0 0.0
    %2279 = vmatprep.subr.mxu0 0.0
    %2280 = vmatpush1.msra.mxu0 0.0
    %2281 = vmatprep.subr.mxu0 0.0
    %2282 = vmatpush1.msra.mxu0 0.0
    %2283 = vmatprep.subr.mxu0 0.0
    %2284 = vmatpush1.msra.mxu0 0.0
    %2285 = vmatprep.subr.mxu0 0.0
    %2286 = vmatpush1.msra.mxu0 0.0
    %2287 = vmatprep.subr.mxu0 0.0
    %2288 = vmatpush1.msra.mxu0 0.0
    %2289 = vmatprep.subr.mxu0 0.0
    %2290 = vmatpush1.msra.mxu0 0.0
    %2291 = vmatprep.mubr.f32.mxu0 0.0
    %2292 = vmatmul.mubr.f32.gmra.mrb[0].mxu0 %v2118
    %v2293 = vpop.f32.mrb[0].mxu0
    %v2294 = vadd.f32 %v2226, %v2293
    %v2295 = vpop.f32.mrb[0].mxu0
    %2296 = vdwg.mxu0
    %v2297 = vadd.f32 %v2294, %v205
    %v2298 = vxor.u32 %v2297, 2147483648
    %v2299 = vmul.f32 %v2298, 1.442695
    %v2300 = vpow.pop %v2299
    %v2301 = vadd.f32 %v2300, 1.0
    %v2302 = vrcp.pop %v2301
    %v2303 = vmul.f32 1.0, %v2302
    %2305 = vrot.lane.b32.xlu0 %v2297, 32
    %v2306 = vpop.permute.xlu0 %2305
    %v2308 = vmul.f32 %v2303, %v2306
    %2310 = vrot.lane.b32.xlu0 %v2308, 64
    %v2311 = vpop.permute.xlu0 %2310
    %v2313 = vadd.f32 %v2297, %v2311
    %v2314 = vtanh.pop %v2313
    %v2315 = vsub.f32 1.0, %v2303
    %2317 = vrot.lane.b32.xlu0 %v2314, 96
    %v2318 = vpop.permute.xlu0 %2317
    %v2320 = vmul.f32 %v2315, %v2318
    %v2321 = vmul.f32 %v2303, %v2039
    %v2322 = vadd.f32 %v2320, %v2321
    %2324 = vrot.lane.b32.xlu0 %v2215, 96
    %v2325 = vpop.permute.xlu0 %2324
    %v2326 = vsel %vm234, %v2325, 0
    %2328 = vmatprep.subr.mxu0 0.0
    %2329 = vmatpush1.msra.mxu0 %v119
    %2330 = vmatprep.subr.mxu0 0.0
    %2331 = vmatpush1.msra.mxu0 %v120
    %2332 = vmatprep.subr.mxu0 0.0
    %2333 = vmatpush1.msra.mxu0 %v121
    %2334 = vmatprep.subr.mxu0 0.0
    %2335 = vmatpush1.msra.mxu0 %v122
    %2336 = vmatprep.subr.mxu0 0.0
    %2337 = vmatpush1.msra.mxu0 0.0
    %2338 = vmatprep.subr.mxu0 0.0
    %2339 = vmatpush1.msra.mxu0 0.0
    %2340 = vmatprep.subr.mxu0 0.0
    %2341 = vmatpush1.msra.mxu0 0.0
    %2342 = vmatprep.subr.mxu0 0.0
    %2343 = vmatpush1.msra.mxu0 0.0
    %2344 = vmatprep.subr.mxu0 0.0
    %2345 = vmatpush1.msra.mxu0 0.0
    %2346 = vmatprep.subr.mxu0 0.0
    %2347 = vmatpush1.msra.mxu0 0.0
    %2348 = vmatprep.subr.mxu0 0.0
    %2349 = vmatpush1.msra.mxu0 0.0
    %2350 = vmatprep.subr.mxu0 0.0
    %2351 = vmatpush1.msra.mxu0 0.0
    %2352 = vmatprep.subr.mxu0 0.0
    %2353 = vmatpush1.msra.mxu0 0.0
    %2354 = vmatprep.subr.mxu0 0.0
    %2355 = vmatpush1.msra.mxu0 0.0
    %2356 = vmatprep.subr.mxu0 0.0
    %2357 = vmatpush1.msra.mxu0 0.0
    %2358 = vmatprep.subr.mxu0 0.0
    %2359 = vmatpush1.msra.mxu0 0.0
    %2360 = vmatprep.subr.mxu0 0.0
    %2361 = vmatpush1.msra.mxu0 0.0
    %2362 = vmatprep.subr.mxu0 0.0
    %2363 = vmatpush1.msra.mxu0 0.0
    %2364 = vmatprep.subr.mxu0 0.0
    %2365 = vmatpush1.msra.mxu0 0.0
    %2366 = vmatprep.subr.mxu0 0.0
    %2367 = vmatpush1.msra.mxu0 0.0
    %2368 = vmatprep.subr.mxu0 0.0
    %2369 = vmatpush1.msra.mxu0 0.0
    %2370 = vmatprep.subr.mxu0 0.0
    %2371 = vmatpush1.msra.mxu0 0.0
    %2372 = vmatprep.subr.mxu0 0.0
    %2373 = vmatpush1.msra.mxu0 0.0
    %2374 = vmatprep.subr.mxu0 0.0
    %2375 = vmatpush1.msra.mxu0 0.0
    %2376 = vmatprep.subr.mxu0 0.0
    %2377 = vmatpush1.msra.mxu0 0.0
    %2378 = vmatprep.subr.mxu0 0.0
    %2379 = vmatpush1.msra.mxu0 0.0
    %2380 = vmatprep.subr.mxu0 0.0
    %2381 = vmatpush1.msra.mxu0 0.0
    %2382 = vmatprep.subr.mxu0 0.0
    %2383 = vmatpush1.msra.mxu0 0.0
    %2384 = vmatprep.subr.mxu0 0.0
    %2385 = vmatpush1.msra.mxu0 0.0
    %2386 = vmatprep.subr.mxu0 0.0
    %2387 = vmatpush1.msra.mxu0 0.0
    %2388 = vmatprep.subr.mxu0 0.0
    %2389 = vmatpush1.msra.mxu0 0.0
    %2390 = vmatprep.subr.mxu0 0.0
    %2391 = vmatpush1.msra.mxu0 0.0
    %2392 = vmatprep.mubr.f32.mxu0 0.0
    %2393 = vmatmul.mubr.f32.gmra.mrb[0].mxu0 %v2326
    %v2394 = vpop.f32.mrb[0].mxu0
    %v2395 = vadd.f32 0.0, %v2394
    %v2396 = vpop.f32.mrb[0].mxu0
    %2397 = vdwg.mxu0
    %2399 = vrot.lane.b32.xlu0 %v2322, 96
    %v2400 = vpop.permute.xlu0 %2399
    %v2401 = vsel %vm234, %v2400, 0
    %2403 = vmatprep.subr.mxu0 0.0
    %2404 = vmatpush1.msra.mxu0 %v115
    %2405 = vmatprep.subr.mxu0 0.0
    %2406 = vmatpush1.msra.mxu0 %v116
    %2407 = vmatprep.subr.mxu0 0.0
    %2408 = vmatpush1.msra.mxu0 %v117
    %2409 = vmatprep.subr.mxu0 0.0
    %2410 = vmatpush1.msra.mxu0 %v118
    %2411 = vmatprep.subr.mxu0 0.0
    %2412 = vmatpush1.msra.mxu0 0.0
    %2413 = vmatprep.subr.mxu0 0.0
    %2414 = vmatpush1.msra.mxu0 0.0
    %2415 = vmatprep.subr.mxu0 0.0
    %2416 = vmatpush1.msra.mxu0 0.0
    %2417 = vmatprep.subr.mxu0 0.0
    %2418 = vmatpush1.msra.mxu0 0.0
    %2419 = vmatprep.subr.mxu0 0.0
    %2420 = vmatpush1.msra.mxu0 0.0
    %2421 = vmatprep.subr.mxu0 0.0
    %2422 = vmatpush1.msra.mxu0 0.0
    %2423 = vmatprep.subr.mxu0 0.0
    %2424 = vmatpush1.msra.mxu0 0.0
    %2425 = vmatprep.subr.mxu0 0.0
    %2426 = vmatpush1.msra.mxu0 0.0
    %2427 = vmatprep.subr.mxu0 0.0
    %2428 = vmatpush1.msra.mxu0 0.0
    %2429 = vmatprep.subr.mxu0 0.0
    %2430 = vmatpush1.msra.mxu0 0.0
    %2431 = vmatprep.subr.mxu0 0.0
    %2432 = vmatpush1.msra.mxu0 0.0
    %2433 = vmatprep.subr.mxu0 0.0
    %2434 = vmatpush1.msra.mxu0 0.0
    %2435 = vmatprep.subr.mxu0 0.0
    %2436 = vmatpush1.msra.mxu0 0.0
    %2437 = vmatprep.subr.mxu0 0.0
    %2438 = vmatpush1.msra.mxu0 0.0
    %2439 = vmatprep.subr.mxu0 0.0
    %2440 = vmatpush1.msra.mxu0 0.0
    %2441 = vmatprep.subr.mxu0 0.0
    %2442 = vmatpush1.msra.mxu0 0.0
    %2443 = vmatprep.subr.mxu0 0.0
    %2444 = vmatpush1.msra.mxu0 0.0
    %2445 = vmatprep.subr.mxu0 0.0
    %2446 = vmatpush1.msra.mxu0 0.0
    %2447 = vmatprep.subr.mxu0 0.0
    %2448 = vmatpush1.msra.mxu0 0.0
    %2449 = vmatprep.subr.mxu0 0.0
    %2450 = vmatpush1.msra.mxu0 0.0
    %2451 = vmatprep.subr.mxu0 0.0
    %2452 = vmatpush1.msra.mxu0 0.0
    %2453 = vmatprep.subr.mxu0 0.0
    %2454 = vmatpush1.msra.mxu0 0.0
    %2455 = vmatprep.subr.mxu0 0.0
    %2456 = vmatpush1.msra.mxu0 0.0
    %2457 = vmatprep.subr.mxu0 0.0
    %2458 = vmatpush1.msra.mxu0 0.0
    %2459 = vmatprep.subr.mxu0 0.0
    %2460 = vmatpush1.msra.mxu0 0.0
    %2461 = vmatprep.subr.mxu0 0.0
    %2462 = vmatpush1.msra.mxu0 0.0
    %2463 = vmatprep.subr.mxu0 0.0
    %2464 = vmatpush1.msra.mxu0 0.0
    %2465 = vmatprep.subr.mxu0 0.0
    %2466 = vmatpush1.msra.mxu0 0.0
    %2467 = vmatprep.mubr.f32.mxu0 0.0
    %2468 = vmatmul.mubr.f32.gmra.mrb[0].mxu0 %v2401
    %v2469 = vpop.f32.mrb[0].mxu0
    %v2470 = vadd.f32 %v2395, %v2469
    %v2471 = vpop.f32.mrb[0].mxu0
    %2472 = vdwg.mxu0
    %v2473 = vadd.f32 %v2470, %v220
    %v2474 = vxor.u32 %v2473, 2147483648
    %v2475 = vmul.f32 %v2474, 1.442695
    %v2476 = vpow.pop %v2475
    %v2477 = vadd.f32 %v2476, 1.0
    %v2478 = vrcp.pop %v2477
    %v2479 = vmul.f32 1.0, %v2478
    %2481 = vrot.lane.b32.xlu0 %v2473, 32
    %v2482 = vpop.permute.xlu0 %2481
    %v2484 = vmul.f32 %v2479, %v2482
    %2486 = vrot.lane.b32.xlu0 %v2484, 64
    %v2487 = vpop.permute.xlu0 %2486
    %v2489 = vadd.f32 %v2473, %v2487
    %v2490 = vtanh.pop %v2489
    %v2491 = vsub.f32 1.0, %v2479
    %2493 = vrot.lane.b32.xlu0 %v2490, 96
    %v2494 = vpop.permute.xlu0 %2493
    %v2496 = vmul.f32 %v2491, %v2494
    %v2497 = vmul.f32 %v2479, %v2215
    %v2498 = vadd.f32 %v2496, %v2497
    %v2499 = vmul.f32 %v2498, %v515
    %2501 = vrot.lane.b32.xlu0 %v2499, 96
    %v2502 = vpop.permute.xlu0 %2501
    %v2504 = vsel %vm522, %v2502, 0.0
    %2505 = vadd.xlane.f32.xlu0 %v2504
    %v2506 = vpop.xlane.xlu0 %2505
    %v2507 = vadd.f32 %v2506, %v227
    %v2508 = vmax.f32 %v2507, 0.0
    %vm2509 = vcmask 7168
    %v2510 = vsel %vm2509, %v527, %v810
    %vm2511 = vcmask 15360
    %v2512 = vsel %vm2511, %v2510, %v1093
    %vm2513 = vcmask 23552
    %v2514 = vsel %vm2513, %v2512, %v1376
    %vm2515 = vcmask 31744
    %v2516 = vsel %vm2515, %v2514, %v1659
    %vm2517 = vcmask 39936
    %v2518 = vsel %vm2517, %v2516, %v1942
    %vm2519 = vcmask 48128
    %v2520 = vsel %vm2519, %v2518, %v2225
    %vm2521 = vcmask 56320
    %v2522 = vsel %vm2521, %v2520, %v2508
    %vm2523 = vcmask 58368
    %2524 = vst.msk [vmem:[#allocation12] sm:$0x3] %vm2523, %v2522
    // Predicated region
    $region74: #{tpu_custom_call.1} parent=1 // pred_check
      _
    $region75: #{tpu_custom_call.1} parent=1 // pred_check_branch
      %2526 = sbr.rel (0) target = $region77
    $region76: #{tpu_custom_call.1} parent=1 // pred_region
      %s2528 = ssub.s32 32, 32
      %2529 = vsyncadd [#allocation5], %s2528
      %s2531 = sshll.u32 [#allocation12], 4
      %s2532 = int_to_ptr.vmem [resolvable:$true] %s2531
      %2534 = dma.vmem_to_hbm [thread:$0]  %s2532, 32, %s13, [#allocation5]
    $region77: #{tpu_custom_call.1} parent=1 // pred_fallthru
      _
    // Predicated region
    $region78: #{tpu_custom_call.1} parent=1 // pred_check
      _
    $region79: #{tpu_custom_call.1} parent=1 // pred_check_branch
      %2536 = sbr.rel (0) target = $region81
    $region80: #{tpu_custom_call.1} parent=1 // pred_region
      %2537 = dma.done [#allocation5], 32
    $region81: #{tpu_custom_call.1} parent=1 // pred_fallthru
      _
    %2538 = vsyncpa [#allocation4], 1
    %2539 = vsyncpa [#allocation7], 1
    %2540 = vsyncpa [#allocation10], 1
    %2541 = vsyncpa [#allocation5], 1

</llo_original>
